<compile_context>
chip_gen: v5e
topology: v5e:2x2
jax: 0.10.0
libtpu: 0.0.40
codegen_flags: <defaults>
</compile_context>

<pallas_src>
import functools
import math

import jax
import jax.numpy as jnp
from jax import lax
from jax.experimental import pallas as pl
from jax.experimental.pallas import tpu as pltpu


def _layernorm(x, gamma, beta, eps=1e-5):
    mu = jnp.mean(x, axis=-1, keepdims=True)
    var = jnp.mean((x - mu) ** 2, axis=-1, keepdims=True)
    return (x - mu) * lax.rsqrt(var + eps) * gamma + beta


def encoder_layer_kernel(num_heads, d_k, sq,
                         x_ref,
                         ln1g_ref, ln1b_ref,
                         qw_ref, qb_ref, kw_ref, kb_ref, vw_ref, vb_ref,
                         ow_ref, ob_ref,
                         ln2g_ref, ln2b_ref,
                         w1_ref, b1_ref, w2_ref, b2_ref,
                         o_ref):
    H = num_heads
    S = x_ref.shape[1]
    D = H * d_k

    qi = pl.program_id(1)
    q0 = pl.multiple_of(qi * sq, sq)          # aligned q-row offset (sq % 8 == 0 or sq == S)

    x_full = x_ref[0]                         # (S, D) f32 -- full sequence (needed for K/V)

    # ---- sublayer 1: pre-LN multi-head self-attention + residual ----
    ln1g = ln1g_ref[0]
    ln1b = ln1b_ref[0]
    x2_kv = _layernorm(x_full, ln1g, ln1b)    # (S, D) f32

    if sq == S:                               # single q block: reuse, no slicing
        x_q, x2_q = x_full, x2_kv
    else:                                     # sublane-aligned q-row slice of this block
        x_q = x_ref[0, pl.ds(q0, sq), :]      # (sq, D) f32
        x2_q = _layernorm(x_q, ln1g, ln1b)

    # Head-major batched projections: weights are (H, D, d_k) bf16; activations get a
    # leading head axis so every matmul / intermediate stays head-major (H, rows, d_k)
    # -- no d_k-wide lane slicing, no relayouts, no concat.
    x2_kv_b = jnp.broadcast_to(x2_kv.astype(jnp.bfloat16)[None], (H, S, D))
    x2_q_b = jnp.broadcast_to(x2_q.astype(jnp.bfloat16)[None], (H, sq, D))

    def hdot(a, b):   # (H, m, c) x (H, c, n) -> (H, m, n), f32 accumulation on the MXU
        return lax.dot_general(a, b, (((2,), (1,)), ((0,), (0,))),
                               preferred_element_type=jnp.float32)

    # Q/K/V projections: bias added in f32, then cast to bf16 exactly once per tensor.
    q = (hdot(x2_q_b, qw_ref[...]) + qb_ref[...]).astype(jnp.bfloat16)    # (H, sq, dk)
    k = (hdot(x2_kv_b, kw_ref[...]) + kb_ref[...]).astype(jnp.bfloat16)   # (H, S,  dk)
    v = (hdot(x2_kv_b, vw_ref[...]) + vb_ref[...]).astype(jnp.bfloat16)   # (H, S,  dk)

    # Scores: contract the d_k dims of q and k directly (no transpose), batched over heads.
    s = lax.dot_general(q, k, (((2,), (2,)), ((0,), (0,))),
                        preferred_element_type=jnp.float32) * (1.0 / math.sqrt(d_k))
    # TODO(synk): attention mask path (mask=None here, matching the default arg).
    s = s - jnp.max(s, axis=-1, keepdims=True)        # f32 softmax
    p = jnp.exp(s)
    p = p * pl.reciprocal(jnp.sum(p, axis=-1, keepdims=True), approx=True)

    ctx = hdot(p.astype(jnp.bfloat16), v).astype(jnp.bfloat16)            # (H, sq, dk)

    # Fused per-head output projection: (H, sq, dk) x (H, dk, D), summed over heads.
    attn = jnp.sum(hdot(ctx, ow_ref[...]), axis=0) + ob_ref[0]            # (sq, D) f32

    x1 = x_q + attn                           # residual (dropout == identity in eval)

    # ---- sublayer 2: pre-LN feed-forward + residual ----
    x2 = _layernorm(x1, ln2g_ref[0], ln2b_ref[0])
    hdn = jnp.maximum(
        jnp.dot(x2.astype(jnp.bfloat16), w1_ref[...],
                preferred_element_type=jnp.float32) + b1_ref[0],
        0.0).astype(jnp.bfloat16)             # (sq, d_ff) hidden kept in bf16
    ff = jnp.dot(hdn, w2_ref[...], preferred_element_type=jnp.float32) + b2_ref[0]

    o_ref[0] = (x1 + ff).astype(o_ref.dtype)


def _vmem_bytes_estimate(S, sq, D, d_ff, H, d_k, single_buffer_weights):
    """Rough per-grid-step VMEM footprint (bytes)."""
    wmult = 1 if single_buffer_weights else 2
    w_bytes = wmult * 2 * (3 * D * D + D * D + 2 * D * d_ff)        # bf16 matmul weights
    b_bytes = wmult * 4 * (3 * H * d_k + 2 * D + d_ff + 4 * D)      # f32 biases + LN params
    io_bytes = 4 * (2 * S * D + 2 * sq * D)                         # double-buffered x / o blocks
    act_bytes = (
        4 * S * D                       # x2_kv f32
        + 2 * H * (S + sq) * D          # broadcast bf16 activations for head-major matmuls
        + 2 * H * (2 * S + sq) * d_k    # q/k/v bf16
        + 4 * 2 * H * sq * S            # scores + softmax f32
        + 2 * H * sq * S                # probs bf16
        + 4 * H * sq * D                # per-head out-projection partials f32
        + (4 + 2) * sq * d_ff           # FFN hidden f32 + bf16
        + 4 * 6 * sq * D                # residual / LN temporaries
    )
    return w_bytes + b_bytes + io_bytes + act_bytes


def encoder_layer(x, params, num_heads):
    """x: (B, S, D) float32. params: dict of pre-transposed f32 weights/biases."""
    B, S, D = x.shape
    d_ff = params["w1"].shape[1]
    assert D % num_heads == 0
    H = num_heads
    d_k = D // H

    # ---- host-side weight prep: head-major, bf16 matmul operands ----
    def head_major(w):    # (D, D) -> (H, D, d_k): columns of head h
        return jnp.transpose(w.reshape(D, H, d_k), (1, 0, 2)).astype(jnp.bfloat16)

    def head_bias(b):     # (1, D) -> (H, 1, d_k), f32
        return jnp.transpose(b.reshape(1, H, d_k), (1, 0, 2))

    qw = head_major(params["qw"]); qb = head_bias(params["qb"])
    kw = head_major(params["kw"]); kb = head_bias(params["kb"])
    vw = head_major(params["vw"]); vb = head_bias(params["vb"])
    ow = params["ow"].reshape(H, d_k, D).astype(jnp.bfloat16)        # rows of head h
    w1 = params["w1"].astype(jnp.bfloat16)
    w2 = params["w2"].astype(jnp.bfloat16)

    # ---- pick the q-row block and VMEM budget from the actual chip capacity ----
    try:
        vmem_cap = int(pltpu.get_tpu_info().vmem_capacity_bytes)     # 64 MiB v7x, 128 MiB v5e/v6e
    except Exception:
        vmem_cap = 64 * 1024 * 1024                                  # conservative fallback
    headroom = 12 * 1024 * 1024                                      # compiler-internal scratch

    sq = S
    for cand in (S, 1024, 512, 256, 128, 64, 32, 16, 8):
        if cand > S:
            continue
        if cand != S and (S % cand != 0 or cand % 8 != 0):
            continue
        if _vmem_bytes_estimate(S, cand, D, d_ff, H, d_k, True) + headroom <= vmem_cap:
            sq = cand
            break
    n_q = S // sq

    kernel = functools.partial(encoder_layer_kernel, H, d_k, sq)

    def run(single_buffer_weights):
        const_kwargs = {}
        if single_buffer_weights:
            # Weights/biases have a constant index_map -> DMA'd once; one VMEM buffer
            # is enough (halves resident weight VMEM vs. default double buffering).
            const_kwargs = dict(pipeline_mode=pl.Buffered(1))

        def cspec(shape):
            return pl.BlockSpec(shape, lambda b, qi: (0,) * len(shape), **const_kwargs)

        in_specs = [
            pl.BlockSpec((1, S, D), lambda b, qi: (b, 0, 0)),   # x (full seq per batch elem)
            cspec((1, D)), cspec((1, D)),                       # ln1 gamma / beta
            cspec((H, D, d_k)), cspec((H, 1, d_k)),             # q proj (head-major)
            cspec((H, D, d_k)), cspec((H, 1, d_k)),             # k proj
            cspec((H, D, d_k)), cspec((H, 1, d_k)),             # v proj
            cspec((H, d_k, D)), cspec((1, D)),                  # out proj (head-major)
            cspec((1, D)), cspec((1, D)),                       # ln2 gamma / beta
            cspec((D, d_ff)), cspec((1, d_ff)),                 # ff linear1
            cspec((d_ff, D)), cspec((1, D)),                    # ff linear2
        ]

        vmem_bytes = _vmem_bytes_estimate(S, sq, D, d_ff, H, d_k, single_buffer_weights)
        vmem_limit = int(max(16 * 1024 * 1024,
                             min(vmem_cap - headroom, vmem_bytes + 4 * 1024 * 1024)))

        out = pl.pallas_call(
            kernel,
            out_shape=jax.ShapeDtypeStruct((B, S, D), x.dtype),
            grid=(B, n_q),
            in_specs=in_specs,
            out_specs=pl.BlockSpec((1, sq, D), lambda b, qi: (b, qi, 0)),
            compiler_params=pltpu.CompilerParams(
                # Both axes parallel -> work shards across the two TensorCores on v7x.
                dimension_semantics=("parallel", "parallel"),
                vmem_limit_bytes=vmem_limit),
        )(x,
          params["ln1_g"], params["ln1_b"],
          qw, qb, kw, kb, vw, vb,
          ow, params["ob"],
          params["ln2_g"], params["ln2_b"],
          w1, params["b1"], w2, params["b2"])
        return jax.block_until_ready(out)

    try:
        return run(True)
    except Exception:
        # pl.Buffered(1) pipeline mode not supported by this JAX/Mosaic build ->
        # fall back to default double-buffered constant inputs (identical results).
        return run(False)


def encoder_layer_ref(x, params, num_heads):
    """Pure-JAX f32 reference mirroring the PyTorch forward (eval mode)."""
    B, S, D = x.shape
    d_k = D // num_heads

    def ln(x, g, b):
        mu = jnp.mean(x, axis=-1, keepdims=True)
        var = jnp.mean((x - mu) ** 2, axis=-1, keepdims=True)
        return (x - mu) / jnp.sqrt(var + 1e-5) * g + b

    x2 = ln(x, params["ln1_g"], params["ln1_b"])
    q = x2 @ params["qw"] + params["qb"]
    k = x2 @ params["kw"] + params["kb"]
    v = x2 @ params["vw"] + params["vb"]
    q = q.reshape(B, S, num_heads, d_k).transpose(0, 2, 1, 3)
    k = k.reshape(B, S, num_heads, d_k).transpose(0, 2, 1, 3)
    v = v.reshape(B, S, num_heads, d_k).transpose(0, 2, 1, 3)
    scores = jnp.einsum("bhqd,bhkd->bhqk", q, k) / math.sqrt(d_k)
    attn = jax.nn.softmax(scores, axis=-1)
    ctx = jnp.einsum("bhqk,bhkd->bhqd", attn, v)
    ctx = ctx.transpose(0, 2, 1, 3).reshape(B, S, D)
    x = x + ctx @ params["ow"] + params["ob"]
    x2 = ln(x, params["ln2_g"], params["ln2_b"])
    h = jnp.maximum(x2 @ params["w1"] + params["b1"], 0.0)
    return x + h @ params["w2"] + params["b2"]


def make_params(key, d_model, num_heads, d_ff):
    ks = jax.random.split(key, 12)
    s = 0.05

    def mat(k, shape):
        return jax.random.normal(k, shape, jnp.float32) * s

    return {
        "ln1_g": jnp.ones((1, d_model), jnp.float32),
        "ln1_b": jnp.zeros((1, d_model), jnp.float32),
        "ln2_g": jnp.ones((1, d_model), jnp.float32),
        "ln2_b": jnp.zeros((1, d_model), jnp.float32),
        # weights stored pre-transposed: (in_features, out_features)
        "qw": mat(ks[0], (d_model, d_model)), "qb": mat(ks[1], (1, d_model)),
        "kw": mat(ks[2], (d_model, d_model)), "kb": mat(ks[3], (1, d_model)),
        "vw": mat(ks[4], (d_model, d_model)), "vb": mat(ks[5], (1, d_model)),
        "ow": mat(ks[6], (d_model, d_model)), "ob": mat(ks[7], (1, d_model)),
        "w1": mat(ks[8], (d_model, d_ff)),    "b1": mat(ks[9], (1, d_ff)),
        "w2": mat(ks[10], (d_ff, d_model)),   "b2": mat(ks[11], (1, d_model)),
    }


if __name__ == "__main__":
    B, S, D, H, FF = 2, 8, 32, 4, 64

    key = jax.random.PRNGKey(0)
    kx, kp = jax.random.split(key)
    x = jax.random.normal(kx, (B, S, D), jnp.float32)
    params = make_params(kp, D, H, FF)

    out = encoder_layer(x, params, H)
    out = jax.block_until_ready(out)

    ref = encoder_layer_ref(x, params, H)
    assert out.shape == (B, S, D)
    # bf16 matmul operands + approx reciprocal => small numeric drift vs f32 reference.
    assert jnp.allclose(out, ref, atol=3e-2, rtol=3e-2), "mismatch vs JAX reference"

    print("KERNEL_OK")
</pallas_src>

<mosaic_0001>
module attributes {stable_mosaic.version = 11 : i64} {
  func.func @encoder_layer_kernel(%arg0: i32, %arg1: i32, %arg2: memref<1x8x32xf32, #tpu.memory_space<vmem>>, %arg3: memref<1x32xf32, #tpu.memory_space<vmem>>, %arg4: memref<1x32xf32, #tpu.memory_space<vmem>>, %arg5: memref<4x32x8xbf16, #tpu.memory_space<vmem>>, %arg6: memref<4x1x8xf32, #tpu.memory_space<vmem>>, %arg7: memref<4x32x8xbf16, #tpu.memory_space<vmem>>, %arg8: memref<4x1x8xf32, #tpu.memory_space<vmem>>, %arg9: memref<4x32x8xbf16, #tpu.memory_space<vmem>>, %arg10: memref<4x1x8xf32, #tpu.memory_space<vmem>>, %arg11: memref<4x8x32xbf16, #tpu.memory_space<vmem>>, %arg12: memref<1x32xf32, #tpu.memory_space<vmem>>, %arg13: memref<1x32xf32, #tpu.memory_space<vmem>>, %arg14: memref<1x32xf32, #tpu.memory_space<vmem>>, %arg15: memref<32x64xbf16, #tpu.memory_space<vmem>>, %arg16: memref<1x64xf32, #tpu.memory_space<vmem>>, %arg17: memref<64x32xbf16, #tpu.memory_space<vmem>>, %arg18: memref<1x32xf32, #tpu.memory_space<vmem>>, %arg19: memref<1x8x32xf32, #tpu.memory_space<vmem>>) attributes {dimension_semantics = [#tpu.dimension_semantics<parallel>, #tpu.dimension_semantics<parallel>], iteration_bounds = array<i64: 2, 1>, scalar_prefetch = 0 : i64, scratch_operands = 0 : i64, tpu.core_type = #tpu.core_type<tc>, window_params = [{transform_indices = @transform_0, window_bounds = array<i64: 1, 8, 32>}, {pipeline_mode = #tpu.pipeline_mode<synchronous>, transform_indices = @transform_1, window_bounds = array<i64: 1, 32>}, {pipeline_mode = #tpu.pipeline_mode<synchronous>, transform_indices = @transform_2, window_bounds = array<i64: 1, 32>}, {pipeline_mode = #tpu.pipeline_mode<synchronous>, transform_indices = @transform_3, window_bounds = array<i64: 4, 32, 8>}, {pipeline_mode = #tpu.pipeline_mode<synchronous>, transform_indices = @transform_4, window_bounds = array<i64: 4, 1, 8>}, {pipeline_mode = #tpu.pipeline_mode<synchronous>, transform_indices = @transform_5, window_bounds = array<i64: 4, 32, 8>}, {pipeline_mode = #tpu.pipeline_mode<synchronous>, transform_indices = @transform_6, window_bounds = array<i64: 4, 1, 8>}, {pipeline_mode = #tpu.pipeline_mode<synchronous>, transform_indices = @transform_7, window_bounds = array<i64: 4, 32, 8>}, {pipeline_mode = #tpu.pipeline_mode<synchronous>, transform_indices = @transform_8, window_bounds = array<i64: 4, 1, 8>}, {pipeline_mode = #tpu.pipeline_mode<synchronous>, transform_indices = @transform_9, window_bounds = array<i64: 4, 8, 32>}, {pipeline_mode = #tpu.pipeline_mode<synchronous>, transform_indices = @transform_10, window_bounds = array<i64: 1, 32>}, {pipeline_mode = #tpu.pipeline_mode<synchronous>, transform_indices = @transform_11, window_bounds = array<i64: 1, 32>}, {pipeline_mode = #tpu.pipeline_mode<synchronous>, transform_indices = @transform_12, window_bounds = array<i64: 1, 32>}, {pipeline_mode = #tpu.pipeline_mode<synchronous>, transform_indices = @transform_13, window_bounds = array<i64: 32, 64>}, {pipeline_mode = #tpu.pipeline_mode<synchronous>, transform_indices = @transform_14, window_bounds = array<i64: 1, 64>}, {pipeline_mode = #tpu.pipeline_mode<synchronous>, transform_indices = @transform_15, window_bounds = array<i64: 64, 32>}, {pipeline_mode = #tpu.pipeline_mode<synchronous>, transform_indices = @transform_16, window_bounds = array<i64: 1, 32>}, {transform_indices = @transform_17, window_bounds = array<i64: 1, 8, 32>}]} {
    %c0 = arith.constant 0 : index
    %c0_0 = arith.constant 0 : index
    %c0_1 = arith.constant 0 : index
    %0 = vector.load %arg2[%c0, %c0_0, %c0_1] : memref<1x8x32xf32, #tpu.memory_space<vmem>>, vector<1x8x32xf32>
    %1 = vector.shape_cast %0 : vector<1x8x32xf32> to vector<8x32xf32>
    %c0_2 = arith.constant 0 : index
    %c0_3 = arith.constant 0 : index
    %2 = vector.load %arg3[%c0_2, %c0_3] : memref<1x32xf32, #tpu.memory_space<vmem>>, vector<1x32xf32>
    %3 = vector.shape_cast %2 : vector<1x32xf32> to vector<32xf32>
    %c0_4 = arith.constant 0 : index
    %c0_5 = arith.constant 0 : index
    %4 = vector.load %arg4[%c0_4, %c0_5] : memref<1x32xf32, #tpu.memory_space<vmem>>, vector<1x32xf32>
    %5 = vector.shape_cast %4 : vector<1x32xf32> to vector<32xf32>
    %cst = arith.constant dense<0.000000e+00> : vector<8xf32>
    %6 = vector.multi_reduction <add>, %1, %cst [1] : vector<8x32xf32> to vector<8xf32>
    %7 = vector.shape_cast %6 : vector<8xf32> to vector<8x1xf32>
    %cst_6 = arith.constant 3.200000e+01 : f32
    %8 = vector.broadcast %cst_6 : f32 to vector<8x1xf32>
    %9 = arith.divf %7, %8 : vector<8x1xf32>
    %10 = vector.broadcast %9 : vector<8x1xf32> to vector<8x32xf32>
    %11 = arith.subf %1, %10 : vector<8x32xf32>
    %12 = arith.mulf %11, %11 : vector<8x32xf32>
    %cst_7 = arith.constant dense<0.000000e+00> : vector<8xf32>
    %13 = vector.multi_reduction <add>, %12, %cst_7 [1] : vector<8x32xf32> to vector<8xf32>
    %14 = vector.shape_cast %13 : vector<8xf32> to vector<8x1xf32>
    %cst_8 = arith.constant 3.200000e+01 : f32
    %15 = vector.broadcast %cst_8 : f32 to vector<8x1xf32>
    %16 = arith.divf %14, %15 : vector<8x1xf32>
    %17 = vector.broadcast %9 : vector<8x1xf32> to vector<8x32xf32>
    %18 = arith.subf %1, %17 : vector<8x32xf32>
    %cst_9 = arith.constant 9.99999974E-6 : f32
    %19 = vector.broadcast %cst_9 : f32 to vector<8x1xf32>
    %20 = arith.addf %16, %19 : vector<8x1xf32>
    %21 = math.rsqrt %20 : vector<8x1xf32>
    %22 = vector.broadcast %21 : vector<8x1xf32> to vector<8x32xf32>
    %23 = arith.mulf %18, %22 : vector<8x32xf32>
    %24 = vector.shape_cast %3 : vector<32xf32> to vector<1x32xf32>
    %25 = vector.broadcast %24 : vector<1x32xf32> to vector<8x32xf32>
    %26 = arith.mulf %23, %25 : vector<8x32xf32>
    %27 = vector.shape_cast %5 : vector<32xf32> to vector<1x32xf32>
    %28 = vector.broadcast %27 : vector<1x32xf32> to vector<8x32xf32>
    %29 = arith.addf %26, %28 : vector<8x32xf32>
    %30 = arith.truncf %29 : vector<8x32xf32> to vector<8x32xbf16>
    %31 = vector.shape_cast %30 : vector<8x32xbf16> to vector<1x8x32xbf16>
    %32 = vector.shape_cast %31 : vector<1x8x32xbf16> to vector<1x8x32xbf16>
    %33 = vector.broadcast %32 : vector<1x8x32xbf16> to vector<4x8x32xbf16>
    %34 = arith.truncf %29 : vector<8x32xf32> to vector<8x32xbf16>
    %35 = vector.shape_cast %34 : vector<8x32xbf16> to vector<1x8x32xbf16>
    %36 = vector.shape_cast %35 : vector<1x8x32xbf16> to vector<1x8x32xbf16>
    %37 = vector.broadcast %36 : vector<1x8x32xbf16> to vector<4x8x32xbf16>
    %c0_10 = arith.constant 0 : index
    %c0_11 = arith.constant 0 : index
    %c0_12 = arith.constant 0 : index
    %38 = vector.load %arg5[%c0_10, %c0_11, %c0_12] : memref<4x32x8xbf16, #tpu.memory_space<vmem>>, vector<4x32x8xbf16>
    %cst_13 = arith.constant dense<0.000000e+00> : vector<4x8x8xf32>
    %39 = tpu.matmul %37, %38, %cst_13 {dimension_numbers = #tpu.dot_dimension_numbers<[2], [1], [1], [2], [0, 0, 0, 1, 1, 2], [0], [0]>} : vector<4x8x32xbf16>, vector<4x32x8xbf16>, vector<4x8x8xf32> -> vector<4x8x8xf32>
    %c0_14 = arith.constant 0 : index
    %c0_15 = arith.constant 0 : index
    %c0_16 = arith.constant 0 : index
    %40 = vector.load %arg6[%c0_14, %c0_15, %c0_16] : memref<4x1x8xf32, #tpu.memory_space<vmem>>, vector<4x1x8xf32>
    %41 = vector.broadcast %40 : vector<4x1x8xf32> to vector<4x8x8xf32>
    %42 = arith.addf %39, %41 : vector<4x8x8xf32>
    %43 = arith.truncf %42 : vector<4x8x8xf32> to vector<4x8x8xbf16>
    %c0_17 = arith.constant 0 : index
    %c0_18 = arith.constant 0 : index
    %c0_19 = arith.constant 0 : index
    %44 = vector.load %arg7[%c0_17, %c0_18, %c0_19] : memref<4x32x8xbf16, #tpu.memory_space<vmem>>, vector<4x32x8xbf16>
    %cst_20 = arith.constant dense<0.000000e+00> : vector<4x8x8xf32>
    %45 = tpu.matmul %33, %44, %cst_20 {dimension_numbers = #tpu.dot_dimension_numbers<[2], [1], [1], [2], [0, 0, 0, 1, 1, 2], [0], [0]>} : vector<4x8x32xbf16>, vector<4x32x8xbf16>, vector<4x8x8xf32> -> vector<4x8x8xf32>
    %c0_21 = arith.constant 0 : index
    %c0_22 = arith.constant 0 : index
    %c0_23 = arith.constant 0 : index
    %46 = vector.load %arg8[%c0_21, %c0_22, %c0_23] : memref<4x1x8xf32, #tpu.memory_space<vmem>>, vector<4x1x8xf32>
    %47 = vector.broadcast %46 : vector<4x1x8xf32> to vector<4x8x8xf32>
    %48 = arith.addf %45, %47 : vector<4x8x8xf32>
    %49 = arith.truncf %48 : vector<4x8x8xf32> to vector<4x8x8xbf16>
    %c0_24 = arith.constant 0 : index
    %c0_25 = arith.constant 0 : index
    %c0_26 = arith.constant 0 : index
    %50 = vector.load %arg9[%c0_24, %c0_25, %c0_26] : memref<4x32x8xbf16, #tpu.memory_space<vmem>>, vector<4x32x8xbf16>
    %cst_27 = arith.constant dense<0.000000e+00> : vector<4x8x8xf32>
    %51 = tpu.matmul %33, %50, %cst_27 {dimension_numbers = #tpu.dot_dimension_numbers<[2], [1], [1], [2], [0, 0, 0, 1, 1, 2], [0], [0]>} : vector<4x8x32xbf16>, vector<4x32x8xbf16>, vector<4x8x8xf32> -> vector<4x8x8xf32>
    %c0_28 = arith.constant 0 : index
    %c0_29 = arith.constant 0 : index
    %c0_30 = arith.constant 0 : index
    %52 = vector.load %arg10[%c0_28, %c0_29, %c0_30] : memref<4x1x8xf32, #tpu.memory_space<vmem>>, vector<4x1x8xf32>
    %53 = vector.broadcast %52 : vector<4x1x8xf32> to vector<4x8x8xf32>
    %54 = arith.addf %51, %53 : vector<4x8x8xf32>
    %55 = arith.truncf %54 : vector<4x8x8xf32> to vector<4x8x8xbf16>
    %cst_31 = arith.constant dense<0.000000e+00> : vector<4x8x8xf32>
    %56 = tpu.matmul %43, %49, %cst_31 {dimension_numbers = #tpu.dot_dimension_numbers<[2], [2], [1], [1], [0, 0, 0, 1, 1, 1], [0], [0]>} : vector<4x8x8xbf16>, vector<4x8x8xbf16>, vector<4x8x8xf32> -> vector<4x8x8xf32>
    %cst_32 = arith.constant 0.353553385 : f32
    %57 = vector.broadcast %cst_32 : f32 to vector<4x8x8xf32>
    %58 = arith.mulf %56, %57 : vector<4x8x8xf32>
    %cst_33 = arith.constant dense<0xFF800000> : vector<4x8xf32>
    %59 = vector.multi_reduction <maximumf>, %58, %cst_33 [2] : vector<4x8x8xf32> to vector<4x8xf32>
    %60 = vector.shape_cast %59 : vector<4x8xf32> to vector<4x8x1xf32>
    %61 = vector.broadcast %60 : vector<4x8x1xf32> to vector<4x8x8xf32>
    %62 = arith.subf %58, %61 : vector<4x8x8xf32>
    %63 = math.exp %62 : vector<4x8x8xf32>
    %cst_34 = arith.constant dense<0.000000e+00> : vector<4x8xf32>
    %64 = vector.multi_reduction <add>, %63, %cst_34 [2] : vector<4x8x8xf32> to vector<4x8xf32>
    %65 = vector.shape_cast %64 : vector<4x8xf32> to vector<4x8x1xf32>
    %66 = tpu.reciprocal %65 {approx = true} : vector<4x8x1xf32> -> vector<4x8x1xf32>
    %67 = vector.broadcast %66 : vector<4x8x1xf32> to vector<4x8x8xf32>
    %68 = arith.mulf %63, %67 : vector<4x8x8xf32>
    %69 = arith.truncf %68 : vector<4x8x8xf32> to vector<4x8x8xbf16>
    %cst_35 = arith.constant dense<0.000000e+00> : vector<4x8x8xf32>
    %70 = tpu.matmul %69, %55, %cst_35 {dimension_numbers = #tpu.dot_dimension_numbers<[2], [1], [1], [2], [0, 0, 0, 1, 1, 2], [0], [0]>} : vector<4x8x8xbf16>, vector<4x8x8xbf16>, vector<4x8x8xf32> -> vector<4x8x8xf32>
    %71 = arith.truncf %70 : vector<4x8x8xf32> to vector<4x8x8xbf16>
    %c0_36 = arith.constant 0 : index
    %c0_37 = arith.constant 0 : index
    %c0_38 = arith.constant 0 : index
    %72 = vector.load %arg11[%c0_36, %c0_37, %c0_38] : memref<4x8x32xbf16, #tpu.memory_space<vmem>>, vector<4x8x32xbf16>
    %cst_39 = arith.constant dense<0.000000e+00> : vector<4x8x32xf32>
    %73 = tpu.matmul %71, %72, %cst_39 {dimension_numbers = #tpu.dot_dimension_numbers<[2], [1], [1], [2], [0, 0, 0, 1, 1, 2], [0], [0]>} : vector<4x8x8xbf16>, vector<4x8x32xbf16>, vector<4x8x32xf32> -> vector<4x8x32xf32>
    %cst_40 = arith.constant dense<0.000000e+00> : vector<8x32xf32>
    %74 = vector.multi_reduction <add>, %73, %cst_40 [0] : vector<4x8x32xf32> to vector<8x32xf32>
    %c0_41 = arith.constant 0 : index
    %c0_42 = arith.constant 0 : index
    %75 = vector.load %arg12[%c0_41, %c0_42] : memref<1x32xf32, #tpu.memory_space<vmem>>, vector<1x32xf32>
    %76 = vector.shape_cast %75 : vector<1x32xf32> to vector<32xf32>
    %77 = vector.shape_cast %76 : vector<32xf32> to vector<1x32xf32>
    %78 = vector.broadcast %77 : vector<1x32xf32> to vector<8x32xf32>
    %79 = arith.addf %74, %78 : vector<8x32xf32>
    %80 = arith.addf %1, %79 : vector<8x32xf32>
    %c0_43 = arith.constant 0 : index
    %c0_44 = arith.constant 0 : index
    %81 = vector.load %arg13[%c0_43, %c0_44] : memref<1x32xf32, #tpu.memory_space<vmem>>, vector<1x32xf32>
    %82 = vector.shape_cast %81 : vector<1x32xf32> to vector<32xf32>
    %c0_45 = arith.constant 0 : index
    %c0_46 = arith.constant 0 : index
    %83 = vector.load %arg14[%c0_45, %c0_46] : memref<1x32xf32, #tpu.memory_space<vmem>>, vector<1x32xf32>
    %84 = vector.shape_cast %83 : vector<1x32xf32> to vector<32xf32>
    %cst_47 = arith.constant dense<0.000000e+00> : vector<8xf32>
    %85 = vector.multi_reduction <add>, %80, %cst_47 [1] : vector<8x32xf32> to vector<8xf32>
    %86 = vector.shape_cast %85 : vector<8xf32> to vector<8x1xf32>
    %cst_48 = arith.constant 3.200000e+01 : f32
    %87 = vector.broadcast %cst_48 : f32 to vector<8x1xf32>
    %88 = arith.divf %86, %87 : vector<8x1xf32>
    %89 = vector.broadcast %88 : vector<8x1xf32> to vector<8x32xf32>
    %90 = arith.subf %80, %89 : vector<8x32xf32>
    %91 = arith.mulf %90, %90 : vector<8x32xf32>
    %cst_49 = arith.constant dense<0.000000e+00> : vector<8xf32>
    %92 = vector.multi_reduction <add>, %91, %cst_49 [1] : vector<8x32xf32> to vector<8xf32>
    %93 = vector.shape_cast %92 : vector<8xf32> to vector<8x1xf32>
    %cst_50 = arith.constant 3.200000e+01 : f32
    %94 = vector.broadcast %cst_50 : f32 to vector<8x1xf32>
    %95 = arith.divf %93, %94 : vector<8x1xf32>
    %96 = vector.broadcast %88 : vector<8x1xf32> to vector<8x32xf32>
    %97 = arith.subf %80, %96 : vector<8x32xf32>
    %cst_51 = arith.constant 9.99999974E-6 : f32
    %98 = vector.broadcast %cst_51 : f32 to vector<8x1xf32>
    %99 = arith.addf %95, %98 : vector<8x1xf32>
    %100 = math.rsqrt %99 : vector<8x1xf32>
    %101 = vector.broadcast %100 : vector<8x1xf32> to vector<8x32xf32>
    %102 = arith.mulf %97, %101 : vector<8x32xf32>
    %103 = vector.shape_cast %82 : vector<32xf32> to vector<1x32xf32>
    %104 = vector.broadcast %103 : vector<1x32xf32> to vector<8x32xf32>
    %105 = arith.mulf %102, %104 : vector<8x32xf32>
    %106 = vector.shape_cast %84 : vector<32xf32> to vector<1x32xf32>
    %107 = vector.broadcast %106 : vector<1x32xf32> to vector<8x32xf32>
    %108 = arith.addf %105, %107 : vector<8x32xf32>
    %109 = arith.truncf %108 : vector<8x32xf32> to vector<8x32xbf16>
    %c0_52 = arith.constant 0 : index
    %c0_53 = arith.constant 0 : index
    %110 = vector.load %arg15[%c0_52, %c0_53] : memref<32x64xbf16, #tpu.memory_space<vmem>>, vector<32x64xbf16>
    %cst_54 = arith.constant dense<0.000000e+00> : vector<8x64xf32>
    %111 = tpu.matmul %109, %110, %cst_54 {dimension_numbers = #tpu.dot_dimension_numbers<[1], [0], [0], [1], [0, 0, 1, 1], [], []>} : vector<8x32xbf16>, vector<32x64xbf16>, vector<8x64xf32> -> vector<8x64xf32>
    %c0_55 = arith.constant 0 : index
    %c0_56 = arith.constant 0 : index
    %112 = vector.load %arg16[%c0_55, %c0_56] : memref<1x64xf32, #tpu.memory_space<vmem>>, vector<1x64xf32>
    %113 = vector.shape_cast %112 : vector<1x64xf32> to vector<64xf32>
    %114 = vector.shape_cast %113 : vector<64xf32> to vector<1x64xf32>
    %115 = vector.broadcast %114 : vector<1x64xf32> to vector<8x64xf32>
    %116 = arith.addf %111, %115 : vector<8x64xf32>
    %cst_57 = arith.constant 0.000000e+00 : f32
    %117 = vector.broadcast %cst_57 : f32 to vector<8x64xf32>
    %118 = arith.maximumf %116, %117 : vector<8x64xf32>
    %119 = arith.truncf %118 : vector<8x64xf32> to vector<8x64xbf16>
    %c0_58 = arith.constant 0 : index
    %c0_59 = arith.constant 0 : index
    %120 = vector.load %arg17[%c0_58, %c0_59] : memref<64x32xbf16, #tpu.memory_space<vmem>>, vector<64x32xbf16>
    %cst_60 = arith.constant dense<0.000000e+00> : vector<8x32xf32>
    %121 = tpu.matmul %119, %120, %cst_60 {dimension_numbers = #tpu.dot_dimension_numbers<[1], [0], [0], [1], [0, 0, 1, 1], [], []>} : vector<8x64xbf16>, vector<64x32xbf16>, vector<8x32xf32> -> vector<8x32xf32>
    %c0_61 = arith.constant 0 : index
    %c0_62 = arith.constant 0 : index
    %122 = vector.load %arg18[%c0_61, %c0_62] : memref<1x32xf32, #tpu.memory_space<vmem>>, vector<1x32xf32>
    %123 = vector.shape_cast %122 : vector<1x32xf32> to vector<32xf32>
    %124 = vector.shape_cast %123 : vector<32xf32> to vector<1x32xf32>
    %125 = vector.broadcast %124 : vector<1x32xf32> to vector<8x32xf32>
    %126 = arith.addf %121, %125 : vector<8x32xf32>
    %127 = arith.addf %80, %126 : vector<8x32xf32>
    %c0_63 = arith.constant 0 : index
    %c0_64 = arith.constant 0 : index
    %c0_65 = arith.constant 0 : index
    %128 = vector.load %arg19[%c0_63, %c0_64, %c0_65] : memref<1x8x32xf32, #tpu.memory_space<vmem>>, vector<1x8x32xf32>
    %129 = vector.shape_cast %128 : vector<1x8x32xf32> to vector<8x32xf32>
    %130 = vector.shape_cast %127 : vector<8x32xf32> to vector<1x8x32xf32>
    tpu.vector_store %arg19[%c0_63, %c0_64, %c0_65], %130 {strides = array<i32>} : memref<1x8x32xf32, #tpu.memory_space<vmem>>, vector<1x8x32xf32>,
    return
  }
  func.func @transform_0(%arg0: i32, %arg1: i32) -> (i32, i32, i32) {
    %c0_i32 = arith.constant 0 : i32
    %c0_i32_0 = arith.constant 0 : i32
    %c0_i32_1 = arith.constant 0 : i32
    return %arg0, %c0_i32, %c0_i32_0 : i32, i32, i32
  }
  func.func @transform_1(%arg0: i32, %arg1: i32) -> (i32, i32) {
    %c0_i32 = arith.constant 0 : i32
    %c0_i32_0 = arith.constant 0 : i32
    %c0_i32_1 = arith.constant 0 : i32
    return %c0_i32, %c0_i32_0 : i32, i32
  }
  func.func @transform_2(%arg0: i32, %arg1: i32) -> (i32, i32) {
    %c0_i32 = arith.constant 0 : i32
    %c0_i32_0 = arith.constant 0 : i32
    %c0_i32_1 = arith.constant 0 : i32
    return %c0_i32, %c0_i32_0 : i32, i32
  }
  func.func @transform_3(%arg0: i32, %arg1: i32) -> (i32, i32, i32) {
    %c0_i32 = arith.constant 0 : i32
    %c0_i32_0 = arith.constant 0 : i32
    %c0_i32_1 = arith.constant 0 : i32
    %c0_i32_2 = arith.constant 0 : i32
    return %c0_i32, %c0_i32_0, %c0_i32_1 : i32, i32, i32
  }
  func.func @transform_4(%arg0: i32, %arg1: i32) -> (i32, i32, i32) {
    %c0_i32 = arith.constant 0 : i32
    %c0_i32_0 = arith.constant 0 : i32
    %c0_i32_1 = arith.constant 0 : i32
    %c0_i32_2 = arith.constant 0 : i32
    return %c0_i32, %c0_i32_0, %c0_i32_1 : i32, i32, i32
  }
  func.func @transform_5(%arg0: i32, %arg1: i32) -> (i32, i32, i32) {
    %c0_i32 = arith.constant 0 : i32
    %c0_i32_0 = arith.constant 0 : i32
    %c0_i32_1 = arith.constant 0 : i32
    %c0_i32_2 = arith.constant 0 : i32
    return %c0_i32, %c0_i32_0, %c0_i32_1 : i32, i32, i32
  }
  func.func @transform_6(%arg0: i32, %arg1: i32) -> (i32, i32, i32) {
    %c0_i32 = arith.constant 0 : i32
    %c0_i32_0 = arith.constant 0 : i32
    %c0_i32_1 = arith.constant 0 : i32
    %c0_i32_2 = arith.constant 0 : i32
    return %c0_i32, %c0_i32_0, %c0_i32_1 : i32, i32, i32
  }
  func.func @transform_7(%arg0: i32, %arg1: i32) -> (i32, i32, i32) {
    %c0_i32 = arith.constant 0 : i32
    %c0_i32_0 = arith.constant 0 : i32
    %c0_i32_1 = arith.constant 0 : i32
    %c0_i32_2 = arith.constant 0 : i32
    return %c0_i32, %c0_i32_0, %c0_i32_1 : i32, i32, i32
  }
  func.func @transform_8(%arg0: i32, %arg1: i32) -> (i32, i32, i32) {
    %c0_i32 = arith.constant 0 : i32
    %c0_i32_0 = arith.constant 0 : i32
    %c0_i32_1 = arith.constant 0 : i32
    %c0_i32_2 = arith.constant 0 : i32
    return %c0_i32, %c0_i32_0, %c0_i32_1 : i32, i32, i32
  }
  func.func @transform_9(%arg0: i32, %arg1: i32) -> (i32, i32, i32) {
    %c0_i32 = arith.constant 0 : i32
    %c0_i32_0 = arith.constant 0 : i32
    %c0_i32_1 = arith.constant 0 : i32
    %c0_i32_2 = arith.constant 0 : i32
    return %c0_i32, %c0_i32_0, %c0_i32_1 : i32, i32, i32
  }
  func.func @transform_10(%arg0: i32, %arg1: i32) -> (i32, i32) {
    %c0_i32 = arith.constant 0 : i32
    %c0_i32_0 = arith.constant 0 : i32
    %c0_i32_1 = arith.constant 0 : i32
    return %c0_i32, %c0_i32_0 : i32, i32
  }
  func.func @transform_11(%arg0: i32, %arg1: i32) -> (i32, i32) {
    %c0_i32 = arith.constant 0 : i32
    %c0_i32_0 = arith.constant 0 : i32
    %c0_i32_1 = arith.constant 0 : i32
    return %c0_i32, %c0_i32_0 : i32, i32
  }
  func.func @transform_12(%arg0: i32, %arg1: i32) -> (i32, i32) {
    %c0_i32 = arith.constant 0 : i32
    %c0_i32_0 = arith.constant 0 : i32
    %c0_i32_1 = arith.constant 0 : i32
    return %c0_i32, %c0_i32_0 : i32, i32
  }
  func.func @transform_13(%arg0: i32, %arg1: i32) -> (i32, i32) {
    %c0_i32 = arith.constant 0 : i32
    %c0_i32_0 = arith.constant 0 : i32
    %c0_i32_1 = arith.constant 0 : i32
    return %c0_i32, %c0_i32_0 : i32, i32
  }
  func.func @transform_14(%arg0: i32, %arg1: i32) -> (i32, i32) {
    %c0_i32 = arith.constant 0 : i32
    %c0_i32_0 = arith.constant 0 : i32
    %c0_i32_1 = arith.constant 0 : i32
    return %c0_i32, %c0_i32_0 : i32, i32
  }
  func.func @transform_15(%arg0: i32, %arg1: i32) -> (i32, i32) {
    %c0_i32 = arith.constant 0 : i32
    %c0_i32_0 = arith.constant 0 : i32
    %c0_i32_1 = arith.constant 0 : i32
    return %c0_i32, %c0_i32_0 : i32, i32
  }
  func.func @transform_16(%arg0: i32, %arg1: i32) -> (i32, i32) {
    %c0_i32 = arith.constant 0 : i32
    %c0_i32_0 = arith.constant 0 : i32
    %c0_i32_1 = arith.constant 0 : i32
    return %c0_i32, %c0_i32_0 : i32, i32
  }
  func.func @transform_17(%arg0: i32, %arg1: i32) -> (i32, i32, i32) {
    %c0_i32 = arith.constant 0 : i32
    %c0_i32_0 = arith.constant 0 : i32
    return %arg0, %arg1, %c0_i32 : i32, i32, i32
  }
}

module attributes {stable_mosaic.version = 11 : i64} {
  func.func @encoder_layer_kernel(%arg0: i32, %arg1: i32, %arg2: memref<1x8x32xf32, #tpu.memory_space<vmem>>, %arg3: memref<1x32xf32, #tpu.memory_space<vmem>>, %arg4: memref<1x32xf32, #tpu.memory_space<vmem>>, %arg5: memref<4x32x8xbf16, #tpu.memory_space<vmem>>, %arg6: memref<4x1x8xf32, #tpu.memory_space<vmem>>, %arg7: memref<4x32x8xbf16, #tpu.memory_space<vmem>>, %arg8: memref<4x1x8xf32, #tpu.memory_space<vmem>>, %arg9: memref<4x32x8xbf16, #tpu.memory_space<vmem>>, %arg10: memref<4x1x8xf32, #tpu.memory_space<vmem>>, %arg11: memref<4x8x32xbf16, #tpu.memory_space<vmem>>, %arg12: memref<1x32xf32, #tpu.memory_space<vmem>>, %arg13: memref<1x32xf32, #tpu.memory_space<vmem>>, %arg14: memref<1x32xf32, #tpu.memory_space<vmem>>, %arg15: memref<32x64xbf16, #tpu.memory_space<vmem>>, %arg16: memref<1x64xf32, #tpu.memory_space<vmem>>, %arg17: memref<64x32xbf16, #tpu.memory_space<vmem>>, %arg18: memref<1x32xf32, #tpu.memory_space<vmem>>, %arg19: memref<1x8x32xf32, #tpu.memory_space<vmem>>) attributes {dimension_semantics = [#tpu.dimension_semantics<parallel>, #tpu.dimension_semantics<parallel>], iteration_bounds = array<i64: 2, 1>, scalar_prefetch = 0 : i64, scratch_operands = 0 : i64, tpu.core_type = #tpu.core_type<tc>, window_params = [{transform_indices = @transform_0, window_bounds = array<i64: 1, 8, 32>}, {pipeline_mode = #tpu.pipeline_mode<synchronous>, transform_indices = @transform_1, window_bounds = array<i64: 1, 32>}, {pipeline_mode = #tpu.pipeline_mode<synchronous>, transform_indices = @transform_2, window_bounds = array<i64: 1, 32>}, {pipeline_mode = #tpu.pipeline_mode<synchronous>, transform_indices = @transform_3, window_bounds = array<i64: 4, 32, 8>}, {pipeline_mode = #tpu.pipeline_mode<synchronous>, transform_indices = @transform_4, window_bounds = array<i64: 4, 1, 8>}, {pipeline_mode = #tpu.pipeline_mode<synchronous>, transform_indices = @transform_5, window_bounds = array<i64: 4, 32, 8>}, {pipeline_mode = #tpu.pipeline_mode<synchronous>, transform_indices = @transform_6, window_bounds = array<i64: 4, 1, 8>}, {pipeline_mode = #tpu.pipeline_mode<synchronous>, transform_indices = @transform_7, window_bounds = array<i64: 4, 32, 8>}, {pipeline_mode = #tpu.pipeline_mode<synchronous>, transform_indices = @transform_8, window_bounds = array<i64: 4, 1, 8>}, {pipeline_mode = #tpu.pipeline_mode<synchronous>, transform_indices = @transform_9, window_bounds = array<i64: 4, 8, 32>}, {pipeline_mode = #tpu.pipeline_mode<synchronous>, transform_indices = @transform_10, window_bounds = array<i64: 1, 32>}, {pipeline_mode = #tpu.pipeline_mode<synchronous>, transform_indices = @transform_11, window_bounds = array<i64: 1, 32>}, {pipeline_mode = #tpu.pipeline_mode<synchronous>, transform_indices = @transform_12, window_bounds = array<i64: 1, 32>}, {pipeline_mode = #tpu.pipeline_mode<synchronous>, transform_indices = @transform_13, window_bounds = array<i64: 32, 64>}, {pipeline_mode = #tpu.pipeline_mode<synchronous>, transform_indices = @transform_14, window_bounds = array<i64: 1, 64>}, {pipeline_mode = #tpu.pipeline_mode<synchronous>, transform_indices = @transform_15, window_bounds = array<i64: 64, 32>}, {pipeline_mode = #tpu.pipeline_mode<synchronous>, transform_indices = @transform_16, window_bounds = array<i64: 1, 32>}, {transform_indices = @transform_17, window_bounds = array<i64: 1, 8, 32>}]} {
    %c0 = arith.constant 0 : index
    %c0_0 = arith.constant 0 : index
    %c0_1 = arith.constant 0 : index
    %0 = vector.load %arg2[%c0, %c0_0, %c0_1] : memref<1x8x32xf32, #tpu.memory_space<vmem>>, vector<1x8x32xf32>
    %1 = vector.shape_cast %0 : vector<1x8x32xf32> to vector<8x32xf32>
    %c0_2 = arith.constant 0 : index
    %c0_3 = arith.constant 0 : index
    %2 = vector.load %arg3[%c0_2, %c0_3] : memref<1x32xf32, #tpu.memory_space<vmem>>, vector<1x32xf32>
    %3 = vector.shape_cast %2 : vector<1x32xf32> to vector<32xf32>
    %c0_4 = arith.constant 0 : index
    %c0_5 = arith.constant 0 : index
    %4 = vector.load %arg4[%c0_4, %c0_5] : memref<1x32xf32, #tpu.memory_space<vmem>>, vector<1x32xf32>
    %5 = vector.shape_cast %4 : vector<1x32xf32> to vector<32xf32>
    %cst = arith.constant dense<0.000000e+00> : vector<8xf32>
    %6 = vector.multi_reduction <add>, %1, %cst [1] : vector<8x32xf32> to vector<8xf32>
    %7 = vector.shape_cast %6 : vector<8xf32> to vector<8x1xf32>
    %cst_6 = arith.constant 3.200000e+01 : f32
    %8 = vector.broadcast %cst_6 : f32 to vector<8x1xf32>
    %9 = arith.divf %7, %8 : vector<8x1xf32>
    %10 = vector.broadcast %9 : vector<8x1xf32> to vector<8x32xf32>
    %11 = arith.subf %1, %10 : vector<8x32xf32>
    %12 = arith.mulf %11, %11 : vector<8x32xf32>
    %cst_7 = arith.constant dense<0.000000e+00> : vector<8xf32>
    %13 = vector.multi_reduction <add>, %12, %cst_7 [1] : vector<8x32xf32> to vector<8xf32>
    %14 = vector.shape_cast %13 : vector<8xf32> to vector<8x1xf32>
    %cst_8 = arith.constant 3.200000e+01 : f32
    %15 = vector.broadcast %cst_8 : f32 to vector<8x1xf32>
    %16 = arith.divf %14, %15 : vector<8x1xf32>
    %17 = vector.broadcast %9 : vector<8x1xf32> to vector<8x32xf32>
    %18 = arith.subf %1, %17 : vector<8x32xf32>
    %cst_9 = arith.constant 9.99999974E-6 : f32
    %19 = vector.broadcast %cst_9 : f32 to vector<8x1xf32>
    %20 = arith.addf %16, %19 : vector<8x1xf32>
    %21 = math.rsqrt %20 : vector<8x1xf32>
    %22 = vector.broadcast %21 : vector<8x1xf32> to vector<8x32xf32>
    %23 = arith.mulf %18, %22 : vector<8x32xf32>
    %24 = vector.shape_cast %3 : vector<32xf32> to vector<1x32xf32>
    %25 = vector.broadcast %24 : vector<1x32xf32> to vector<8x32xf32>
    %26 = arith.mulf %23, %25 : vector<8x32xf32>
    %27 = vector.shape_cast %5 : vector<32xf32> to vector<1x32xf32>
    %28 = vector.broadcast %27 : vector<1x32xf32> to vector<8x32xf32>
    %29 = arith.addf %26, %28 : vector<8x32xf32>
    %30 = arith.truncf %29 : vector<8x32xf32> to vector<8x32xbf16>
    %31 = vector.shape_cast %30 : vector<8x32xbf16> to vector<1x8x32xbf16>
    %32 = vector.shape_cast %31 : vector<1x8x32xbf16> to vector<1x8x32xbf16>
    %33 = vector.broadcast %32 : vector<1x8x32xbf16> to vector<4x8x32xbf16>
    %34 = arith.truncf %29 : vector<8x32xf32> to vector<8x32xbf16>
    %35 = vector.shape_cast %34 : vector<8x32xbf16> to vector<1x8x32xbf16>
    %36 = vector.shape_cast %35 : vector<1x8x32xbf16> to vector<1x8x32xbf16>
    %37 = vector.broadcast %36 : vector<1x8x32xbf16> to vector<4x8x32xbf16>
    %c0_10 = arith.constant 0 : index
    %c0_11 = arith.constant 0 : index
    %c0_12 = arith.constant 0 : index
    %38 = vector.load %arg5[%c0_10, %c0_11, %c0_12] : memref<4x32x8xbf16, #tpu.memory_space<vmem>>, vector<4x32x8xbf16>
    %cst_13 = arith.constant dense<0.000000e+00> : vector<4x8x8xf32>
    %39 = tpu.matmul %37, %38, %cst_13 {dimension_numbers = #tpu.dot_dimension_numbers<[2], [1], [1], [2], [0, 0, 0, 1, 1, 2], [0], [0]>} : vector<4x8x32xbf16>, vector<4x32x8xbf16>, vector<4x8x8xf32> -> vector<4x8x8xf32>
    %c0_14 = arith.constant 0 : index
    %c0_15 = arith.constant 0 : index
    %c0_16 = arith.constant 0 : index
    %40 = vector.load %arg6[%c0_14, %c0_15, %c0_16] : memref<4x1x8xf32, #tpu.memory_space<vmem>>, vector<4x1x8xf32>
    %41 = vector.broadcast %40 : vector<4x1x8xf32> to vector<4x8x8xf32>
    %42 = arith.addf %39, %41 : vector<4x8x8xf32>
    %43 = arith.truncf %42 : vector<4x8x8xf32> to vector<4x8x8xbf16>
    %c0_17 = arith.constant 0 : index
    %c0_18 = arith.constant 0 : index
    %c0_19 = arith.constant 0 : index
    %44 = vector.load %arg7[%c0_17, %c0_18, %c0_19] : memref<4x32x8xbf16, #tpu.memory_space<vmem>>, vector<4x32x8xbf16>
    %cst_20 = arith.constant dense<0.000000e+00> : vector<4x8x8xf32>
    %45 = tpu.matmul %33, %44, %cst_20 {dimension_numbers = #tpu.dot_dimension_numbers<[2], [1], [1], [2], [0, 0, 0, 1, 1, 2], [0], [0]>} : vector<4x8x32xbf16>, vector<4x32x8xbf16>, vector<4x8x8xf32> -> vector<4x8x8xf32>
    %c0_21 = arith.constant 0 : index
    %c0_22 = arith.constant 0 : index
    %c0_23 = arith.constant 0 : index
    %46 = vector.load %arg8[%c0_21, %c0_22, %c0_23] : memref<4x1x8xf32, #tpu.memory_space<vmem>>, vector<4x1x8xf32>
    %47 = vector.broadcast %46 : vector<4x1x8xf32> to vector<4x8x8xf32>
    %48 = arith.addf %45, %47 : vector<4x8x8xf32>
    %49 = arith.truncf %48 : vector<4x8x8xf32> to vector<4x8x8xbf16>
    %c0_24 = arith.constant 0 : index
    %c0_25 = arith.constant 0 : index
    %c0_26 = arith.constant 0 : index
    %50 = vector.load %arg9[%c0_24, %c0_25, %c0_26] : memref<4x32x8xbf16, #tpu.memory_space<vmem>>, vector<4x32x8xbf16>
    %cst_27 = arith.constant dense<0.000000e+00> : vector<4x8x8xf32>
    %51 = tpu.matmul %33, %50, %cst_27 {dimension_numbers = #tpu.dot_dimension_numbers<[2], [1], [1], [2], [0, 0, 0, 1, 1, 2], [0], [0]>} : vector<4x8x32xbf16>, vector<4x32x8xbf16>, vector<4x8x8xf32> -> vector<4x8x8xf32>
    %c0_28 = arith.constant 0 : index
    %c0_29 = arith.constant 0 : index
    %c0_30 = arith.constant 0 : index
    %52 = vector.load %arg10[%c0_28, %c0_29, %c0_30] : memref<4x1x8xf32, #tpu.memory_space<vmem>>, vector<4x1x8xf32>
    %53 = vector.broadcast %52 : vector<4x1x8xf32> to vector<4x8x8xf32>
    %54 = arith.addf %51, %53 : vector<4x8x8xf32>
    %55 = arith.truncf %54 : vector<4x8x8xf32> to vector<4x8x8xbf16>
    %cst_31 = arith.constant dense<0.000000e+00> : vector<4x8x8xf32>
    %56 = tpu.matmul %43, %49, %cst_31 {dimension_numbers = #tpu.dot_dimension_numbers<[2], [2], [1], [1], [0, 0, 0, 1, 1, 1], [0], [0]>} : vector<4x8x8xbf16>, vector<4x8x8xbf16>, vector<4x8x8xf32> -> vector<4x8x8xf32>
    %cst_32 = arith.constant 0.353553385 : f32
    %57 = vector.broadcast %cst_32 : f32 to vector<4x8x8xf32>
    %58 = arith.mulf %56, %57 : vector<4x8x8xf32>
    %cst_33 = arith.constant dense<0xFF800000> : vector<4x8xf32>
    %59 = vector.multi_reduction <maximumf>, %58, %cst_33 [2] : vector<4x8x8xf32> to vector<4x8xf32>
    %60 = vector.shape_cast %59 : vector<4x8xf32> to vector<4x8x1xf32>
    %61 = vector.broadcast %60 : vector<4x8x1xf32> to vector<4x8x8xf32>
    %62 = arith.subf %58, %61 : vector<4x8x8xf32>
    %63 = math.exp %62 : vector<4x8x8xf32>
    %cst_34 = arith.constant dense<0.000000e+00> : vector<4x8xf32>
    %64 = vector.multi_reduction <add>, %63, %cst_34 [2] : vector<4x8x8xf32> to vector<4x8xf32>
    %65 = vector.shape_cast %64 : vector<4x8xf32> to vector<4x8x1xf32>
    %66 = tpu.reciprocal %65 {approx = true} : vector<4x8x1xf32> -> vector<4x8x1xf32>
    %67 = vector.broadcast %66 : vector<4x8x1xf32> to vector<4x8x8xf32>
    %68 = arith.mulf %63, %67 : vector<4x8x8xf32>
    %69 = arith.truncf %68 : vector<4x8x8xf32> to vector<4x8x8xbf16>
    %cst_35 = arith.constant dense<0.000000e+00> : vector<4x8x8xf32>
    %70 = tpu.matmul %69, %55, %cst_35 {dimension_numbers = #tpu.dot_dimension_numbers<[2], [1], [1], [2], [0, 0, 0, 1, 1, 2], [0], [0]>} : vector<4x8x8xbf16>, vector<4x8x8xbf16>, vector<4x8x8xf32> -> vector<4x8x8xf32>
    %71 = arith.truncf %70 : vector<4x8x8xf32> to vector<4x8x8xbf16>
    %c0_36 = arith.constant 0 : index
    %c0_37 = arith.constant 0 : index
    %c0_38 = arith.constant 0 : index
    %72 = vector.load %arg11[%c0_36, %c0_37, %c0_38] : memref<4x8x32xbf16, #tpu.memory_space<vmem>>, vector<4x8x32xbf16>
    %cst_39 = arith.constant dense<0.000000e+00> : vector<4x8x32xf32>
    %73 = tpu.matmul %71, %72, %cst_39 {dimension_numbers = #tpu.dot_dimension_numbers<[2], [1], [1], [2], [0, 0, 0, 1, 1, 2], [0], [0]>} : vector<4x8x8xbf16>, vector<4x8x32xbf16>, vector<4x8x32xf32> -> vector<4x8x32xf32>
    %cst_40 = arith.constant dense<0.000000e+00> : vector<8x32xf32>
    %74 = vector.multi_reduction <add>, %73, %cst_40 [0] : vector<4x8x32xf32> to vector<8x32xf32>
    %c0_41 = arith.constant 0 : index
    %c0_42 = arith.constant 0 : index
    %75 = vector.load %arg12[%c0_41, %c0_42] : memref<1x32xf32, #tpu.memory_space<vmem>>, vector<1x32xf32>
    %76 = vector.shape_cast %75 : vector<1x32xf32> to vector<32xf32>
    %77 = vector.shape_cast %76 : vector<32xf32> to vector<1x32xf32>
    %78 = vector.broadcast %77 : vector<1x32xf32> to vector<8x32xf32>
    %79 = arith.addf %74, %78 : vector<8x32xf32>
    %80 = arith.addf %1, %79 : vector<8x32xf32>
    %c0_43 = arith.constant 0 : index
    %c0_44 = arith.constant 0 : index
    %81 = vector.load %arg13[%c0_43, %c0_44] : memref<1x32xf32, #tpu.memory_space<vmem>>, vector<1x32xf32>
    %82 = vector.shape_cast %81 : vector<1x32xf32> to vector<32xf32>
    %c0_45 = arith.constant 0 : index
    %c0_46 = arith.constant 0 : index
    %83 = vector.load %arg14[%c0_45, %c0_46] : memref<1x32xf32, #tpu.memory_space<vmem>>, vector<1x32xf32>
    %84 = vector.shape_cast %83 : vector<1x32xf32> to vector<32xf32>
    %cst_47 = arith.constant dense<0.000000e+00> : vector<8xf32>
    %85 = vector.multi_reduction <add>, %80, %cst_47 [1] : vector<8x32xf32> to vector<8xf32>
    %86 = vector.shape_cast %85 : vector<8xf32> to vector<8x1xf32>
    %cst_48 = arith.constant 3.200000e+01 : f32
    %87 = vector.broadcast %cst_48 : f32 to vector<8x1xf32>
    %88 = arith.divf %86, %87 : vector<8x1xf32>
    %89 = vector.broadcast %88 : vector<8x1xf32> to vector<8x32xf32>
    %90 = arith.subf %80, %89 : vector<8x32xf32>
    %91 = arith.mulf %90, %90 : vector<8x32xf32>
    %cst_49 = arith.constant dense<0.000000e+00> : vector<8xf32>
    %92 = vector.multi_reduction <add>, %91, %cst_49 [1] : vector<8x32xf32> to vector<8xf32>
    %93 = vector.shape_cast %92 : vector<8xf32> to vector<8x1xf32>
    %cst_50 = arith.constant 3.200000e+01 : f32
    %94 = vector.broadcast %cst_50 : f32 to vector<8x1xf32>
    %95 = arith.divf %93, %94 : vector<8x1xf32>
    %96 = vector.broadcast %88 : vector<8x1xf32> to vector<8x32xf32>
    %97 = arith.subf %80, %96 : vector<8x32xf32>
    %cst_51 = arith.constant 9.99999974E-6 : f32
    %98 = vector.broadcast %cst_51 : f32 to vector<8x1xf32>
    %99 = arith.addf %95, %98 : vector<8x1xf32>
    %100 = math.rsqrt %99 : vector<8x1xf32>
    %101 = vector.broadcast %100 : vector<8x1xf32> to vector<8x32xf32>
    %102 = arith.mulf %97, %101 : vector<8x32xf32>
    %103 = vector.shape_cast %82 : vector<32xf32> to vector<1x32xf32>
    %104 = vector.broadcast %103 : vector<1x32xf32> to vector<8x32xf32>
    %105 = arith.mulf %102, %104 : vector<8x32xf32>
    %106 = vector.shape_cast %84 : vector<32xf32> to vector<1x32xf32>
    %107 = vector.broadcast %106 : vector<1x32xf32> to vector<8x32xf32>
    %108 = arith.addf %105, %107 : vector<8x32xf32>
    %109 = arith.truncf %108 : vector<8x32xf32> to vector<8x32xbf16>
    %c0_52 = arith.constant 0 : index
    %c0_53 = arith.constant 0 : index
    %110 = vector.load %arg15[%c0_52, %c0_53] : memref<32x64xbf16, #tpu.memory_space<vmem>>, vector<32x64xbf16>
    %cst_54 = arith.constant dense<0.000000e+00> : vector<8x64xf32>
    %111 = tpu.matmul %109, %110, %cst_54 {dimension_numbers = #tpu.dot_dimension_numbers<[1], [0], [0], [1], [0, 0, 1, 1], [], []>} : vector<8x32xbf16>, vector<32x64xbf16>, vector<8x64xf32> -> vector<8x64xf32>
    %c0_55 = arith.constant 0 : index
    %c0_56 = arith.constant 0 : index
    %112 = vector.load %arg16[%c0_55, %c0_56] : memref<1x64xf32, #tpu.memory_space<vmem>>, vector<1x64xf32>
    %113 = vector.shape_cast %112 : vector<1x64xf32> to vector<64xf32>
    %114 = vector.shape_cast %113 : vector<64xf32> to vector<1x64xf32>
    %115 = vector.broadcast %114 : vector<1x64xf32> to vector<8x64xf32>
    %116 = arith.addf %111, %115 : vector<8x64xf32>
    %cst_57 = arith.constant 0.000000e+00 : f32
    %117 = vector.broadcast %cst_57 : f32 to vector<8x64xf32>
    %118 = arith.maximumf %116, %117 : vector<8x64xf32>
    %119 = arith.truncf %118 : vector<8x64xf32> to vector<8x64xbf16>
    %c0_58 = arith.constant 0 : index
    %c0_59 = arith.constant 0 : index
    %120 = vector.load %arg17[%c0_58, %c0_59] : memref<64x32xbf16, #tpu.memory_space<vmem>>, vector<64x32xbf16>
    %cst_60 = arith.constant dense<0.000000e+00> : vector<8x32xf32>
    %121 = tpu.matmul %119, %120, %cst_60 {dimension_numbers = #tpu.dot_dimension_numbers<[1], [0], [0], [1], [0, 0, 1, 1], [], []>} : vector<8x64xbf16>, vector<64x32xbf16>, vector<8x32xf32> -> vector<8x32xf32>
    %c0_61 = arith.constant 0 : index
    %c0_62 = arith.constant 0 : index
    %122 = vector.load %arg18[%c0_61, %c0_62] : memref<1x32xf32, #tpu.memory_space<vmem>>, vector<1x32xf32>
    %123 = vector.shape_cast %122 : vector<1x32xf32> to vector<32xf32>
    %124 = vector.shape_cast %123 : vector<32xf32> to vector<1x32xf32>
    %125 = vector.broadcast %124 : vector<1x32xf32> to vector<8x32xf32>
    %126 = arith.addf %121, %125 : vector<8x32xf32>
    %127 = arith.addf %80, %126 : vector<8x32xf32>
    %c0_63 = arith.constant 0 : index
    %c0_64 = arith.constant 0 : index
    %c0_65 = arith.constant 0 : index
    %128 = vector.load %arg19[%c0_63, %c0_64, %c0_65] : memref<1x8x32xf32, #tpu.memory_space<vmem>>, vector<1x8x32xf32>
    %129 = vector.shape_cast %128 : vector<1x8x32xf32> to vector<8x32xf32>
    %130 = vector.shape_cast %127 : vector<8x32xf32> to vector<1x8x32xf32>
    tpu.vector_store %arg19[%c0_63, %c0_64, %c0_65], %130 {strides = array<i32>} : memref<1x8x32xf32, #tpu.memory_space<vmem>>, vector<1x8x32xf32>,
    return
  }
  func.func @transform_0(%arg0: i32, %arg1: i32) -> (i32, i32, i32) {
    %c0_i32 = arith.constant 0 : i32
    %c0_i32_0 = arith.constant 0 : i32
    %c0_i32_1 = arith.constant 0 : i32
    return %arg0, %c0_i32, %c0_i32_0 : i32, i32, i32
  }
  func.func @transform_1(%arg0: i32, %arg1: i32) -> (i32, i32) {
    %c0_i32 = arith.constant 0 : i32
    %c0_i32_0 = arith.constant 0 : i32
    %c0_i32_1 = arith.constant 0 : i32
    return %c0_i32, %c0_i32_0 : i32, i32
  }
  func.func @transform_2(%arg0: i32, %arg1: i32) -> (i32, i32) {
    %c0_i32 = arith.constant 0 : i32
    %c0_i32_0 = arith.constant 0 : i32
    %c0_i32_1 = arith.constant 0 : i32
    return %c0_i32, %c0_i32_0 : i32, i32
  }
  func.func @transform_3(%arg0: i32, %arg1: i32) -> (i32, i32, i32) {
    %c0_i32 = arith.constant 0 : i32
    %c0_i32_0 = arith.constant 0 : i32
    %c0_i32_1 = arith.constant 0 : i32
    %c0_i32_2 = arith.constant 0 : i32
    return %c0_i32, %c0_i32_0, %c0_i32_1 : i32, i32, i32
  }
  func.func @transform_4(%arg0: i32, %arg1: i32) -> (i32, i32, i32) {
    %c0_i32 = arith.constant 0 : i32
    %c0_i32_0 = arith.constant 0 : i32
    %c0_i32_1 = arith.constant 0 : i32
    %c0_i32_2 = arith.constant 0 : i32
    return %c0_i32, %c0_i32_0, %c0_i32_1 : i32, i32, i32
  }
  func.func @transform_5(%arg0: i32, %arg1: i32) -> (i32, i32, i32) {
    %c0_i32 = arith.constant 0 : i32
    %c0_i32_0 = arith.constant 0 : i32
    %c0_i32_1 = arith.constant 0 : i32
    %c0_i32_2 = arith.constant 0 : i32
    return %c0_i32, %c0_i32_0, %c0_i32_1 : i32, i32, i32
  }
  func.func @transform_6(%arg0: i32, %arg1: i32) -> (i32, i32, i32) {
    %c0_i32 = arith.constant 0 : i32
    %c0_i32_0 = arith.constant 0 : i32
    %c0_i32_1 = arith.constant 0 : i32
    %c0_i32_2 = arith.constant 0 : i32
    return %c0_i32, %c0_i32_0, %c0_i32_1 : i32, i32, i32
  }
  func.func @transform_7(%arg0: i32, %arg1: i32) -> (i32, i32, i32) {
    %c0_i32 = arith.constant 0 : i32
    %c0_i32_0 = arith.constant 0 : i32
    %c0_i32_1 = arith.constant 0 : i32
    %c0_i32_2 = arith.constant 0 : i32
    return %c0_i32, %c0_i32_0, %c0_i32_1 : i32, i32, i32
  }
  func.func @transform_8(%arg0: i32, %arg1: i32) -> (i32, i32, i32) {
    %c0_i32 = arith.constant 0 : i32
    %c0_i32_0 = arith.constant 0 : i32
    %c0_i32_1 = arith.constant 0 : i32
    %c0_i32_2 = arith.constant 0 : i32
    return %c0_i32, %c0_i32_0, %c0_i32_1 : i32, i32, i32
  }
  func.func @transform_9(%arg0: i32, %arg1: i32) -> (i32, i32, i32) {
    %c0_i32 = arith.constant 0 : i32
    %c0_i32_0 = arith.constant 0 : i32
    %c0_i32_1 = arith.constant 0 : i32
    %c0_i32_2 = arith.constant 0 : i32
    return %c0_i32, %c0_i32_0, %c0_i32_1 : i32, i32, i32
  }
  func.func @transform_10(%arg0: i32, %arg1: i32) -> (i32, i32) {
    %c0_i32 = arith.constant 0 : i32
    %c0_i32_0 = arith.constant 0 : i32
    %c0_i32_1 = arith.constant 0 : i32
    return %c0_i32, %c0_i32_0 : i32, i32
  }
  func.func @transform_11(%arg0: i32, %arg1: i32) -> (i32, i32) {
    %c0_i32 = arith.constant 0 : i32
    %c0_i32_0 = arith.constant 0 : i32
    %c0_i32_1 = arith.constant 0 : i32
    return %c0_i32, %c0_i32_0 : i32, i32
  }
  func.func @transform_12(%arg0: i32, %arg1: i32) -> (i32, i32) {
    %c0_i32 = arith.constant 0 : i32
    %c0_i32_0 = arith.constant 0 : i32
    %c0_i32_1 = arith.constant 0 : i32
    return %c0_i32, %c0_i32_0 : i32, i32
  }
  func.func @transform_13(%arg0: i32, %arg1: i32) -> (i32, i32) {
    %c0_i32 = arith.constant 0 : i32
    %c0_i32_0 = arith.constant 0 : i32
    %c0_i32_1 = arith.constant 0 : i32
    return %c0_i32, %c0_i32_0 : i32, i32
  }
  func.func @transform_14(%arg0: i32, %arg1: i32) -> (i32, i32) {
    %c0_i32 = arith.constant 0 : i32
    %c0_i32_0 = arith.constant 0 : i32
    %c0_i32_1 = arith.constant 0 : i32
    return %c0_i32, %c0_i32_0 : i32, i32
  }
  func.func @transform_15(%arg0: i32, %arg1: i32) -> (i32, i32) {
    %c0_i32 = arith.constant 0 : i32
    %c0_i32_0 = arith.constant 0 : i32
    %c0_i32_1 = arith.constant 0 : i32
    return %c0_i32, %c0_i32_0 : i32, i32
  }
  func.func @transform_16(%arg0: i32, %arg1: i32) -> (i32, i32) {
    %c0_i32 = arith.constant 0 : i32
    %c0_i32_0 = arith.constant 0 : i32
    %c0_i32_1 = arith.constant 0 : i32
    return %c0_i32, %c0_i32_0 : i32, i32
  }
  func.func @transform_17(%arg0: i32, %arg1: i32) -> (i32, i32, i32) {
    %c0_i32 = arith.constant 0 : i32
    %c0_i32_0 = arith.constant 0 : i32
    return %arg0, %arg1, %c0_i32 : i32, i32, i32
  }
}

</mosaic_0001>

<llo_original>
// kernel: tpu_custom_call.1
$region0: #{tpu_custom_call.1}
  #allocation0 [shape = 'u32[]', space=smem, size = 0x4, offset = 0x4, fixed_abs, tag = 'smem constant byte address 0x4 - core index']
  #allocation1 [shape = 'u32[72,128]{1,0:T(1,128)}', space=vmem, size = 0x9000, scoped, tag = 'internal scratch']
  %s0 = inlined_call_operand.vmem [shape: f32[2,8,32], index: 0, kind: input, shape index: {}]
  %s1 = inlined_call_operand.vmem [shape: f32[1,32], index: 1, kind: input, shape index: {}]
  %s2 = inlined_call_operand.vmem [shape: f32[1,32], index: 2, kind: input, shape index: {}]
  %s3 = inlined_call_operand.vmem [shape: bf16[4,32,8], index: 3, kind: input, shape index: {}]
  %s4 = inlined_call_operand.vmem [shape: f32[4,1,8], index: 4, kind: input, shape index: {}]
  %s5 = inlined_call_operand.vmem [shape: bf16[4,32,8], index: 5, kind: input, shape index: {}]
  %s6 = inlined_call_operand.vmem [shape: f32[4,1,8], index: 6, kind: input, shape index: {}]
  %s7 = inlined_call_operand.vmem [shape: bf16[4,32,8], index: 7, kind: input, shape index: {}]
  %s8 = inlined_call_operand.vmem [shape: f32[4,1,8], index: 8, kind: input, shape index: {}]
  %s9 = inlined_call_operand.vmem [shape: bf16[4,8,32], index: 9, kind: input, shape index: {}]
  %s10 = inlined_call_operand.vmem [shape: f32[1,32], index: 10, kind: input, shape index: {}]
  %s11 = inlined_call_operand.vmem [shape: f32[1,32], index: 11, kind: input, shape index: {}]
  %s12 = inlined_call_operand.vmem [shape: f32[1,32], index: 12, kind: input, shape index: {}]
  %s13 = inlined_call_operand.vmem [shape: bf16[32,64], index: 13, kind: input, shape index: {}]
  %s14 = inlined_call_operand.vmem [shape: f32[1,64], index: 14, kind: input, shape index: {}]
  %s15 = inlined_call_operand.vmem [shape: bf16[64,32], index: 15, kind: input, shape index: {}]
  %s16 = inlined_call_operand.vmem [shape: f32[1,32], index: 16, kind: input, shape index: {}]
  %s17 = inlined_call_operand.hbm [shape: f32[2,8,32], index: 17, kind: output, shape index: {}]
  %s18 = sld [smem:[#allocation0]]
  $region101: #{tpu_custom_call.1} parent=0
    _
  %s20 = ssub.s32 1, %s18
  %s21 = scalar_select 0, %s20, %s18
  $region1: #{tpu_custom_call.1} parent=0
    #allocation2 [shape = 'u8[8192]{0}', space=vmem, size = 0x2000, scoped, tag = 'output window, operand 0']
    #allocation3 [shape = 's32[2]{0}', space=sflag, size = 0x8, scoped, tag = 'scoped memory for tpu_custom_call.1']
    %22 = vsyncpa [#allocation3], 0
    %s23 = scalar_lea.sflag [#allocation3], 1
    %24 = vsyncpa %s23, 0
    loop: start=0, step=1, limit=4
    $region2: #{tpu_custom_call.1} parent=1 // loop_pre_header
      _
    $region3: #{tpu_custom_call.1} parent=1 // loop_header
      %s26 = sphi 0, %s30
      %p27 = scmp.ge.s32.totalorder %s26, 4
      %s33 = sphi 0, %s45
      %s34 = sphi 0, %s41
      %s35 = sphi 0, %s33
      %s36 = sphi 0, %s34
      %s37 = sphi 0, %s35
      %s38 = sphi 0, %s36
      %s48 = sphi 0, %s50
      %s51 = sphi 0, %s48
      %s52 = sphi 0, %s51
      %s68 = sphi 0, %s52
      %s72 = sphi 0, %s72
      %s74 = sphi 0, %s72
      %s75 = sphi 0, %s74
      %s89 = sphi 0, %s75
      %s93 = sphi 0, %s93
      %s95 = sphi 0, %s93
      %s96 = sphi 0, %s95
      %s110 = sphi 0, %s96
      %s114 = sphi 0, %s114
      %s116 = sphi 0, %s114
      %s117 = sphi 0, %s116
      %s131 = sphi 0, %s117
      %s135 = sphi 0, %s135
      %s137 = sphi 0, %s135
      %s138 = sphi 0, %s137
      %s152 = sphi 0, %s138
      %s156 = sphi 0, %s156
      %s158 = sphi 0, %s156
      %s159 = sphi 0, %s158
      %s173 = sphi 0, %s159
      %s177 = sphi 0, %s177
      %s179 = sphi 0, %s177
      %s180 = sphi 0, %s179
      %s194 = sphi 0, %s180
      %s198 = sphi 0, %s198
      %s200 = sphi 0, %s198
      %s201 = sphi 0, %s200
      %s215 = sphi 0, %s201
      %s219 = sphi 0, %s219
      %s221 = sphi 0, %s219
      %s222 = sphi 0, %s221
      %s236 = sphi 0, %s222
      %s240 = sphi 0, %s240
      %s242 = sphi 0, %s240
      %s243 = sphi 0, %s242
      %s257 = sphi 0, %s243
      %s261 = sphi 0, %s261
      %s263 = sphi 0, %s261
      %s264 = sphi 0, %s263
      %s278 = sphi 0, %s264
      %s282 = sphi 0, %s282
      %s284 = sphi 0, %s282
      %s285 = sphi 0, %s284
      %s299 = sphi 0, %s285
      %s303 = sphi 0, %s303
      %s305 = sphi 0, %s303
      %s306 = sphi 0, %s305
      %s320 = sphi 0, %s306
      %s324 = sphi 0, %s324
      %s326 = sphi 0, %s324
      %s327 = sphi 0, %s326
      %s341 = sphi 0, %s327
      %s345 = sphi 0, %s345
      %s347 = sphi 0, %s345
      %s348 = sphi 0, %s347
      %s362 = sphi 0, %s348
      %s366 = sphi 0, %s366
      %s368 = sphi 0, %s366
      %s369 = sphi 0, %s368
      %s383 = sphi 0, %s369
      %s387 = sphi 0, %s387
      %s389 = sphi 0, %s387
      %s390 = sphi 0, %s389
      %s404 = sphi 0, %s390
      %s412 = sphi 0, %s414
      %s415 = sphi 0, %s412
      %s416 = sphi 0, %s415
      %s432 = sphi 0, %s416
    $region4: #{tpu_custom_call.1} parent=1 // loop_header_branch
      %29 = sbr.rel (%p27) target = $region8
    $region5: #{tpu_custom_call.1} parent=1 // loop_body
      %s31 = ssub.s32 %s26, 1
      %s32 = ssub.s32 %s26, 2
      %s39 = sadd.s32 1, %s34
      %p40 = scmp.ge.s32.totalorder %s39, 1
      %s41 = scalar_select %p40, 0, %s39
      %s42 = sadd.s32 1, %s33
      %s43 = scalar_select %p40, %s42, %s33
      %p44 = scmp.ge.s32.totalorder %s43, 2
      %s45 = scalar_select %p44, 0, %s43
      %s46 = ssub.s32 %s33, %s45
      %p47 = scmp.eq.s32.totalorder %s46, 0
      %s49 = sadd.s32 %s48, 1
      %s50 = scalar_select %p47, %s48, %s49
      %p53 = pneg %p47
      %p54 = scmp.eq.s32.totalorder %s26, 1
      %p55 = por %p53, %p54
      %p56 = scmp.ne.s32.totalorder %s48, %s51
      %p57 = scmp.eq.s32.totalorder %s26, 0
      %p58 = por %p56, %p57
      %p59 = scmp.ne.s32.totalorder %s48, %s51
      %p60 = scmp.eq.s32.totalorder %s31, 1
      %p61 = por %p59, %p60
      %p62 = scmp.ne.s32.totalorder %s51, %s52
      %p63 = scmp.eq.s32.totalorder %s31, 0
      %p64 = por %p62, %p63
      %p65 = scmp.ne.s32.totalorder %s51, %s52
      %p66 = scmp.eq.s32.totalorder %s32, 1
      %p67 = por %p65, %p66
      %p69 = scmp.ne.s32.totalorder %s52, %s68
      %p70 = scmp.eq.s32.totalorder %s32, 0
      %p71 = por %p69, %p70
      %s73 = sadd.s32 %s72, 1
      %p76 = scmp.eq.s32.totalorder %s26, 1
      %p77 = scmp.ne.s32.totalorder %s72, %s74
      %p78 = scmp.eq.s32.totalorder %s26, 0
      %p79 = por %p77, %p78
      %p80 = scmp.ne.s32.totalorder %s72, %s74
      %p81 = scmp.eq.s32.totalorder %s31, 1
      %p82 = por %p80, %p81
      %p83 = scmp.ne.s32.totalorder %s74, %s75
      %p84 = scmp.eq.s32.totalorder %s31, 0
      %p85 = por %p83, %p84
      %p86 = scmp.ne.s32.totalorder %s74, %s75
      %p87 = scmp.eq.s32.totalorder %s32, 1
      %p88 = por %p86, %p87
      %p90 = scmp.ne.s32.totalorder %s75, %s89
      %p91 = scmp.eq.s32.totalorder %s32, 0
      %p92 = por %p90, %p91
      %s94 = sadd.s32 %s93, 1
      %p97 = scmp.eq.s32.totalorder %s26, 1
      %p98 = scmp.ne.s32.totalorder %s93, %s95
      %p99 = scmp.eq.s32.totalorder %s26, 0
      %p100 = por %p98, %p99
      %p101 = scmp.ne.s32.totalorder %s93, %s95
      %p102 = scmp.eq.s32.totalorder %s31, 1
      %p103 = por %p101, %p102
      %p104 = scmp.ne.s32.totalorder %s95, %s96
      %p105 = scmp.eq.s32.totalorder %s31, 0
      %p106 = por %p104, %p105
      %p107 = scmp.ne.s32.totalorder %s95, %s96
      %p108 = scmp.eq.s32.totalorder %s32, 1
      %p109 = por %p107, %p108
      %p111 = scmp.ne.s32.totalorder %s96, %s110
      %p112 = scmp.eq.s32.totalorder %s32, 0
      %p113 = por %p111, %p112
      %s115 = sadd.s32 %s114, 1
      %p118 = scmp.eq.s32.totalorder %s26, 1
      %p119 = scmp.ne.s32.totalorder %s114, %s116
      %p120 = scmp.eq.s32.totalorder %s26, 0
      %p121 = por %p119, %p120
      %p122 = scmp.ne.s32.totalorder %s114, %s116
      %p123 = scmp.eq.s32.totalorder %s31, 1
      %p124 = por %p122, %p123
      %p125 = scmp.ne.s32.totalorder %s116, %s117
      %p126 = scmp.eq.s32.totalorder %s31, 0
      %p127 = por %p125, %p126
      %p128 = scmp.ne.s32.totalorder %s116, %s117
      %p129 = scmp.eq.s32.totalorder %s32, 1
      %p130 = por %p128, %p129
      %p132 = scmp.ne.s32.totalorder %s117, %s131
      %p133 = scmp.eq.s32.totalorder %s32, 0
      %p134 = por %p132, %p133
      %s136 = sadd.s32 %s135, 1
      %p139 = scmp.eq.s32.totalorder %s26, 1
      %p140 = scmp.ne.s32.totalorder %s135, %s137
      %p141 = scmp.eq.s32.totalorder %s26, 0
      %p142 = por %p140, %p141
      %p143 = scmp.ne.s32.totalorder %s135, %s137
      %p144 = scmp.eq.s32.totalorder %s31, 1
      %p145 = por %p143, %p144
      %p146 = scmp.ne.s32.totalorder %s137, %s138
      %p147 = scmp.eq.s32.totalorder %s31, 0
      %p148 = por %p146, %p147
      %p149 = scmp.ne.s32.totalorder %s137, %s138
      %p150 = scmp.eq.s32.totalorder %s32, 1
      %p151 = por %p149, %p150
      %p153 = scmp.ne.s32.totalorder %s138, %s152
      %p154 = scmp.eq.s32.totalorder %s32, 0
      %p155 = por %p153, %p154
      %s157 = sadd.s32 %s156, 1
      %p160 = scmp.eq.s32.totalorder %s26, 1
      %p161 = scmp.ne.s32.totalorder %s156, %s158
      %p162 = scmp.eq.s32.totalorder %s26, 0
      %p163 = por %p161, %p162
      %p164 = scmp.ne.s32.totalorder %s156, %s158
      %p165 = scmp.eq.s32.totalorder %s31, 1
      %p166 = por %p164, %p165
      %p167 = scmp.ne.s32.totalorder %s158, %s159
      %p168 = scmp.eq.s32.totalorder %s31, 0
      %p169 = por %p167, %p168
      %p170 = scmp.ne.s32.totalorder %s158, %s159
      %p171 = scmp.eq.s32.totalorder %s32, 1
      %p172 = por %p170, %p171
      %p174 = scmp.ne.s32.totalorder %s159, %s173
      %p175 = scmp.eq.s32.totalorder %s32, 0
      %p176 = por %p174, %p175
      %s178 = sadd.s32 %s177, 1
      %p181 = scmp.eq.s32.totalorder %s26, 1
      %p182 = scmp.ne.s32.totalorder %s177, %s179
      %p183 = scmp.eq.s32.totalorder %s26, 0
      %p184 = por %p182, %p183
      %p185 = scmp.ne.s32.totalorder %s177, %s179
      %p186 = scmp.eq.s32.totalorder %s31, 1
      %p187 = por %p185, %p186
      %p188 = scmp.ne.s32.totalorder %s179, %s180
      %p189 = scmp.eq.s32.totalorder %s31, 0
      %p190 = por %p188, %p189
      %p191 = scmp.ne.s32.totalorder %s179, %s180
      %p192 = scmp.eq.s32.totalorder %s32, 1
      %p193 = por %p191, %p192
      %p195 = scmp.ne.s32.totalorder %s180, %s194
      %p196 = scmp.eq.s32.totalorder %s32, 0
      %p197 = por %p195, %p196
      %s199 = sadd.s32 %s198, 1
      %p202 = scmp.eq.s32.totalorder %s26, 1
      %p203 = scmp.ne.s32.totalorder %s198, %s200
      %p204 = scmp.eq.s32.totalorder %s26, 0
      %p205 = por %p203, %p204
      %p206 = scmp.ne.s32.totalorder %s198, %s200
      %p207 = scmp.eq.s32.totalorder %s31, 1
      %p208 = por %p206, %p207
      %p209 = scmp.ne.s32.totalorder %s200, %s201
      %p210 = scmp.eq.s32.totalorder %s31, 0
      %p211 = por %p209, %p210
      %p212 = scmp.ne.s32.totalorder %s200, %s201
      %p213 = scmp.eq.s32.totalorder %s32, 1
      %p214 = por %p212, %p213
      %p216 = scmp.ne.s32.totalorder %s201, %s215
      %p217 = scmp.eq.s32.totalorder %s32, 0
      %p218 = por %p216, %p217
      %s220 = sadd.s32 %s219, 1
      %p223 = scmp.eq.s32.totalorder %s26, 1
      %p224 = scmp.ne.s32.totalorder %s219, %s221
      %p225 = scmp.eq.s32.totalorder %s26, 0
      %p226 = por %p224, %p225
      %p227 = scmp.ne.s32.totalorder %s219, %s221
      %p228 = scmp.eq.s32.totalorder %s31, 1
      %p229 = por %p227, %p228
      %p230 = scmp.ne.s32.totalorder %s221, %s222
      %p231 = scmp.eq.s32.totalorder %s31, 0
      %p232 = por %p230, %p231
      %p233 = scmp.ne.s32.totalorder %s221, %s222
      %p234 = scmp.eq.s32.totalorder %s32, 1
      %p235 = por %p233, %p234
      %p237 = scmp.ne.s32.totalorder %s222, %s236
      %p238 = scmp.eq.s32.totalorder %s32, 0
      %p239 = por %p237, %p238
      %s241 = sadd.s32 %s240, 1
      %p244 = scmp.eq.s32.totalorder %s26, 1
      %p245 = scmp.ne.s32.totalorder %s240, %s242
      %p246 = scmp.eq.s32.totalorder %s26, 0
      %p247 = por %p245, %p246
      %p248 = scmp.ne.s32.totalorder %s240, %s242
      %p249 = scmp.eq.s32.totalorder %s31, 1
      %p250 = por %p248, %p249
      %p251 = scmp.ne.s32.totalorder %s242, %s243
      %p252 = scmp.eq.s32.totalorder %s31, 0
      %p253 = por %p251, %p252
      %p254 = scmp.ne.s32.totalorder %s242, %s243
      %p255 = scmp.eq.s32.totalorder %s32, 1
      %p256 = por %p254, %p255
      %p258 = scmp.ne.s32.totalorder %s243, %s257
      %p259 = scmp.eq.s32.totalorder %s32, 0
      %p260 = por %p258, %p259
      %s262 = sadd.s32 %s261, 1
      %p265 = scmp.eq.s32.totalorder %s26, 1
      %p266 = scmp.ne.s32.totalorder %s261, %s263
      %p267 = scmp.eq.s32.totalorder %s26, 0
      %p268 = por %p266, %p267
      %p269 = scmp.ne.s32.totalorder %s261, %s263
      %p270 = scmp.eq.s32.totalorder %s31, 1
      %p271 = por %p269, %p270
      %p272 = scmp.ne.s32.totalorder %s263, %s264
      %p273 = scmp.eq.s32.totalorder %s31, 0
      %p274 = por %p272, %p273
      %p275 = scmp.ne.s32.totalorder %s263, %s264
      %p276 = scmp.eq.s32.totalorder %s32, 1
      %p277 = por %p275, %p276
      %p279 = scmp.ne.s32.totalorder %s264, %s278
      %p280 = scmp.eq.s32.totalorder %s32, 0
      %p281 = por %p279, %p280
      %s283 = sadd.s32 %s282, 1
      %p286 = scmp.eq.s32.totalorder %s26, 1
      %p287 = scmp.ne.s32.totalorder %s282, %s284
      %p288 = scmp.eq.s32.totalorder %s26, 0
      %p289 = por %p287, %p288
      %p290 = scmp.ne.s32.totalorder %s282, %s284
      %p291 = scmp.eq.s32.totalorder %s31, 1
      %p292 = por %p290, %p291
      %p293 = scmp.ne.s32.totalorder %s284, %s285
      %p294 = scmp.eq.s32.totalorder %s31, 0
      %p295 = por %p293, %p294
      %p296 = scmp.ne.s32.totalorder %s284, %s285
      %p297 = scmp.eq.s32.totalorder %s32, 1
      %p298 = por %p296, %p297
      %p300 = scmp.ne.s32.totalorder %s285, %s299
      %p301 = scmp.eq.s32.totalorder %s32, 0
      %p302 = por %p300, %p301
      %s304 = sadd.s32 %s303, 1
      %p307 = scmp.eq.s32.totalorder %s26, 1
      %p308 = scmp.ne.s32.totalorder %s303, %s305
      %p309 = scmp.eq.s32.totalorder %s26, 0
      %p310 = por %p308, %p309
      %p311 = scmp.ne.s32.totalorder %s303, %s305
      %p312 = scmp.eq.s32.totalorder %s31, 1
      %p313 = por %p311, %p312
      %p314 = scmp.ne.s32.totalorder %s305, %s306
      %p315 = scmp.eq.s32.totalorder %s31, 0
      %p316 = por %p314, %p315
      %p317 = scmp.ne.s32.totalorder %s305, %s306
      %p318 = scmp.eq.s32.totalorder %s32, 1
      %p319 = por %p317, %p318
      %p321 = scmp.ne.s32.totalorder %s306, %s320
      %p322 = scmp.eq.s32.totalorder %s32, 0
      %p323 = por %p321, %p322
      %s325 = sadd.s32 %s324, 1
      %p328 = scmp.eq.s32.totalorder %s26, 1
      %p329 = scmp.ne.s32.totalorder %s324, %s326
      %p330 = scmp.eq.s32.totalorder %s26, 0
      %p331 = por %p329, %p330
      %p332 = scmp.ne.s32.totalorder %s324, %s326
      %p333 = scmp.eq.s32.totalorder %s31, 1
      %p334 = por %p332, %p333
      %p335 = scmp.ne.s32.totalorder %s326, %s327
      %p336 = scmp.eq.s32.totalorder %s31, 0
      %p337 = por %p335, %p336
      %p338 = scmp.ne.s32.totalorder %s326, %s327
      %p339 = scmp.eq.s32.totalorder %s32, 1
      %p340 = por %p338, %p339
      %p342 = scmp.ne.s32.totalorder %s327, %s341
      %p343 = scmp.eq.s32.totalorder %s32, 0
      %p344 = por %p342, %p343
      %s346 = sadd.s32 %s345, 1
      %p349 = scmp.eq.s32.totalorder %s26, 1
      %p350 = scmp.ne.s32.totalorder %s345, %s347
      %p351 = scmp.eq.s32.totalorder %s26, 0
      %p352 = por %p350, %p351
      %p353 = scmp.ne.s32.totalorder %s345, %s347
      %p354 = scmp.eq.s32.totalorder %s31, 1
      %p355 = por %p353, %p354
      %p356 = scmp.ne.s32.totalorder %s347, %s348
      %p357 = scmp.eq.s32.totalorder %s31, 0
      %p358 = por %p356, %p357
      %p359 = scmp.ne.s32.totalorder %s347, %s348
      %p360 = scmp.eq.s32.totalorder %s32, 1
      %p361 = por %p359, %p360
      %p363 = scmp.ne.s32.totalorder %s348, %s362
      %p364 = scmp.eq.s32.totalorder %s32, 0
      %p365 = por %p363, %p364
      %s367 = sadd.s32 %s366, 1
      %p370 = scmp.eq.s32.totalorder %s26, 1
      %p371 = scmp.ne.s32.totalorder %s366, %s368
      %p372 = scmp.eq.s32.totalorder %s26, 0
      %p373 = por %p371, %p372
      %p374 = scmp.ne.s32.totalorder %s366, %s368
      %p375 = scmp.eq.s32.totalorder %s31, 1
      %p376 = por %p374, %p375
      %p377 = scmp.ne.s32.totalorder %s368, %s369
      %p378 = scmp.eq.s32.totalorder %s31, 0
      %p379 = por %p377, %p378
      %p380 = scmp.ne.s32.totalorder %s368, %s369
      %p381 = scmp.eq.s32.totalorder %s32, 1
      %p382 = por %p380, %p381
      %p384 = scmp.ne.s32.totalorder %s369, %s383
      %p385 = scmp.eq.s32.totalorder %s32, 0
      %p386 = por %p384, %p385
      %s388 = sadd.s32 %s387, 1
      %p391 = scmp.eq.s32.totalorder %s26, 1
      %p392 = scmp.ne.s32.totalorder %s387, %s389
      %p393 = scmp.eq.s32.totalorder %s26, 0
      %p394 = por %p392, %p393
      %p395 = scmp.ne.s32.totalorder %s387, %s389
      %p396 = scmp.eq.s32.totalorder %s31, 1
      %p397 = por %p395, %p396
      %p398 = scmp.ne.s32.totalorder %s389, %s390
      %p399 = scmp.eq.s32.totalorder %s31, 0
      %p400 = por %p398, %p399
      %p401 = scmp.ne.s32.totalorder %s389, %s390
      %p402 = scmp.eq.s32.totalorder %s32, 1
      %p403 = por %p401, %p402
      %p405 = scmp.ne.s32.totalorder %s390, %s404
      %p406 = scmp.eq.s32.totalorder %s32, 0
      %p407 = por %p405, %p406
      %s408 = ssub.s32 %s33, %s45
      %s409 = ssub.s32 %s34, %s41
      %s410 = sor.u32 %s408, %s409
      %p411 = scmp.eq.s32.totalorder %s410, 0
      %s413 = sadd.s32 %s412, 1
      %s414 = scalar_select %p411, %s412, %s413
      %p417 = pneg %p411
      %p418 = scmp.eq.s32.totalorder %s26, 1
      %p419 = por %p417, %p418
      %p420 = scmp.ne.s32.totalorder %s412, %s415
      %p421 = scmp.eq.s32.totalorder %s26, 0
      %p422 = por %p420, %p421
      %p423 = scmp.ne.s32.totalorder %s412, %s415
      %p424 = scmp.eq.s32.totalorder %s31, 1
      %p425 = por %p423, %p424
      %p426 = scmp.ne.s32.totalorder %s415, %s416
      %p427 = scmp.eq.s32.totalorder %s31, 0
      %p428 = por %p426, %p427
      %p429 = scmp.ne.s32.totalorder %s415, %s416
      %p430 = scmp.eq.s32.totalorder %s32, 1
      %p431 = por %p429, %p430
      %p433 = scmp.ne.s32.totalorder %s416, %s432
      %p434 = scmp.eq.s32.totalorder %s32, 0
      %p435 = por %p433, %p434
      %p436 = scmp.le.s32.totalorder 1, %s26
      %p437 = scmp.lt.s32.totalorder %s26, 3
      %p438 = pnand %p436, %p437
      %p439 = pneg %p438
      // Predicated region
      $region9: #{tpu_custom_call.1} parent=5 // pred_check
        _
      $region10: #{tpu_custom_call.1} parent=5 // pred_check_branch
        %441 = sbr.rel (%p438) target = $region12
      $region11: #{tpu_custom_call.1} parent=5 // pred_region
        %s442 = ssub.s32 %s26, 1
        // Predicated region
        $region13: #{tpu_custom_call.1} parent=11 // pred_check
          %p443 = pneg %p85
        $region14: #{tpu_custom_call.1} parent=11 // pred_check_branch
          %445 = sbr.rel (%p443) target = $region16
        $region15: #{tpu_custom_call.1} parent=11 // pred_region
          _
        $region16: #{tpu_custom_call.1} parent=11 // pred_fallthru
          _
        // Predicated region
        $region17: #{tpu_custom_call.1} parent=11 // pred_check
          %p446 = pneg %p106
        $region18: #{tpu_custom_call.1} parent=11 // pred_check_branch
          %448 = sbr.rel (%p446) target = $region20
        $region19: #{tpu_custom_call.1} parent=11 // pred_region
          _
        $region20: #{tpu_custom_call.1} parent=11 // pred_fallthru
          _
        // Predicated region
        $region21: #{tpu_custom_call.1} parent=11 // pred_check
          %p449 = pneg %p127
        $region22: #{tpu_custom_call.1} parent=11 // pred_check_branch
          %451 = sbr.rel (%p449) target = $region24
        $region23: #{tpu_custom_call.1} parent=11 // pred_region
          _
        $region24: #{tpu_custom_call.1} parent=11 // pred_fallthru
          _
        // Predicated region
        $region25: #{tpu_custom_call.1} parent=11 // pred_check
          %p452 = pneg %p148
        $region26: #{tpu_custom_call.1} parent=11 // pred_check_branch
          %454 = sbr.rel (%p452) target = $region28
        $region27: #{tpu_custom_call.1} parent=11 // pred_region
          _
        $region28: #{tpu_custom_call.1} parent=11 // pred_fallthru
          _
        // Predicated region
        $region29: #{tpu_custom_call.1} parent=11 // pred_check
          %p455 = pneg %p169
        $region30: #{tpu_custom_call.1} parent=11 // pred_check_branch
          %457 = sbr.rel (%p455) target = $region32
        $region31: #{tpu_custom_call.1} parent=11 // pred_region
          _
        $region32: #{tpu_custom_call.1} parent=11 // pred_fallthru
          _
        // Predicated region
        $region33: #{tpu_custom_call.1} parent=11 // pred_check
          %p458 = pneg %p190
        $region34: #{tpu_custom_call.1} parent=11 // pred_check_branch
          %460 = sbr.rel (%p458) target = $region36
        $region35: #{tpu_custom_call.1} parent=11 // pred_region
          _
        $region36: #{tpu_custom_call.1} parent=11 // pred_fallthru
          _
        // Predicated region
        $region37: #{tpu_custom_call.1} parent=11 // pred_check
          %p461 = pneg %p211
        $region38: #{tpu_custom_call.1} parent=11 // pred_check_branch
          %463 = sbr.rel (%p461) target = $region40
        $region39: #{tpu_custom_call.1} parent=11 // pred_region
          _
        $region40: #{tpu_custom_call.1} parent=11 // pred_fallthru
          _
        // Predicated region
        $region41: #{tpu_custom_call.1} parent=11 // pred_check
          %p464 = pneg %p232
        $region42: #{tpu_custom_call.1} parent=11 // pred_check_branch
          %466 = sbr.rel (%p464) target = $region44
        $region43: #{tpu_custom_call.1} parent=11 // pred_region
          _
        $region44: #{tpu_custom_call.1} parent=11 // pred_fallthru
          _
        // Predicated region
        $region45: #{tpu_custom_call.1} parent=11 // pred_check
          %p467 = pneg %p253
        $region46: #{tpu_custom_call.1} parent=11 // pred_check_branch
          %469 = sbr.rel (%p467) target = $region48
        $region47: #{tpu_custom_call.1} parent=11 // pred_region
          _
        $region48: #{tpu_custom_call.1} parent=11 // pred_fallthru
          _
        // Predicated region
        $region49: #{tpu_custom_call.1} parent=11 // pred_check
          %p470 = pneg %p274
        $region50: #{tpu_custom_call.1} parent=11 // pred_check_branch
          %472 = sbr.rel (%p470) target = $region52
        $region51: #{tpu_custom_call.1} parent=11 // pred_region
          _
        $region52: #{tpu_custom_call.1} parent=11 // pred_fallthru
          _
        // Predicated region
        $region53: #{tpu_custom_call.1} parent=11 // pred_check
          %p473 = pneg %p295
        $region54: #{tpu_custom_call.1} parent=11 // pred_check_branch
          %475 = sbr.rel (%p473) target = $region56
        $region55: #{tpu_custom_call.1} parent=11 // pred_region
          _
        $region56: #{tpu_custom_call.1} parent=11 // pred_fallthru
          _
        // Predicated region
        $region57: #{tpu_custom_call.1} parent=11 // pred_check
          %p476 = pneg %p316
        $region58: #{tpu_custom_call.1} parent=11 // pred_check_branch
          %478 = sbr.rel (%p476) target = $region60
        $region59: #{tpu_custom_call.1} parent=11 // pred_region
          _
        $region60: #{tpu_custom_call.1} parent=11 // pred_fallthru
          _
        // Predicated region
        $region61: #{tpu_custom_call.1} parent=11 // pred_check
          %p479 = pneg %p337
        $region62: #{tpu_custom_call.1} parent=11 // pred_check_branch
          %481 = sbr.rel (%p479) target = $region64
        $region63: #{tpu_custom_call.1} parent=11 // pred_region
          _
        $region64: #{tpu_custom_call.1} parent=11 // pred_fallthru
          _
        // Predicated region
        $region65: #{tpu_custom_call.1} parent=11 // pred_check
          %p482 = pneg %p358
        $region66: #{tpu_custom_call.1} parent=11 // pred_check_branch
          %484 = sbr.rel (%p482) target = $region68
        $region67: #{tpu_custom_call.1} parent=11 // pred_region
          _
        $region68: #{tpu_custom_call.1} parent=11 // pred_fallthru
          _
        // Predicated region
        $region69: #{tpu_custom_call.1} parent=11 // pred_check
          %p485 = pneg %p379
        $region70: #{tpu_custom_call.1} parent=11 // pred_check_branch
          %487 = sbr.rel (%p485) target = $region72
        $region71: #{tpu_custom_call.1} parent=11 // pred_region
          _
        $region72: #{tpu_custom_call.1} parent=11 // pred_fallthru
          _
        // Predicated region
        $region73: #{tpu_custom_call.1} parent=11 // pred_check
          %p488 = pneg %p400
        $region74: #{tpu_custom_call.1} parent=11 // pred_check_branch
          %490 = sbr.rel (%p488) target = $region76
        $region75: #{tpu_custom_call.1} parent=11 // pred_region
          _
        $region76: #{tpu_custom_call.1} parent=11 // pred_fallthru
          _
      $region12: #{tpu_custom_call.1} parent=5 // pred_fallthru
        _
      %p491 = scmp.lt.s32.totalorder %s26, 2
      // Predicated region
      $region77: #{tpu_custom_call.1} parent=5 // pred_check
        %p492 = pneg %p491
      $region78: #{tpu_custom_call.1} parent=5 // pred_check_branch
        %494 = sbr.rel (%p492) target = $region80
      $region79: #{tpu_custom_call.1} parent=5 // pred_region
        // Predicated region
        $region81: #{tpu_custom_call.1} parent=79 // pred_check
          %p495 = pneg %p58
        $region82: #{tpu_custom_call.1} parent=79 // pred_check_branch
          %497 = sbr.rel (%p495) target = $region84
        $region83: #{tpu_custom_call.1} parent=79 // pred_region
          %p498 = scmp.lt.s32.totalorder %s33, 1
          %s499 = scalar_select %p498, %s33, 1
          %s500 = smul.addr %s499, 8
          %s501 = scalar_lea.vmem %s0, %s500
        $region84: #{tpu_custom_call.1} parent=79 // pred_fallthru
          _
      $region80: #{tpu_custom_call.1} parent=5 // pred_fallthru
        _
      %p502 = scmp.le.s32.totalorder 1, %s26
      %p503 = scmp.lt.s32.totalorder %s26, 3
      %p504 = pnand %p502, %p503
      %p505 = pneg %p504
      // Predicated region
      $region85: #{tpu_custom_call.1} parent=5 // pred_check
        _
      $region86: #{tpu_custom_call.1} parent=5 // pred_check_branch
        %507 = sbr.rel (%p504) target = $region88
      $region87: #{tpu_custom_call.1} parent=5 // pred_region
        %s508 = ssub.s32 %s26, 1
        %p509 = scmp.lt.s32.totalorder %s35, 1
        %s510 = scalar_select %p509, %s35, 1
        %s511 = smul.addr %s510, 8
        %s512 = scalar_lea.vmem %s0, %s511
        %p513 = pneg %p64
        %p514 = pneg %p61
        %p515 = pneg %p85
        %p516 = pneg %p82
        %p517 = pneg %p106
        %p518 = pneg %p103
        %p519 = pneg %p127
        %p520 = pneg %p124
        %p521 = pneg %p148
        %p522 = pneg %p145
        %p523 = pneg %p169
        %p524 = pneg %p166
        %p525 = pneg %p190
        %p526 = pneg %p187
        %p527 = pneg %p211
        %p528 = pneg %p208
        %p529 = pneg %p232
        %p530 = pneg %p229
        %p531 = pneg %p253
        %p532 = pneg %p250
        %p533 = pneg %p274
        %p534 = pneg %p271
        %p535 = pneg %p295
        %p536 = pneg %p292
        %p537 = pneg %p316
        %p538 = pneg %p313
        %p539 = pneg %p337
        %p540 = pneg %p334
        %p541 = pneg %p358
        %p542 = pneg %p355
        %p543 = pneg %p379
        %p544 = pneg %p376
        %p545 = pneg %p400
        %p546 = pneg %p397
        %p547 = pneg %p428
        %p548 = pneg %p425
        %s549 = sand.u32 %s415, 1
        %s550 = scalar_lea.sflag [#allocation3], %s549
        %s551 = sand.u32 %s415, 1
        %s552 = smul.addr %s551, 8
        %s553 = scalar_lea.vmem [#allocation2], %s552
        %p554 = scmp.lt.s32.totalorder %s35, 1
        %s555 = scalar_select %p554, %s35, 1
        %s556 = smul.addr %s555, 8
        %s557 = scalar_lea.vmem %s0, %s556
        %v559 = vld [vmem:[%s557] sm:$0xff]
        %v560 = vld [vmem:[%s1] sm:$0x1]
        %v561 = vld [vmem:[%s2] sm:$0x1]
        %vm562 = vcmask 261120
        %v563 = vsel %vm562, %v559, 0.0
        %564 = vadd.xlane.f32.xlu0 %v563
        %v565 = vpop.xlane.xlu0 %564
        %v566 = vrcp.pop 32.0
        %v567 = vmul.f32 32.0, %v566
        %v568 = vsub.f32 1.0, %v567
        %v569 = vmul.f32 %v566, %v568
        %v570 = vadd.f32 %v566, %v569
        %vm571 = vweird.f32 %v566
        %v572 = vsel %vm571, %v566, %v570
        %v573 = vmul.f32 %v565, %v572
        %v574 = vsub.f32 %v559, %v573
        %v575 = vmul.f32 %v574, %v574
        %v576 = vsel %vm562, %v575, 0.0
        %577 = vadd.xlane.f32.xlu0 %v576
        %v578 = vpop.xlane.xlu0 %577
        %v579 = vmul.f32 %v578, %v572
        %v580 = vadd.f32 %v579, 1e-05
        %v581 = vrsqrt.pop %v580
        %v582 = vmul.f32 %v581, %v580
        %v583 = vmul.f32 %v582, %v581
        %v584 = vmul.f32 0.5, %v583
        %v585 = vsub.f32 1.5, %v584
        %v586 = vmul.f32 %v581, %v585
        %vm587 = vweird.f32 %v580
        %vm588 = vweird.f32 %v581
        %vm589 = vmor %vm587, %vm588
        %v590 = vsel %vm589, %v581, %v586
        %v591 = vmul.f32 %v574, %v590
        %v593 = vperm.slane %v560, 0
        %v595 = vmul.f32 %v591, %v593
        %v597 = vperm.slane %v561, 0
        %v599 = vadd.f32 %v595, %v597
        %v600 = vpack.c.bf16 %v599, %v599
        %v601 = vld [vmem:[%s3] sm:$0xf]
        %v602 = vld [vmem:[%s3 + $0x4] sm:$0xf]
        %v603 = vld [vmem:[%s3 + $0x8] sm:$0xf]
        %v604 = vld [vmem:[%s3 + $0xc] sm:$0xf]
        %v605 = vld [vmem:[%s3 + $0x10] sm:$0xf]
        %v606 = vld [vmem:[%s3 + $0x14] sm:$0xf]
        %v607 = vld [vmem:[%s3 + $0x18] sm:$0xf]
        %v608 = vld [vmem:[%s3 + $0x1c] sm:$0xf]
        %v609 = vld [vmem:[%s3 + $0x20] sm:$0xf]
        %v610 = vld [vmem:[%s3 + $0x24] sm:$0xf]
        %v611 = vld [vmem:[%s3 + $0x28] sm:$0xf]
        %v612 = vld [vmem:[%s3 + $0x2c] sm:$0xf]
        %v613 = vld [vmem:[%s3 + $0x30] sm:$0xf]
        %v614 = vld [vmem:[%s3 + $0x34] sm:$0xf]
        %v615 = vld [vmem:[%s3 + $0x38] sm:$0xf]
        %v616 = vld [vmem:[%s3 + $0x3c] sm:$0xf]
        %v617 = vld [vmem:[%s4] sm:$0x1]
        %v618 = vld [vmem:[%s4 + $0x1] sm:$0x1]
        %v619 = vld [vmem:[%s4 + $0x2] sm:$0x1]
        %v620 = vld [vmem:[%s4 + $0x3] sm:$0x1]
        %v625 = vperm.slane %v617, 0
        %v626 = vperm.slane %v618, 0
        %v627 = vperm.slane %v619, 0
        %v628 = vperm.slane %v620, 0
        %v637 = vunpack.c.l.b16 %v601
        %v638 = vunpack.c.l.b16 %v602
        %v639 = vunpack.c.l.b16 %v603
        %v640 = vunpack.c.l.b16 %v604
        %v641 = vpack.c.b16 %v638, %v637
        %v642 = vpack.c.b16 %v640, %v639
        %v646 = vsel %vm562, %v600, 0
        %648 = vmatpush.bf16.msra.mxu0 0
        %649 = vmatpush.bf16.msra.mxu0 0
        %650 = vmatpush.bf16.msra.mxu0 0
        %651 = vmatpush.bf16.msra.mxu0 0
        %652 = vmatpush.bf16.msra.mxu0 0
        %653 = vmatpush.bf16.msra.mxu0 0
        %654 = vmatpush.bf16.msra.mxu0 %v642
        %655 = vmatpush.bf16.msra.mxu0 %v641
        %656 = vmatmul.bf16.gmra.mxu0 %v646
        %v657 = vpop.f32.mrf.mxu0
        %v658 = vadd.f32 %v625, %v657
        %v659 = vpop.f32.mrf.mxu0
        %660 = vdwg.mxu0
        %v665 = vunpack.c.l.b16 %v605
        %v666 = vunpack.c.l.b16 %v606
        %v667 = vunpack.c.l.b16 %v607
        %v668 = vunpack.c.l.b16 %v608
        %v669 = vpack.c.b16 %v666, %v665
        %v670 = vpack.c.b16 %v668, %v667
        %673 = vmatpush.bf16.msra.mxu0 0
        %674 = vmatpush.bf16.msra.mxu0 0
        %675 = vmatpush.bf16.msra.mxu0 0
        %676 = vmatpush.bf16.msra.mxu0 0
        %677 = vmatpush.bf16.msra.mxu0 0
        %678 = vmatpush.bf16.msra.mxu0 0
        %679 = vmatpush.bf16.msra.mxu0 %v670
        %680 = vmatpush.bf16.msra.mxu0 %v669
        %681 = vmatmul.bf16.gmra.mxu0 %v646
        %v682 = vpop.f32.mrf.mxu0
        %v683 = vadd.f32 %v626, %v682
        %v684 = vpop.f32.mrf.mxu0
        %685 = vdwg.mxu0
        %v690 = vunpack.c.l.b16 %v609
        %v691 = vunpack.c.l.b16 %v610
        %v692 = vunpack.c.l.b16 %v611
        %v693 = vunpack.c.l.b16 %v612
        %v694 = vpack.c.b16 %v691, %v690
        %v695 = vpack.c.b16 %v693, %v692
        %698 = vmatpush.bf16.msra.mxu0 0
        %699 = vmatpush.bf16.msra.mxu0 0
        %700 = vmatpush.bf16.msra.mxu0 0
        %701 = vmatpush.bf16.msra.mxu0 0
        %702 = vmatpush.bf16.msra.mxu0 0
        %703 = vmatpush.bf16.msra.mxu0 0
        %704 = vmatpush.bf16.msra.mxu0 %v695
        %705 = vmatpush.bf16.msra.mxu0 %v694
        %706 = vmatmul.bf16.gmra.mxu0 %v646
        %v707 = vpop.f32.mrf.mxu0
        %v708 = vadd.f32 %v627, %v707
        %v709 = vpop.f32.mrf.mxu0
        %710 = vdwg.mxu0
        %v715 = vunpack.c.l.b16 %v613
        %v716 = vunpack.c.l.b16 %v614
        %v717 = vunpack.c.l.b16 %v615
        %v718 = vunpack.c.l.b16 %v616
        %v719 = vpack.c.b16 %v716, %v715
        %v720 = vpack.c.b16 %v718, %v717
        %723 = vmatpush.bf16.msra.mxu0 0
        %724 = vmatpush.bf16.msra.mxu0 0
        %725 = vmatpush.bf16.msra.mxu0 0
        %726 = vmatpush.bf16.msra.mxu0 0
        %727 = vmatpush.bf16.msra.mxu0 0
        %728 = vmatpush.bf16.msra.mxu0 0
        %729 = vmatpush.bf16.msra.mxu0 %v720
        %730 = vmatpush.bf16.msra.mxu0 %v719
        %731 = vmatmul.bf16.gmra.mxu0 %v646
        %v732 = vpop.f32.mrf.mxu0
        %v733 = vadd.f32 %v628, %v732
        %v734 = vpop.f32.mrf.mxu0
        %735 = vdwg.mxu0
        %v736 = vpack.c.bf16 %v658, %v658
        %v737 = vpack.c.bf16 %v683, %v683
        %v738 = vpack.c.bf16 %v708, %v708
        %v739 = vpack.c.bf16 %v733, %v733
        %v740 = vld [vmem:[%s5] sm:$0xf]
        %v741 = vld [vmem:[%s5 + $0x4] sm:$0xf]
        %v742 = vld [vmem:[%s5 + $0x8] sm:$0xf]
        %v743 = vld [vmem:[%s5 + $0xc] sm:$0xf]
        %v744 = vld [vmem:[%s5 + $0x10] sm:$0xf]
        %v745 = vld [vmem:[%s5 + $0x14] sm:$0xf]
        %v746 = vld [vmem:[%s5 + $0x18] sm:$0xf]
        %v747 = vld [vmem:[%s5 + $0x1c] sm:$0xf]
        %v748 = vld [vmem:[%s5 + $0x20] sm:$0xf]
        %v749 = vld [vmem:[%s5 + $0x24] sm:$0xf]
        %v750 = vld [vmem:[%s5 + $0x28] sm:$0xf]
        %v751 = vld [vmem:[%s5 + $0x2c] sm:$0xf]
        %v752 = vld [vmem:[%s5 + $0x30] sm:$0xf]
        %v753 = vld [vmem:[%s5 + $0x34] sm:$0xf]
        %v754 = vld [vmem:[%s5 + $0x38] sm:$0xf]
        %v755 = vld [vmem:[%s5 + $0x3c] sm:$0xf]
        %v756 = vld [vmem:[%s6] sm:$0x1]
        %v757 = vld [vmem:[%s6 + $0x1] sm:$0x1]
        %v758 = vld [vmem:[%s6 + $0x2] sm:$0x1]
        %v759 = vld [vmem:[%s6 + $0x3] sm:$0x1]
        %v764 = vperm.slane %v756, 0
        %v765 = vperm.slane %v757, 0
        %v766 = vperm.slane %v758, 0
        %v767 = vperm.slane %v759, 0
        %v776 = vunpack.c.l.b16 %v740
        %v777 = vunpack.c.l.b16 %v741
        %v778 = vunpack.c.l.b16 %v742
        %v779 = vunpack.c.l.b16 %v743
        %v780 = vpack.c.b16 %v777, %v776
        %v781 = vpack.c.b16 %v779, %v778
        %784 = vmatpush.bf16.msra.mxu0 0
        %785 = vmatpush.bf16.msra.mxu0 0
        %786 = vmatpush.bf16.msra.mxu0 0
        %787 = vmatpush.bf16.msra.mxu0 0
        %788 = vmatpush.bf16.msra.mxu0 0
        %789 = vmatpush.bf16.msra.mxu0 0
        %790 = vmatpush.bf16.msra.mxu0 %v781
        %791 = vmatpush.bf16.msra.mxu0 %v780
        %792 = vmatmul.bf16.gmra.mxu0 %v646
        %v793 = vpop.f32.mrf.mxu0
        %v794 = vadd.f32 %v764, %v793
        %v795 = vpop.f32.mrf.mxu0
        %796 = vdwg.mxu0
        %v801 = vunpack.c.l.b16 %v744
        %v802 = vunpack.c.l.b16 %v745
        %v803 = vunpack.c.l.b16 %v746
        %v804 = vunpack.c.l.b16 %v747
        %v805 = vpack.c.b16 %v802, %v801
        %v806 = vpack.c.b16 %v804, %v803
        %809 = vmatpush.bf16.msra.mxu0 0
        %810 = vmatpush.bf16.msra.mxu0 0
        %811 = vmatpush.bf16.msra.mxu0 0
        %812 = vmatpush.bf16.msra.mxu0 0
        %813 = vmatpush.bf16.msra.mxu0 0
        %814 = vmatpush.bf16.msra.mxu0 0
        %815 = vmatpush.bf16.msra.mxu0 %v806
        %816 = vmatpush.bf16.msra.mxu0 %v805
        %817 = vmatmul.bf16.gmra.mxu0 %v646
        %v818 = vpop.f32.mrf.mxu0
        %v819 = vadd.f32 %v765, %v818
        %v820 = vpop.f32.mrf.mxu0
        %821 = vdwg.mxu0
        %v826 = vunpack.c.l.b16 %v748
        %v827 = vunpack.c.l.b16 %v749
        %v828 = vunpack.c.l.b16 %v750
        %v829 = vunpack.c.l.b16 %v751
        %v830 = vpack.c.b16 %v827, %v826
        %v831 = vpack.c.b16 %v829, %v828
        %834 = vmatpush.bf16.msra.mxu0 0
        %835 = vmatpush.bf16.msra.mxu0 0
        %836 = vmatpush.bf16.msra.mxu0 0
        %837 = vmatpush.bf16.msra.mxu0 0
        %838 = vmatpush.bf16.msra.mxu0 0
        %839 = vmatpush.bf16.msra.mxu0 0
        %840 = vmatpush.bf16.msra.mxu0 %v831
        %841 = vmatpush.bf16.msra.mxu0 %v830
        %842 = vmatmul.bf16.gmra.mxu0 %v646
        %v843 = vpop.f32.mrf.mxu0
        %v844 = vadd.f32 %v766, %v843
        %v845 = vpop.f32.mrf.mxu0
        %846 = vdwg.mxu0
        %v851 = vunpack.c.l.b16 %v752
        %v852 = vunpack.c.l.b16 %v753
        %v853 = vunpack.c.l.b16 %v754
        %v854 = vunpack.c.l.b16 %v755
        %v855 = vpack.c.b16 %v852, %v851
        %v856 = vpack.c.b16 %v854, %v853
        %859 = vmatpush.bf16.msra.mxu0 0
        %860 = vmatpush.bf16.msra.mxu0 0
        %861 = vmatpush.bf16.msra.mxu0 0
        %862 = vmatpush.bf16.msra.mxu0 0
        %863 = vmatpush.bf16.msra.mxu0 0
        %864 = vmatpush.bf16.msra.mxu0 0
        %865 = vmatpush.bf16.msra.mxu0 %v856
        %866 = vmatpush.bf16.msra.mxu0 %v855
        %867 = vmatmul.bf16.gmra.mxu0 %v646
        %v868 = vpop.f32.mrf.mxu0
        %v869 = vadd.f32 %v767, %v868
        %v870 = vpop.f32.mrf.mxu0
        %871 = vdwg.mxu0
        %v872 = vpack.c.bf16 %v794, %v794
        %v873 = vpack.c.bf16 %v819, %v819
        %v874 = vpack.c.bf16 %v844, %v844
        %v875 = vpack.c.bf16 %v869, %v869
        %v876 = vld [vmem:[%s7] sm:$0xf]
        %v877 = vld [vmem:[%s7 + $0x4] sm:$0xf]
        %v878 = vld [vmem:[%s7 + $0x8] sm:$0xf]
        %v879 = vld [vmem:[%s7 + $0xc] sm:$0xf]
        %v880 = vld [vmem:[%s7 + $0x10] sm:$0xf]
        %v881 = vld [vmem:[%s7 + $0x14] sm:$0xf]
        %v882 = vld [vmem:[%s7 + $0x18] sm:$0xf]
        %v883 = vld [vmem:[%s7 + $0x1c] sm:$0xf]
        %v884 = vld [vmem:[%s7 + $0x20] sm:$0xf]
        %v885 = vld [vmem:[%s7 + $0x24] sm:$0xf]
        %v886 = vld [vmem:[%s7 + $0x28] sm:$0xf]
        %v887 = vld [vmem:[%s7 + $0x2c] sm:$0xf]
        %v888 = vld [vmem:[%s7 + $0x30] sm:$0xf]
        %v889 = vld [vmem:[%s7 + $0x34] sm:$0xf]
        %v890 = vld [vmem:[%s7 + $0x38] sm:$0xf]
        %v891 = vld [vmem:[%s7 + $0x3c] sm:$0xf]
        %v892 = vld [vmem:[%s8] sm:$0x1]
        %v893 = vld [vmem:[%s8 + $0x1] sm:$0x1]
        %v894 = vld [vmem:[%s8 + $0x2] sm:$0x1]
        %v895 = vld [vmem:[%s8 + $0x3] sm:$0x1]
        %v900 = vperm.slane %v892, 0
        %v901 = vperm.slane %v893, 0
        %v902 = vperm.slane %v894, 0
        %v903 = vperm.slane %v895, 0
        %v912 = vunpack.c.l.b16 %v876
        %v913 = vunpack.c.l.b16 %v877
        %v914 = vunpack.c.l.b16 %v878
        %v915 = vunpack.c.l.b16 %v879
        %v916 = vpack.c.b16 %v913, %v912
        %v917 = vpack.c.b16 %v915, %v914
        %920 = vmatpush.bf16.msra.mxu0 0
        %921 = vmatpush.bf16.msra.mxu0 0
        %922 = vmatpush.bf16.msra.mxu0 0
        %923 = vmatpush.bf16.msra.mxu0 0
        %924 = vmatpush.bf16.msra.mxu0 0
        %925 = vmatpush.bf16.msra.mxu0 0
        %926 = vmatpush.bf16.msra.mxu0 %v917
        %927 = vmatpush.bf16.msra.mxu0 %v916
        %928 = vmatmul.bf16.gmra.mxu0 %v646
        %v929 = vpop.f32.mrf.mxu0
        %v930 = vadd.f32 %v900, %v929
        %v931 = vpop.f32.mrf.mxu0
        %932 = vdwg.mxu0
        %v937 = vunpack.c.l.b16 %v880
        %v938 = vunpack.c.l.b16 %v881
        %v939 = vunpack.c.l.b16 %v882
        %v940 = vunpack.c.l.b16 %v883
        %v941 = vpack.c.b16 %v938, %v937
        %v942 = vpack.c.b16 %v940, %v939
        %945 = vmatpush.bf16.msra.mxu0 0
        %946 = vmatpush.bf16.msra.mxu0 0
        %947 = vmatpush.bf16.msra.mxu0 0
        %948 = vmatpush.bf16.msra.mxu0 0
        %949 = vmatpush.bf16.msra.mxu0 0
        %950 = vmatpush.bf16.msra.mxu0 0
        %951 = vmatpush.bf16.msra.mxu0 %v942
        %952 = vmatpush.bf16.msra.mxu0 %v941
        %953 = vmatmul.bf16.gmra.mxu0 %v646
        %v954 = vpop.f32.mrf.mxu0
        %v955 = vadd.f32 %v901, %v954
        %v956 = vpop.f32.mrf.mxu0
        %957 = vdwg.mxu0
        %v962 = vunpack.c.l.b16 %v884
        %v963 = vunpack.c.l.b16 %v885
        %v964 = vunpack.c.l.b16 %v886
        %v965 = vunpack.c.l.b16 %v887
        %v966 = vpack.c.b16 %v963, %v962
        %v967 = vpack.c.b16 %v965, %v964
        %970 = vmatpush.bf16.msra.mxu0 0
        %971 = vmatpush.bf16.msra.mxu0 0
        %972 = vmatpush.bf16.msra.mxu0 0
        %973 = vmatpush.bf16.msra.mxu0 0
        %974 = vmatpush.bf16.msra.mxu0 0
        %975 = vmatpush.bf16.msra.mxu0 0
        %976 = vmatpush.bf16.msra.mxu0 %v967
        %977 = vmatpush.bf16.msra.mxu0 %v966
        %978 = vmatmul.bf16.gmra.mxu0 %v646
        %v979 = vpop.f32.mrf.mxu0
        %v980 = vadd.f32 %v902, %v979
        %v981 = vpop.f32.mrf.mxu0
        %982 = vdwg.mxu0
        %v987 = vunpack.c.l.b16 %v888
        %v988 = vunpack.c.l.b16 %v889
        %v989 = vunpack.c.l.b16 %v890
        %v990 = vunpack.c.l.b16 %v891
        %v991 = vpack.c.b16 %v988, %v987
        %v992 = vpack.c.b16 %v990, %v989
        %995 = vmatpush.bf16.msra.mxu0 0
        %996 = vmatpush.bf16.msra.mxu0 0
        %997 = vmatpush.bf16.msra.mxu0 0
        %998 = vmatpush.bf16.msra.mxu0 0
        %999 = vmatpush.bf16.msra.mxu0 0
        %1000 = vmatpush.bf16.msra.mxu0 0
        %1001 = vmatpush.bf16.msra.mxu0 %v992
        %1002 = vmatpush.bf16.msra.mxu0 %v991
        %1003 = vmatmul.bf16.gmra.mxu0 %v646
        %v1004 = vpop.f32.mrf.mxu0
        %v1005 = vadd.f32 %v903, %v1004
        %v1006 = vpop.f32.mrf.mxu0
        %1007 = vdwg.mxu0
        %v1008 = vpack.c.bf16 %v930, %v930
        %v1009 = vpack.c.bf16 %v955, %v955
        %v1010 = vpack.c.bf16 %v980, %v980
        %v1011 = vpack.c.bf16 %v1005, %v1005
        %vm1012 = vcmask 64512
        %v1014 = vsel %vm1012, %v736, 0
        %v1017 = vsel %vm1012, %v872, 0
        %1019 = vmatpush.bf16.xpose.msra.mxu0 0
        %1020 = vmatpush.bf16.xpose.msra.mxu0 0
        %1021 = vmatpush.bf16.xpose.msra.mxu0 0
        %1022 = vmatpush.bf16.xpose.msra.mxu0 0
        %1023 = vmatpush.bf16.xpose.msra.mxu0 0
        %1024 = vmatpush.bf16.xpose.msra.mxu0 0
        %1025 = vmatpush.bf16.xpose.msra.mxu0 0
        %1026 = vmatpush.bf16.xpose.msra.mxu0 %v1017
        %1027 = vmatmul.bf16.gmra.mxu0 %v1014
        %v1028 = vpop.f32.mrf.mxu0
        %v1029 = vadd.f32 0.0, %v1028
        %v1030 = vpop.f32.mrf.mxu0
        %1031 = vdwg.mxu0
        %v1033 = vsel %vm1012, %v737, 0
        %v1036 = vsel %vm1012, %v873, 0
        %1038 = vmatpush.bf16.xpose.msra.mxu0 0
        %1039 = vmatpush.bf16.xpose.msra.mxu0 0
        %1040 = vmatpush.bf16.xpose.msra.mxu0 0
        %1041 = vmatpush.bf16.xpose.msra.mxu0 0
        %1042 = vmatpush.bf16.xpose.msra.mxu0 0
        %1043 = vmatpush.bf16.xpose.msra.mxu0 0
        %1044 = vmatpush.bf16.xpose.msra.mxu0 0
        %1045 = vmatpush.bf16.xpose.msra.mxu0 %v1036
        %1046 = vmatmul.bf16.gmra.mxu0 %v1033
        %v1047 = vpop.f32.mrf.mxu0
        %v1048 = vadd.f32 0.0, %v1047
        %v1049 = vpop.f32.mrf.mxu0
        %1050 = vdwg.mxu0
        %v1052 = vsel %vm1012, %v738, 0
        %v1055 = vsel %vm1012, %v874, 0
        %1057 = vmatpush.bf16.xpose.msra.mxu0 0
        %1058 = vmatpush.bf16.xpose.msra.mxu0 0
        %1059 = vmatpush.bf16.xpose.msra.mxu0 0
        %1060 = vmatpush.bf16.xpose.msra.mxu0 0
        %1061 = vmatpush.bf16.xpose.msra.mxu0 0
        %1062 = vmatpush.bf16.xpose.msra.mxu0 0
        %1063 = vmatpush.bf16.xpose.msra.mxu0 0
        %1064 = vmatpush.bf16.xpose.msra.mxu0 %v1055
        %1065 = vmatmul.bf16.gmra.mxu0 %v1052
        %v1066 = vpop.f32.mrf.mxu0
        %v1067 = vadd.f32 0.0, %v1066
        %v1068 = vpop.f32.mrf.mxu0
        %1069 = vdwg.mxu0
        %v1071 = vsel %vm1012, %v739, 0
        %v1074 = vsel %vm1012, %v875, 0
        %1076 = vmatpush.bf16.xpose.msra.mxu0 0
        %1077 = vmatpush.bf16.xpose.msra.mxu0 0
        %1078 = vmatpush.bf16.xpose.msra.mxu0 0
        %1079 = vmatpush.bf16.xpose.msra.mxu0 0
        %1080 = vmatpush.bf16.xpose.msra.mxu0 0
        %1081 = vmatpush.bf16.xpose.msra.mxu0 0
        %1082 = vmatpush.bf16.xpose.msra.mxu0 0
        %1083 = vmatpush.bf16.xpose.msra.mxu0 %v1074
        %1084 = vmatmul.bf16.gmra.mxu0 %v1071
        %v1085 = vpop.f32.mrf.mxu0
        %v1086 = vadd.f32 0.0, %v1085
        %v1087 = vpop.f32.mrf.mxu0
        %1088 = vdwg.mxu0
        %v1089 = vmul.f32 %v1029, 0.35355338
        %v1090 = vmul.f32 %v1048, 0.35355338
        %v1091 = vmul.f32 %v1067, 0.35355338
        %v1092 = vmul.f32 %v1086, 0.35355338
        %v1093 = vsel %vm1012, %v1089, -inf
        %1094 = vmax.xlane.f32.xlu0 %v1093
        %v1095 = vpop.xlane.xlu0 %1094
        %v1096 = vsel %vm1012, %v1090, -inf
        %1097 = vmax.xlane.f32.xlu0 %v1096
        %v1098 = vpop.xlane.xlu0 %1097
        %v1099 = vsel %vm1012, %v1091, -inf
        %1100 = vmax.xlane.f32.xlu0 %v1099
        %v1101 = vpop.xlane.xlu0 %1100
        %v1102 = vsel %vm1012, %v1092, -inf
        %1103 = vmax.xlane.f32.xlu0 %v1102
        %v1104 = vpop.xlane.xlu0 %1103
        %v1105 = vsub.f32 %v1089, %v1095
        %v1106 = vsub.f32 %v1090, %v1098
        %v1107 = vsub.f32 %v1091, %v1101
        %v1108 = vsub.f32 %v1092, %v1104
        %v1109 = vmul.f32 %v1105, 1.442695
        %v1110 = vpow.pop %v1109
        %v1111 = vmul.f32 %v1106, 1.442695
        %v1112 = vpow.pop %v1111
        %v1113 = vmul.f32 %v1107, 1.442695
        %v1114 = vpow.pop %v1113
        %v1115 = vmul.f32 %v1108, 1.442695
        %v1116 = vpow.pop %v1115
        %v1117 = vsel %vm1012, %v1110, 0.0
        %1118 = vadd.xlane.f32.xlu0 %v1117
        %v1119 = vpop.xlane.xlu0 %1118
        %v1120 = vsel %vm1012, %v1112, 0.0
        %1121 = vadd.xlane.f32.xlu0 %v1120
        %v1122 = vpop.xlane.xlu0 %1121
        %v1123 = vsel %vm1012, %v1114, 0.0
        %1124 = vadd.xlane.f32.xlu0 %v1123
        %v1125 = vpop.xlane.xlu0 %1124
        %v1126 = vsel %vm1012, %v1116, 0.0
        %1127 = vadd.xlane.f32.xlu0 %v1126
        %v1128 = vpop.xlane.xlu0 %1127
        %v1129 = vrcp.pop %v1119
        %v1130 = vrcp.pop %v1122
        %v1131 = vrcp.pop %v1125
        %v1132 = vrcp.pop %v1128
        %v1133 = vmul.f32 %v1110, %v1129
        %v1134 = vmul.f32 %v1112, %v1130
        %v1135 = vmul.f32 %v1114, %v1131
        %v1136 = vmul.f32 %v1116, %v1132
        %v1137 = vpack.c.bf16 %v1133, %v1133
        %v1138 = vpack.c.bf16 %v1134, %v1134
        %v1139 = vpack.c.bf16 %v1135, %v1135
        %v1140 = vpack.c.bf16 %v1136, %v1136
        %v1142 = vsel %vm1012, %v1137, 0
        %vm1144 = vcmask 1043456
        %v1146 = vsel %vm1144, %v1008, 0
        %1148 = vmatpush.bf16.msra.mxu0 0
        %1149 = vmatpush.bf16.msra.mxu0 0
        %1150 = vmatpush.bf16.msra.mxu0 0
        %1151 = vmatpush.bf16.msra.mxu0 0
        %1152 = vmatpush.bf16.msra.mxu0 0
        %1153 = vmatpush.bf16.msra.mxu0 0
        %1154 = vmatpush.bf16.msra.mxu0 0
        %1155 = vmatpush.bf16.msra.mxu0 %v1146
        %1156 = vmatmul.bf16.gmra.mxu0 %v1142
        %v1157 = vpop.f32.mrf.mxu0
        %v1158 = vadd.f32 0.0, %v1157
        %v1159 = vpop.f32.mrf.mxu0
        %1160 = vdwg.mxu0
        %v1162 = vsel %vm1012, %v1138, 0
        %v1165 = vsel %vm1144, %v1009, 0
        %1167 = vmatpush.bf16.msra.mxu0 0
        %1168 = vmatpush.bf16.msra.mxu0 0
        %1169 = vmatpush.bf16.msra.mxu0 0
        %1170 = vmatpush.bf16.msra.mxu0 0
        %1171 = vmatpush.bf16.msra.mxu0 0
        %1172 = vmatpush.bf16.msra.mxu0 0
        %1173 = vmatpush.bf16.msra.mxu0 0
        %1174 = vmatpush.bf16.msra.mxu0 %v1165
        %1175 = vmatmul.bf16.gmra.mxu0 %v1162
        %v1176 = vpop.f32.mrf.mxu0
        %v1177 = vadd.f32 0.0, %v1176
        %v1178 = vpop.f32.mrf.mxu0
        %1179 = vdwg.mxu0
        %v1181 = vsel %vm1012, %v1139, 0
        %v1184 = vsel %vm1144, %v1010, 0
        %1186 = vmatpush.bf16.msra.mxu0 0
        %1187 = vmatpush.bf16.msra.mxu0 0
        %1188 = vmatpush.bf16.msra.mxu0 0
        %1189 = vmatpush.bf16.msra.mxu0 0
        %1190 = vmatpush.bf16.msra.mxu0 0
        %1191 = vmatpush.bf16.msra.mxu0 0
        %1192 = vmatpush.bf16.msra.mxu0 0
        %1193 = vmatpush.bf16.msra.mxu0 %v1184
        %1194 = vmatmul.bf16.gmra.mxu0 %v1181
        %v1195 = vpop.f32.mrf.mxu0
        %v1196 = vadd.f32 0.0, %v1195
        %v1197 = vpop.f32.mrf.mxu0
        %1198 = vdwg.mxu0
        %v1200 = vsel %vm1012, %v1140, 0
        %v1203 = vsel %vm1144, %v1011, 0
        %1205 = vmatpush.bf16.msra.mxu0 0
        %1206 = vmatpush.bf16.msra.mxu0 0
        %1207 = vmatpush.bf16.msra.mxu0 0
        %1208 = vmatpush.bf16.msra.mxu0 0
        %1209 = vmatpush.bf16.msra.mxu0 0
        %1210 = vmatpush.bf16.msra.mxu0 0
        %1211 = vmatpush.bf16.msra.mxu0 0
        %1212 = vmatpush.bf16.msra.mxu0 %v1203
        %1213 = vmatmul.bf16.gmra.mxu0 %v1200
        %v1214 = vpop.f32.mrf.mxu0
        %v1215 = vadd.f32 0.0, %v1214
        %v1216 = vpop.f32.mrf.mxu0
        %1217 = vdwg.mxu0
        %v1218 = vpack.c.bf16 %v1158, %v1158
        %v1219 = vpack.c.bf16 %v1177, %v1177
        %v1220 = vpack.c.bf16 %v1196, %v1196
        %v1221 = vpack.c.bf16 %v1215, %v1215
        %v1222 = vld [vmem:[%s9] sm:$0xf]
        %v1223 = vld [vmem:[%s9 + $0x4] sm:$0xf]
        %v1224 = vld [vmem:[%s9 + $0x8] sm:$0xf]
        %v1225 = vld [vmem:[%s9 + $0xc] sm:$0xf]
        %v1227 = vsel %vm1012, %v1218, 0
        %v1230 = vsel %vm1144, %v1222, 0
        %1232 = vmatpush.bf16.msra.mxu0 0
        %1233 = vmatpush.bf16.msra.mxu0 0
        %1234 = vmatpush.bf16.msra.mxu0 0
        %1235 = vmatpush.bf16.msra.mxu0 0
        %1236 = vmatpush.bf16.msra.mxu0 0
        %1237 = vmatpush.bf16.msra.mxu0 0
        %1238 = vmatpush.bf16.msra.mxu0 0
        %1239 = vmatpush.bf16.msra.mxu0 %v1230
        %1240 = vmatmul.bf16.gmra.mxu0 %v1227
        %v1241 = vpop.f32.mrf.mxu0
        %v1242 = vadd.f32 0.0, %v1241
        %v1243 = vpop.f32.mrf.mxu0
        %1244 = vdwg.mxu0
        %v1246 = vsel %vm1012, %v1219, 0
        %v1249 = vsel %vm1144, %v1223, 0
        %1251 = vmatpush.bf16.msra.mxu0 0
        %1252 = vmatpush.bf16.msra.mxu0 0
        %1253 = vmatpush.bf16.msra.mxu0 0
        %1254 = vmatpush.bf16.msra.mxu0 0
        %1255 = vmatpush.bf16.msra.mxu0 0
        %1256 = vmatpush.bf16.msra.mxu0 0
        %1257 = vmatpush.bf16.msra.mxu0 0
        %1258 = vmatpush.bf16.msra.mxu0 %v1249
        %1259 = vmatmul.bf16.gmra.mxu0 %v1246
        %v1260 = vpop.f32.mrf.mxu0
        %v1261 = vadd.f32 0.0, %v1260
        %v1262 = vpop.f32.mrf.mxu0
        %1263 = vdwg.mxu0
        %v1265 = vsel %vm1012, %v1220, 0
        %v1268 = vsel %vm1144, %v1224, 0
        %1270 = vmatpush.bf16.msra.mxu0 0
        %1271 = vmatpush.bf16.msra.mxu0 0
        %1272 = vmatpush.bf16.msra.mxu0 0
        %1273 = vmatpush.bf16.msra.mxu0 0
        %1274 = vmatpush.bf16.msra.mxu0 0
        %1275 = vmatpush.bf16.msra.mxu0 0
        %1276 = vmatpush.bf16.msra.mxu0 0
        %1277 = vmatpush.bf16.msra.mxu0 %v1268
        %1278 = vmatmul.bf16.gmra.mxu0 %v1265
        %v1279 = vpop.f32.mrf.mxu0
        %v1280 = vadd.f32 0.0, %v1279
        %v1281 = vpop.f32.mrf.mxu0
        %1282 = vdwg.mxu0
        %v1284 = vsel %vm1012, %v1221, 0
        %v1287 = vsel %vm1144, %v1225, 0
        %1289 = vmatpush.bf16.msra.mxu0 0
        %1290 = vmatpush.bf16.msra.mxu0 0
        %1291 = vmatpush.bf16.msra.mxu0 0
        %1292 = vmatpush.bf16.msra.mxu0 0
        %1293 = vmatpush.bf16.msra.mxu0 0
        %1294 = vmatpush.bf16.msra.mxu0 0
        %1295 = vmatpush.bf16.msra.mxu0 0
        %1296 = vmatpush.bf16.msra.mxu0 %v1287
        %1297 = vmatmul.bf16.gmra.mxu0 %v1284
        %v1298 = vpop.f32.mrf.mxu0
        %v1299 = vadd.f32 0.0, %v1298
        %v1300 = vpop.f32.mrf.mxu0
        %1301 = vdwg.mxu0
        %v1302 = vsel %vm562, %v1242, 0.0
        %v1303 = vsel %vm562, %v1261, 0.0
        %v1304 = vadd.f32 %v1302, %v1303
        %v1305 = vsel %vm562, %v1280, 0.0
        %v1306 = vadd.f32 %v1304, %v1305
        %v1307 = vsel %vm562, %v1299, 0.0
        %v1308 = vadd.f32 %v1306, %v1307
        %v1309 = vld [vmem:[%s10] sm:$0x1]
        %v1311 = vperm.slane %v1309, 0
        %v1313 = vadd.f32 %v1308, %v1311
        %v1314 = vadd.f32 %v559, %v1313
        %v1315 = vld [vmem:[%s11] sm:$0x1]
        %v1316 = vld [vmem:[%s12] sm:$0x1]
        %v1317 = vsel %vm562, %v1314, 0.0
        %1318 = vadd.xlane.f32.xlu0 %v1317
        %v1319 = vpop.xlane.xlu0 %1318
        %v1320 = vmul.f32 %v1319, %v572
        %v1321 = vsub.f32 %v1314, %v1320
        %v1322 = vmul.f32 %v1321, %v1321
        %v1323 = vsel %vm562, %v1322, 0.0
        %1324 = vadd.xlane.f32.xlu0 %v1323
        %v1325 = vpop.xlane.xlu0 %1324
        %v1326 = vmul.f32 %v1325, %v572
        %v1327 = vadd.f32 %v1326, 1e-05
        %v1328 = vrsqrt.pop %v1327
        %v1329 = vmul.f32 %v1328, %v1327
        %v1330 = vmul.f32 %v1329, %v1328
        %v1331 = vmul.f32 0.5, %v1330
        %v1332 = vsub.f32 1.5, %v1331
        %v1333 = vmul.f32 %v1328, %v1332
        %vm1334 = vweird.f32 %v1327
        %vm1335 = vweird.f32 %v1328
        %vm1336 = vmor %vm1334, %vm1335
        %v1337 = vsel %vm1336, %v1328, %v1333
        %v1338 = vmul.f32 %v1321, %v1337
        %v1340 = vperm.slane %v1315, 0
        %v1342 = vmul.f32 %v1338, %v1340
        %v1344 = vperm.slane %v1316, 0
        %v1346 = vadd.f32 %v1342, %v1344
        %v1347 = vpack.c.bf16 %v1346, %v1346
        %v1348 = vld [vmem:[%s13] sm:$0xf]
        %v1349 = vld [vmem:[%s13 + $0x4] sm:$0xf]
        %v1350 = vld [vmem:[%s13 + $0x8] sm:$0xf]
        %v1351 = vld [vmem:[%s13 + $0xc] sm:$0xf]
        %v1352 = vld [vmem:[%s14] sm:$0x1]
        %v1354 = vperm.slane %v1352, 0
        %v1360 = vunpack.c.l.b16 %v1348
        %v1361 = vunpack.c.l.b16 %v1349
        %v1362 = vunpack.c.l.b16 %v1350
        %v1363 = vunpack.c.l.b16 %v1351
        %v1364 = vpack.c.b16 %v1361, %v1360
        %v1365 = vpack.c.b16 %v1363, %v1362
        %v1369 = vsel %vm562, %v1347, 0
        %1371 = vmatpush.bf16.msra.mxu0 0
        %1372 = vmatpush.bf16.msra.mxu0 0
        %1373 = vmatpush.bf16.msra.mxu0 0
        %1374 = vmatpush.bf16.msra.mxu0 0
        %1375 = vmatpush.bf16.msra.mxu0 0
        %1376 = vmatpush.bf16.msra.mxu0 0
        %1377 = vmatpush.bf16.msra.mxu0 %v1365
        %1378 = vmatpush.bf16.msra.mxu0 %v1364
        %1379 = vmatmul.bf16.gmra.mxu0 %v1369
        %v1380 = vpop.f32.mrf.mxu0
        %v1381 = vadd.f32 %v1354, %v1380
        %v1382 = vpop.f32.mrf.mxu0
        %1383 = vdwg.mxu0
        %v1384 = vmax.f32 %v1381, 0.0
        %v1385 = vpack.c.bf16 %v1384, %v1384
        %v1386 = vld [vmem:[%s15] sm:$0xf]
        %v1387 = vld [vmem:[%s15 + $0x4] sm:$0xf]
        %v1388 = vld [vmem:[%s15 + $0x8] sm:$0xf]
        %v1389 = vld [vmem:[%s15 + $0xc] sm:$0xf]
        %v1390 = vld [vmem:[%s15 + $0x10] sm:$0xf]
        %v1391 = vld [vmem:[%s15 + $0x14] sm:$0xf]
        %v1392 = vld [vmem:[%s15 + $0x18] sm:$0xf]
        %v1393 = vld [vmem:[%s15 + $0x1c] sm:$0xf]
        %v1394 = vld [vmem:[%s16] sm:$0x1]
        %v1396 = vperm.slane %v1394, 0
        %v1406 = vunpack.c.l.b16 %v1386
        %v1407 = vunpack.c.l.b16 %v1387
        %v1408 = vunpack.c.l.b16 %v1388
        %v1409 = vunpack.c.l.b16 %v1389
        %v1410 = vunpack.c.l.b16 %v1390
        %v1411 = vunpack.c.l.b16 %v1391
        %v1412 = vunpack.c.l.b16 %v1392
        %v1413 = vunpack.c.l.b16 %v1393
        %v1414 = vpack.c.b16 %v1407, %v1406
        %v1415 = vpack.c.b16 %v1409, %v1408
        %v1416 = vpack.c.b16 %v1411, %v1410
        %v1417 = vpack.c.b16 %v1413, %v1412
        %vm1422 = vcmask 523264
        %v1424 = vsel %vm1422, %v1385, 0
        %1426 = vmatpush.bf16.msra.mxu0 0
        %1427 = vmatpush.bf16.msra.mxu0 0
        %1428 = vmatpush.bf16.msra.mxu0 0
        %1429 = vmatpush.bf16.msra.mxu0 0
        %1430 = vmatpush.bf16.msra.mxu0 %v1417
        %1431 = vmatpush.bf16.msra.mxu0 %v1416
        %1432 = vmatpush.bf16.msra.mxu0 %v1415
        %1433 = vmatpush.bf16.msra.mxu0 %v1414
        %1434 = vmatmul.bf16.gmra.mxu0 %v1424
        %v1435 = vpop.f32.mrf.mxu0
        %v1436 = vadd.f32 %v1396, %v1435
        %v1437 = vpop.f32.mrf.mxu0
        %1438 = vdwg.mxu0
        %v1439 = vadd.f32 %v1314, %v1436
        %1440 = vst.msk [vmem:[%s553] sm:$0xff] %vm562, %v1439
        %s1441 = sand.u32 %s415, 1
        %s1442 = scalar_lea.sflag [#allocation3], %s1441
        %s1443 = sand.u32 %s415, 1
        %s1444 = smul.addr %s1443, 8
        %s1445 = scalar_lea.vmem [#allocation2], %s1444
        // Predicated region
        $region89: #{tpu_custom_call.1} parent=87 // pred_check
          %p1446 = pneg %p425
        $region90: #{tpu_custom_call.1} parent=87 // pred_check_branch
          %1448 = sbr.rel (%p1446) target = $region92
        $region91: #{tpu_custom_call.1} parent=87 // pred_region
          %1450 = vsyncadd %s1442, 0
          %s1451 = sadd.s32 %s36, %s35
          %s1452 = smul.addr %s1451, 8
          %s1453 = scalar_lea.hbm %s17, %s1452
          %s1455 = sshll.u32 %s1445, 4
          %s1456 = int_to_ptr.vmem [resolvable:$true] %s1455
          %s1457 = sshll.u32 %s1453, 4
          %s1458 = int_to_ptr.hbm [resolvable:$true] %s1457
          %1460 = dma.vmem_to_hbm [thread:$0]  %s1456, 128, %s1458, %s1442
        $region92: #{tpu_custom_call.1} parent=87 // pred_fallthru
          _
      $region88: #{tpu_custom_call.1} parent=5 // pred_fallthru
        _
      %p1461 = scmp.le.s32.totalorder 2, %s26
      // Predicated region
      $region93: #{tpu_custom_call.1} parent=5 // pred_check
        %p1462 = pneg %p1461
      $region94: #{tpu_custom_call.1} parent=5 // pred_check_branch
        %1464 = sbr.rel (%p1462) target = $region96
      $region95: #{tpu_custom_call.1} parent=5 // pred_region
        %s1465 = ssub.s32 %s26, 2
        // Predicated region
        $region97: #{tpu_custom_call.1} parent=95 // pred_check
          %p1466 = pneg %p431
        $region98: #{tpu_custom_call.1} parent=95 // pred_check_branch
          %1468 = sbr.rel (%p1466) target = $region100
        $region99: #{tpu_custom_call.1} parent=95 // pred_region
          %s1469 = sand.u32 %s416, 1
          %s1470 = scalar_lea.sflag [#allocation3], %s1469
          %s1471 = sand.u32 %s416, 1
          %s1472 = smul.addr %s1471, 8
          %s1473 = scalar_lea.vmem [#allocation2], %s1472
          %1475 = dma.done %s1470, 128
        $region100: #{tpu_custom_call.1} parent=95 // pred_fallthru
          _
      $region96: #{tpu_custom_call.1} parent=5 // pred_fallthru
        _
    $region6: #{tpu_custom_call.1} parent=1 // loop_footer
      %s30 = sadd.s32 1, %s26
    $region7: #{tpu_custom_call.1} parent=1 // loop_footer_branch
      %25 = sbr.rel target = $region3
    $region8: #{tpu_custom_call.1} parent=1 // loop_exit
      _
    %1476 = vsyncpa [#allocation3], 1
    %s1477 = scalar_lea.sflag [#allocation3], 1
    %1478 = vsyncpa %s1477, 1

// kernel: tpu_custom_call.1
$region0: #{tpu_custom_call.1}
  #allocation0 [shape = 'u32[]', space=smem, size = 0x4, offset = 0x4, fixed_abs, tag = 'smem constant byte address 0x4 - core index']
  #allocation1 [shape = 'u32[72,128]{1,0:T(1,128)}', space=vmem, size = 0x9000, scoped, tag = 'internal scratch']
  %s0 = inlined_call_operand.vmem [shape: f32[2,8,32], index: 0, kind: input, shape index: {}]
  %s1 = inlined_call_operand.vmem [shape: f32[1,32], index: 1, kind: input, shape index: {}]
  %s2 = inlined_call_operand.vmem [shape: f32[1,32], index: 2, kind: input, shape index: {}]
  %s3 = inlined_call_operand.vmem [shape: bf16[4,32,8], index: 3, kind: input, shape index: {}]
  %s4 = inlined_call_operand.vmem [shape: f32[4,1,8], index: 4, kind: input, shape index: {}]
  %s5 = inlined_call_operand.vmem [shape: bf16[4,32,8], index: 5, kind: input, shape index: {}]
  %s6 = inlined_call_operand.vmem [shape: f32[4,1,8], index: 6, kind: input, shape index: {}]
  %s7 = inlined_call_operand.vmem [shape: bf16[4,32,8], index: 7, kind: input, shape index: {}]
  %s8 = inlined_call_operand.vmem [shape: f32[4,1,8], index: 8, kind: input, shape index: {}]
  %s9 = inlined_call_operand.vmem [shape: bf16[4,8,32], index: 9, kind: input, shape index: {}]
  %s10 = inlined_call_operand.vmem [shape: f32[1,32], index: 10, kind: input, shape index: {}]
  %s11 = inlined_call_operand.vmem [shape: f32[1,32], index: 11, kind: input, shape index: {}]
  %s12 = inlined_call_operand.vmem [shape: f32[1,32], index: 12, kind: input, shape index: {}]
  %s13 = inlined_call_operand.vmem [shape: bf16[32,64], index: 13, kind: input, shape index: {}]
  %s14 = inlined_call_operand.vmem [shape: f32[1,64], index: 14, kind: input, shape index: {}]
  %s15 = inlined_call_operand.vmem [shape: bf16[64,32], index: 15, kind: input, shape index: {}]
  %s16 = inlined_call_operand.vmem [shape: f32[1,32], index: 16, kind: input, shape index: {}]
  %s17 = inlined_call_operand.hbm [shape: f32[2,8,32], index: 17, kind: output, shape index: {}]
  %s18 = sld [smem:[#allocation0]]
  $region101: #{tpu_custom_call.1} parent=0
    _
  %s20 = ssub.s32 1, %s18
  %s21 = scalar_select 0, %s20, %s18
  $region1: #{tpu_custom_call.1} parent=0
    #allocation2 [shape = 'u8[8192]{0}', space=vmem, size = 0x2000, scoped, tag = 'output window, operand 0']
    #allocation3 [shape = 's32[2]{0}', space=sflag, size = 0x8, scoped, tag = 'scoped memory for tpu_custom_call.1']
    %22 = vsyncpa [#allocation3], 0
    %s23 = scalar_lea.sflag [#allocation3], 1
    %24 = vsyncpa %s23, 0
    loop: start=0, step=1, limit=4
    $region2: #{tpu_custom_call.1} parent=1 // loop_pre_header
      _
    $region3: #{tpu_custom_call.1} parent=1 // loop_header
      %s26 = sphi 0, %s30
      %p27 = scmp.ge.s32.totalorder %s26, 4
      %s33 = sphi 0, %s45
      %s34 = sphi 0, %s41
      %s35 = sphi 0, %s33
      %s36 = sphi 0, %s34
      %s37 = sphi 0, %s35
      %s38 = sphi 0, %s36
      %s48 = sphi 0, %s50
      %s51 = sphi 0, %s48
      %s52 = sphi 0, %s51
      %s68 = sphi 0, %s52
      %s72 = sphi 0, %s72
      %s74 = sphi 0, %s72
      %s75 = sphi 0, %s74
      %s89 = sphi 0, %s75
      %s93 = sphi 0, %s93
      %s95 = sphi 0, %s93
      %s96 = sphi 0, %s95
      %s110 = sphi 0, %s96
      %s114 = sphi 0, %s114
      %s116 = sphi 0, %s114
      %s117 = sphi 0, %s116
      %s131 = sphi 0, %s117
      %s135 = sphi 0, %s135
      %s137 = sphi 0, %s135
      %s138 = sphi 0, %s137
      %s152 = sphi 0, %s138
      %s156 = sphi 0, %s156
      %s158 = sphi 0, %s156
      %s159 = sphi 0, %s158
      %s173 = sphi 0, %s159
      %s177 = sphi 0, %s177
      %s179 = sphi 0, %s177
      %s180 = sphi 0, %s179
      %s194 = sphi 0, %s180
      %s198 = sphi 0, %s198
      %s200 = sphi 0, %s198
      %s201 = sphi 0, %s200
      %s215 = sphi 0, %s201
      %s219 = sphi 0, %s219
      %s221 = sphi 0, %s219
      %s222 = sphi 0, %s221
      %s236 = sphi 0, %s222
      %s240 = sphi 0, %s240
      %s242 = sphi 0, %s240
      %s243 = sphi 0, %s242
      %s257 = sphi 0, %s243
      %s261 = sphi 0, %s261
      %s263 = sphi 0, %s261
      %s264 = sphi 0, %s263
      %s278 = sphi 0, %s264
      %s282 = sphi 0, %s282
      %s284 = sphi 0, %s282
      %s285 = sphi 0, %s284
      %s299 = sphi 0, %s285
      %s303 = sphi 0, %s303
      %s305 = sphi 0, %s303
      %s306 = sphi 0, %s305
      %s320 = sphi 0, %s306
      %s324 = sphi 0, %s324
      %s326 = sphi 0, %s324
      %s327 = sphi 0, %s326
      %s341 = sphi 0, %s327
      %s345 = sphi 0, %s345
      %s347 = sphi 0, %s345
      %s348 = sphi 0, %s347
      %s362 = sphi 0, %s348
      %s366 = sphi 0, %s366
      %s368 = sphi 0, %s366
      %s369 = sphi 0, %s368
      %s383 = sphi 0, %s369
      %s387 = sphi 0, %s387
      %s389 = sphi 0, %s387
      %s390 = sphi 0, %s389
      %s404 = sphi 0, %s390
      %s412 = sphi 0, %s414
      %s415 = sphi 0, %s412
      %s416 = sphi 0, %s415
      %s432 = sphi 0, %s416
    $region4: #{tpu_custom_call.1} parent=1 // loop_header_branch
      %29 = sbr.rel (%p27) target = $region8
    $region5: #{tpu_custom_call.1} parent=1 // loop_body
      %s31 = ssub.s32 %s26, 1
      %s32 = ssub.s32 %s26, 2
      %s39 = sadd.s32 1, %s34
      %p40 = scmp.ge.s32.totalorder %s39, 1
      %s41 = scalar_select %p40, 0, %s39
      %s42 = sadd.s32 1, %s33
      %s43 = scalar_select %p40, %s42, %s33
      %p44 = scmp.ge.s32.totalorder %s43, 2
      %s45 = scalar_select %p44, 0, %s43
      %s46 = ssub.s32 %s33, %s45
      %p47 = scmp.eq.s32.totalorder %s46, 0
      %s49 = sadd.s32 %s48, 1
      %s50 = scalar_select %p47, %s48, %s49
      %p53 = pneg %p47
      %p54 = scmp.eq.s32.totalorder %s26, 1
      %p55 = por %p53, %p54
      %p56 = scmp.ne.s32.totalorder %s48, %s51
      %p57 = scmp.eq.s32.totalorder %s26, 0
      %p58 = por %p56, %p57
      %p59 = scmp.ne.s32.totalorder %s48, %s51
      %p60 = scmp.eq.s32.totalorder %s31, 1
      %p61 = por %p59, %p60
      %p62 = scmp.ne.s32.totalorder %s51, %s52
      %p63 = scmp.eq.s32.totalorder %s31, 0
      %p64 = por %p62, %p63
      %p65 = scmp.ne.s32.totalorder %s51, %s52
      %p66 = scmp.eq.s32.totalorder %s32, 1
      %p67 = por %p65, %p66
      %p69 = scmp.ne.s32.totalorder %s52, %s68
      %p70 = scmp.eq.s32.totalorder %s32, 0
      %p71 = por %p69, %p70
      %s73 = sadd.s32 %s72, 1
      %p76 = scmp.eq.s32.totalorder %s26, 1
      %p77 = scmp.ne.s32.totalorder %s72, %s74
      %p78 = scmp.eq.s32.totalorder %s26, 0
      %p79 = por %p77, %p78
      %p80 = scmp.ne.s32.totalorder %s72, %s74
      %p81 = scmp.eq.s32.totalorder %s31, 1
      %p82 = por %p80, %p81
      %p83 = scmp.ne.s32.totalorder %s74, %s75
      %p84 = scmp.eq.s32.totalorder %s31, 0
      %p85 = por %p83, %p84
      %p86 = scmp.ne.s32.totalorder %s74, %s75
      %p87 = scmp.eq.s32.totalorder %s32, 1
      %p88 = por %p86, %p87
      %p90 = scmp.ne.s32.totalorder %s75, %s89
      %p91 = scmp.eq.s32.totalorder %s32, 0
      %p92 = por %p90, %p91
      %s94 = sadd.s32 %s93, 1
      %p97 = scmp.eq.s32.totalorder %s26, 1
      %p98 = scmp.ne.s32.totalorder %s93, %s95
      %p99 = scmp.eq.s32.totalorder %s26, 0
      %p100 = por %p98, %p99
      %p101 = scmp.ne.s32.totalorder %s93, %s95
      %p102 = scmp.eq.s32.totalorder %s31, 1
      %p103 = por %p101, %p102
      %p104 = scmp.ne.s32.totalorder %s95, %s96
      %p105 = scmp.eq.s32.totalorder %s31, 0
      %p106 = por %p104, %p105
      %p107 = scmp.ne.s32.totalorder %s95, %s96
      %p108 = scmp.eq.s32.totalorder %s32, 1
      %p109 = por %p107, %p108
      %p111 = scmp.ne.s32.totalorder %s96, %s110
      %p112 = scmp.eq.s32.totalorder %s32, 0
      %p113 = por %p111, %p112
      %s115 = sadd.s32 %s114, 1
      %p118 = scmp.eq.s32.totalorder %s26, 1
      %p119 = scmp.ne.s32.totalorder %s114, %s116
      %p120 = scmp.eq.s32.totalorder %s26, 0
      %p121 = por %p119, %p120
      %p122 = scmp.ne.s32.totalorder %s114, %s116
      %p123 = scmp.eq.s32.totalorder %s31, 1
      %p124 = por %p122, %p123
      %p125 = scmp.ne.s32.totalorder %s116, %s117
      %p126 = scmp.eq.s32.totalorder %s31, 0
      %p127 = por %p125, %p126
      %p128 = scmp.ne.s32.totalorder %s116, %s117
      %p129 = scmp.eq.s32.totalorder %s32, 1
      %p130 = por %p128, %p129
      %p132 = scmp.ne.s32.totalorder %s117, %s131
      %p133 = scmp.eq.s32.totalorder %s32, 0
      %p134 = por %p132, %p133
      %s136 = sadd.s32 %s135, 1
      %p139 = scmp.eq.s32.totalorder %s26, 1
      %p140 = scmp.ne.s32.totalorder %s135, %s137
      %p141 = scmp.eq.s32.totalorder %s26, 0
      %p142 = por %p140, %p141
      %p143 = scmp.ne.s32.totalorder %s135, %s137
      %p144 = scmp.eq.s32.totalorder %s31, 1
      %p145 = por %p143, %p144
      %p146 = scmp.ne.s32.totalorder %s137, %s138
      %p147 = scmp.eq.s32.totalorder %s31, 0
      %p148 = por %p146, %p147
      %p149 = scmp.ne.s32.totalorder %s137, %s138
      %p150 = scmp.eq.s32.totalorder %s32, 1
      %p151 = por %p149, %p150
      %p153 = scmp.ne.s32.totalorder %s138, %s152
      %p154 = scmp.eq.s32.totalorder %s32, 0
      %p155 = por %p153, %p154
      %s157 = sadd.s32 %s156, 1
      %p160 = scmp.eq.s32.totalorder %s26, 1
      %p161 = scmp.ne.s32.totalorder %s156, %s158
      %p162 = scmp.eq.s32.totalorder %s26, 0
      %p163 = por %p161, %p162
      %p164 = scmp.ne.s32.totalorder %s156, %s158
      %p165 = scmp.eq.s32.totalorder %s31, 1
      %p166 = por %p164, %p165
      %p167 = scmp.ne.s32.totalorder %s158, %s159
      %p168 = scmp.eq.s32.totalorder %s31, 0
      %p169 = por %p167, %p168
      %p170 = scmp.ne.s32.totalorder %s158, %s159
      %p171 = scmp.eq.s32.totalorder %s32, 1
      %p172 = por %p170, %p171
      %p174 = scmp.ne.s32.totalorder %s159, %s173
      %p175 = scmp.eq.s32.totalorder %s32, 0
      %p176 = por %p174, %p175
      %s178 = sadd.s32 %s177, 1
      %p181 = scmp.eq.s32.totalorder %s26, 1
      %p182 = scmp.ne.s32.totalorder %s177, %s179
      %p183 = scmp.eq.s32.totalorder %s26, 0
      %p184 = por %p182, %p183
      %p185 = scmp.ne.s32.totalorder %s177, %s179
      %p186 = scmp.eq.s32.totalorder %s31, 1
      %p187 = por %p185, %p186
      %p188 = scmp.ne.s32.totalorder %s179, %s180
      %p189 = scmp.eq.s32.totalorder %s31, 0
      %p190 = por %p188, %p189
      %p191 = scmp.ne.s32.totalorder %s179, %s180
      %p192 = scmp.eq.s32.totalorder %s32, 1
      %p193 = por %p191, %p192
      %p195 = scmp.ne.s32.totalorder %s180, %s194
      %p196 = scmp.eq.s32.totalorder %s32, 0
      %p197 = por %p195, %p196
      %s199 = sadd.s32 %s198, 1
      %p202 = scmp.eq.s32.totalorder %s26, 1
      %p203 = scmp.ne.s32.totalorder %s198, %s200
      %p204 = scmp.eq.s32.totalorder %s26, 0
      %p205 = por %p203, %p204
      %p206 = scmp.ne.s32.totalorder %s198, %s200
      %p207 = scmp.eq.s32.totalorder %s31, 1
      %p208 = por %p206, %p207
      %p209 = scmp.ne.s32.totalorder %s200, %s201
      %p210 = scmp.eq.s32.totalorder %s31, 0
      %p211 = por %p209, %p210
      %p212 = scmp.ne.s32.totalorder %s200, %s201
      %p213 = scmp.eq.s32.totalorder %s32, 1
      %p214 = por %p212, %p213
      %p216 = scmp.ne.s32.totalorder %s201, %s215
      %p217 = scmp.eq.s32.totalorder %s32, 0
      %p218 = por %p216, %p217
      %s220 = sadd.s32 %s219, 1
      %p223 = scmp.eq.s32.totalorder %s26, 1
      %p224 = scmp.ne.s32.totalorder %s219, %s221
      %p225 = scmp.eq.s32.totalorder %s26, 0
      %p226 = por %p224, %p225
      %p227 = scmp.ne.s32.totalorder %s219, %s221
      %p228 = scmp.eq.s32.totalorder %s31, 1
      %p229 = por %p227, %p228
      %p230 = scmp.ne.s32.totalorder %s221, %s222
      %p231 = scmp.eq.s32.totalorder %s31, 0
      %p232 = por %p230, %p231
      %p233 = scmp.ne.s32.totalorder %s221, %s222
      %p234 = scmp.eq.s32.totalorder %s32, 1
      %p235 = por %p233, %p234
      %p237 = scmp.ne.s32.totalorder %s222, %s236
      %p238 = scmp.eq.s32.totalorder %s32, 0
      %p239 = por %p237, %p238
      %s241 = sadd.s32 %s240, 1
      %p244 = scmp.eq.s32.totalorder %s26, 1
      %p245 = scmp.ne.s32.totalorder %s240, %s242
      %p246 = scmp.eq.s32.totalorder %s26, 0
      %p247 = por %p245, %p246
      %p248 = scmp.ne.s32.totalorder %s240, %s242
      %p249 = scmp.eq.s32.totalorder %s31, 1
      %p250 = por %p248, %p249
      %p251 = scmp.ne.s32.totalorder %s242, %s243
      %p252 = scmp.eq.s32.totalorder %s31, 0
      %p253 = por %p251, %p252
      %p254 = scmp.ne.s32.totalorder %s242, %s243
      %p255 = scmp.eq.s32.totalorder %s32, 1
      %p256 = por %p254, %p255
      %p258 = scmp.ne.s32.totalorder %s243, %s257
      %p259 = scmp.eq.s32.totalorder %s32, 0
      %p260 = por %p258, %p259
      %s262 = sadd.s32 %s261, 1
      %p265 = scmp.eq.s32.totalorder %s26, 1
      %p266 = scmp.ne.s32.totalorder %s261, %s263
      %p267 = scmp.eq.s32.totalorder %s26, 0
      %p268 = por %p266, %p267
      %p269 = scmp.ne.s32.totalorder %s261, %s263
      %p270 = scmp.eq.s32.totalorder %s31, 1
      %p271 = por %p269, %p270
      %p272 = scmp.ne.s32.totalorder %s263, %s264
      %p273 = scmp.eq.s32.totalorder %s31, 0
      %p274 = por %p272, %p273
      %p275 = scmp.ne.s32.totalorder %s263, %s264
      %p276 = scmp.eq.s32.totalorder %s32, 1
      %p277 = por %p275, %p276
      %p279 = scmp.ne.s32.totalorder %s264, %s278
      %p280 = scmp.eq.s32.totalorder %s32, 0
      %p281 = por %p279, %p280
      %s283 = sadd.s32 %s282, 1
      %p286 = scmp.eq.s32.totalorder %s26, 1
      %p287 = scmp.ne.s32.totalorder %s282, %s284
      %p288 = scmp.eq.s32.totalorder %s26, 0
      %p289 = por %p287, %p288
      %p290 = scmp.ne.s32.totalorder %s282, %s284
      %p291 = scmp.eq.s32.totalorder %s31, 1
      %p292 = por %p290, %p291
      %p293 = scmp.ne.s32.totalorder %s284, %s285
      %p294 = scmp.eq.s32.totalorder %s31, 0
      %p295 = por %p293, %p294
      %p296 = scmp.ne.s32.totalorder %s284, %s285
      %p297 = scmp.eq.s32.totalorder %s32, 1
      %p298 = por %p296, %p297
      %p300 = scmp.ne.s32.totalorder %s285, %s299
      %p301 = scmp.eq.s32.totalorder %s32, 0
      %p302 = por %p300, %p301
      %s304 = sadd.s32 %s303, 1
      %p307 = scmp.eq.s32.totalorder %s26, 1
      %p308 = scmp.ne.s32.totalorder %s303, %s305
      %p309 = scmp.eq.s32.totalorder %s26, 0
      %p310 = por %p308, %p309
      %p311 = scmp.ne.s32.totalorder %s303, %s305
      %p312 = scmp.eq.s32.totalorder %s31, 1
      %p313 = por %p311, %p312
      %p314 = scmp.ne.s32.totalorder %s305, %s306
      %p315 = scmp.eq.s32.totalorder %s31, 0
      %p316 = por %p314, %p315
      %p317 = scmp.ne.s32.totalorder %s305, %s306
      %p318 = scmp.eq.s32.totalorder %s32, 1
      %p319 = por %p317, %p318
      %p321 = scmp.ne.s32.totalorder %s306, %s320
      %p322 = scmp.eq.s32.totalorder %s32, 0
      %p323 = por %p321, %p322
      %s325 = sadd.s32 %s324, 1
      %p328 = scmp.eq.s32.totalorder %s26, 1
      %p329 = scmp.ne.s32.totalorder %s324, %s326
      %p330 = scmp.eq.s32.totalorder %s26, 0
      %p331 = por %p329, %p330
      %p332 = scmp.ne.s32.totalorder %s324, %s326
      %p333 = scmp.eq.s32.totalorder %s31, 1
      %p334 = por %p332, %p333
      %p335 = scmp.ne.s32.totalorder %s326, %s327
      %p336 = scmp.eq.s32.totalorder %s31, 0
      %p337 = por %p335, %p336
      %p338 = scmp.ne.s32.totalorder %s326, %s327
      %p339 = scmp.eq.s32.totalorder %s32, 1
      %p340 = por %p338, %p339
      %p342 = scmp.ne.s32.totalorder %s327, %s341
      %p343 = scmp.eq.s32.totalorder %s32, 0
      %p344 = por %p342, %p343
      %s346 = sadd.s32 %s345, 1
      %p349 = scmp.eq.s32.totalorder %s26, 1
      %p350 = scmp.ne.s32.totalorder %s345, %s347
      %p351 = scmp.eq.s32.totalorder %s26, 0
      %p352 = por %p350, %p351
      %p353 = scmp.ne.s32.totalorder %s345, %s347
      %p354 = scmp.eq.s32.totalorder %s31, 1
      %p355 = por %p353, %p354
      %p356 = scmp.ne.s32.totalorder %s347, %s348
      %p357 = scmp.eq.s32.totalorder %s31, 0
      %p358 = por %p356, %p357
      %p359 = scmp.ne.s32.totalorder %s347, %s348
      %p360 = scmp.eq.s32.totalorder %s32, 1
      %p361 = por %p359, %p360
      %p363 = scmp.ne.s32.totalorder %s348, %s362
      %p364 = scmp.eq.s32.totalorder %s32, 0
      %p365 = por %p363, %p364
      %s367 = sadd.s32 %s366, 1
      %p370 = scmp.eq.s32.totalorder %s26, 1
      %p371 = scmp.ne.s32.totalorder %s366, %s368
      %p372 = scmp.eq.s32.totalorder %s26, 0
      %p373 = por %p371, %p372
      %p374 = scmp.ne.s32.totalorder %s366, %s368
      %p375 = scmp.eq.s32.totalorder %s31, 1
      %p376 = por %p374, %p375
      %p377 = scmp.ne.s32.totalorder %s368, %s369
      %p378 = scmp.eq.s32.totalorder %s31, 0
      %p379 = por %p377, %p378
      %p380 = scmp.ne.s32.totalorder %s368, %s369
      %p381 = scmp.eq.s32.totalorder %s32, 1
      %p382 = por %p380, %p381
      %p384 = scmp.ne.s32.totalorder %s369, %s383
      %p385 = scmp.eq.s32.totalorder %s32, 0
      %p386 = por %p384, %p385
      %s388 = sadd.s32 %s387, 1
      %p391 = scmp.eq.s32.totalorder %s26, 1
      %p392 = scmp.ne.s32.totalorder %s387, %s389
      %p393 = scmp.eq.s32.totalorder %s26, 0
      %p394 = por %p392, %p393
      %p395 = scmp.ne.s32.totalorder %s387, %s389
      %p396 = scmp.eq.s32.totalorder %s31, 1
      %p397 = por %p395, %p396
      %p398 = scmp.ne.s32.totalorder %s389, %s390
      %p399 = scmp.eq.s32.totalorder %s31, 0
      %p400 = por %p398, %p399
      %p401 = scmp.ne.s32.totalorder %s389, %s390
      %p402 = scmp.eq.s32.totalorder %s32, 1
      %p403 = por %p401, %p402
      %p405 = scmp.ne.s32.totalorder %s390, %s404
      %p406 = scmp.eq.s32.totalorder %s32, 0
      %p407 = por %p405, %p406
      %s408 = ssub.s32 %s33, %s45
      %s409 = ssub.s32 %s34, %s41
      %s410 = sor.u32 %s408, %s409
      %p411 = scmp.eq.s32.totalorder %s410, 0
      %s413 = sadd.s32 %s412, 1
      %s414 = scalar_select %p411, %s412, %s413
      %p417 = pneg %p411
      %p418 = scmp.eq.s32.totalorder %s26, 1
      %p419 = por %p417, %p418
      %p420 = scmp.ne.s32.totalorder %s412, %s415
      %p421 = scmp.eq.s32.totalorder %s26, 0
      %p422 = por %p420, %p421
      %p423 = scmp.ne.s32.totalorder %s412, %s415
      %p424 = scmp.eq.s32.totalorder %s31, 1
      %p425 = por %p423, %p424
      %p426 = scmp.ne.s32.totalorder %s415, %s416
      %p427 = scmp.eq.s32.totalorder %s31, 0
      %p428 = por %p426, %p427
      %p429 = scmp.ne.s32.totalorder %s415, %s416
      %p430 = scmp.eq.s32.totalorder %s32, 1
      %p431 = por %p429, %p430
      %p433 = scmp.ne.s32.totalorder %s416, %s432
      %p434 = scmp.eq.s32.totalorder %s32, 0
      %p435 = por %p433, %p434
      %p436 = scmp.le.s32.totalorder 1, %s26
      %p437 = scmp.lt.s32.totalorder %s26, 3
      %p438 = pnand %p436, %p437
      %p439 = pneg %p438
      // Predicated region
      $region9: #{tpu_custom_call.1} parent=5 // pred_check
        _
      $region10: #{tpu_custom_call.1} parent=5 // pred_check_branch
        %441 = sbr.rel (%p438) target = $region12
      $region11: #{tpu_custom_call.1} parent=5 // pred_region
        %s442 = ssub.s32 %s26, 1
        // Predicated region
        $region13: #{tpu_custom_call.1} parent=11 // pred_check
          %p443 = pneg %p85
        $region14: #{tpu_custom_call.1} parent=11 // pred_check_branch
          %445 = sbr.rel (%p443) target = $region16
        $region15: #{tpu_custom_call.1} parent=11 // pred_region
          _
        $region16: #{tpu_custom_call.1} parent=11 // pred_fallthru
          _
        // Predicated region
        $region17: #{tpu_custom_call.1} parent=11 // pred_check
          %p446 = pneg %p106
        $region18: #{tpu_custom_call.1} parent=11 // pred_check_branch
          %448 = sbr.rel (%p446) target = $region20
        $region19: #{tpu_custom_call.1} parent=11 // pred_region
          _
        $region20: #{tpu_custom_call.1} parent=11 // pred_fallthru
          _
        // Predicated region
        $region21: #{tpu_custom_call.1} parent=11 // pred_check
          %p449 = pneg %p127
        $region22: #{tpu_custom_call.1} parent=11 // pred_check_branch
          %451 = sbr.rel (%p449) target = $region24
        $region23: #{tpu_custom_call.1} parent=11 // pred_region
          _
        $region24: #{tpu_custom_call.1} parent=11 // pred_fallthru
          _
        // Predicated region
        $region25: #{tpu_custom_call.1} parent=11 // pred_check
          %p452 = pneg %p148
        $region26: #{tpu_custom_call.1} parent=11 // pred_check_branch
          %454 = sbr.rel (%p452) target = $region28
        $region27: #{tpu_custom_call.1} parent=11 // pred_region
          _
        $region28: #{tpu_custom_call.1} parent=11 // pred_fallthru
          _
        // Predicated region
        $region29: #{tpu_custom_call.1} parent=11 // pred_check
          %p455 = pneg %p169
        $region30: #{tpu_custom_call.1} parent=11 // pred_check_branch
          %457 = sbr.rel (%p455) target = $region32
        $region31: #{tpu_custom_call.1} parent=11 // pred_region
          _
        $region32: #{tpu_custom_call.1} parent=11 // pred_fallthru
          _
        // Predicated region
        $region33: #{tpu_custom_call.1} parent=11 // pred_check
          %p458 = pneg %p190
        $region34: #{tpu_custom_call.1} parent=11 // pred_check_branch
          %460 = sbr.rel (%p458) target = $region36
        $region35: #{tpu_custom_call.1} parent=11 // pred_region
          _
        $region36: #{tpu_custom_call.1} parent=11 // pred_fallthru
          _
        // Predicated region
        $region37: #{tpu_custom_call.1} parent=11 // pred_check
          %p461 = pneg %p211
        $region38: #{tpu_custom_call.1} parent=11 // pred_check_branch
          %463 = sbr.rel (%p461) target = $region40
        $region39: #{tpu_custom_call.1} parent=11 // pred_region
          _
        $region40: #{tpu_custom_call.1} parent=11 // pred_fallthru
          _
        // Predicated region
        $region41: #{tpu_custom_call.1} parent=11 // pred_check
          %p464 = pneg %p232
        $region42: #{tpu_custom_call.1} parent=11 // pred_check_branch
          %466 = sbr.rel (%p464) target = $region44
        $region43: #{tpu_custom_call.1} parent=11 // pred_region
          _
        $region44: #{tpu_custom_call.1} parent=11 // pred_fallthru
          _
        // Predicated region
        $region45: #{tpu_custom_call.1} parent=11 // pred_check
          %p467 = pneg %p253
        $region46: #{tpu_custom_call.1} parent=11 // pred_check_branch
          %469 = sbr.rel (%p467) target = $region48
        $region47: #{tpu_custom_call.1} parent=11 // pred_region
          _
        $region48: #{tpu_custom_call.1} parent=11 // pred_fallthru
          _
        // Predicated region
        $region49: #{tpu_custom_call.1} parent=11 // pred_check
          %p470 = pneg %p274
        $region50: #{tpu_custom_call.1} parent=11 // pred_check_branch
          %472 = sbr.rel (%p470) target = $region52
        $region51: #{tpu_custom_call.1} parent=11 // pred_region
          _
        $region52: #{tpu_custom_call.1} parent=11 // pred_fallthru
          _
        // Predicated region
        $region53: #{tpu_custom_call.1} parent=11 // pred_check
          %p473 = pneg %p295
        $region54: #{tpu_custom_call.1} parent=11 // pred_check_branch
          %475 = sbr.rel (%p473) target = $region56
        $region55: #{tpu_custom_call.1} parent=11 // pred_region
          _
        $region56: #{tpu_custom_call.1} parent=11 // pred_fallthru
          _
        // Predicated region
        $region57: #{tpu_custom_call.1} parent=11 // pred_check
          %p476 = pneg %p316
        $region58: #{tpu_custom_call.1} parent=11 // pred_check_branch
          %478 = sbr.rel (%p476) target = $region60
        $region59: #{tpu_custom_call.1} parent=11 // pred_region
          _
        $region60: #{tpu_custom_call.1} parent=11 // pred_fallthru
          _
        // Predicated region
        $region61: #{tpu_custom_call.1} parent=11 // pred_check
          %p479 = pneg %p337
        $region62: #{tpu_custom_call.1} parent=11 // pred_check_branch
          %481 = sbr.rel (%p479) target = $region64
        $region63: #{tpu_custom_call.1} parent=11 // pred_region
          _
        $region64: #{tpu_custom_call.1} parent=11 // pred_fallthru
          _
        // Predicated region
        $region65: #{tpu_custom_call.1} parent=11 // pred_check
          %p482 = pneg %p358
        $region66: #{tpu_custom_call.1} parent=11 // pred_check_branch
          %484 = sbr.rel (%p482) target = $region68
        $region67: #{tpu_custom_call.1} parent=11 // pred_region
          _
        $region68: #{tpu_custom_call.1} parent=11 // pred_fallthru
          _
        // Predicated region
        $region69: #{tpu_custom_call.1} parent=11 // pred_check
          %p485 = pneg %p379
        $region70: #{tpu_custom_call.1} parent=11 // pred_check_branch
          %487 = sbr.rel (%p485) target = $region72
        $region71: #{tpu_custom_call.1} parent=11 // pred_region
          _
        $region72: #{tpu_custom_call.1} parent=11 // pred_fallthru
          _
        // Predicated region
        $region73: #{tpu_custom_call.1} parent=11 // pred_check
          %p488 = pneg %p400
        $region74: #{tpu_custom_call.1} parent=11 // pred_check_branch
          %490 = sbr.rel (%p488) target = $region76
        $region75: #{tpu_custom_call.1} parent=11 // pred_region
          _
        $region76: #{tpu_custom_call.1} parent=11 // pred_fallthru
          _
      $region12: #{tpu_custom_call.1} parent=5 // pred_fallthru
        _
      %p491 = scmp.lt.s32.totalorder %s26, 2
      // Predicated region
      $region77: #{tpu_custom_call.1} parent=5 // pred_check
        %p492 = pneg %p491
      $region78: #{tpu_custom_call.1} parent=5 // pred_check_branch
        %494 = sbr.rel (%p492) target = $region80
      $region79: #{tpu_custom_call.1} parent=5 // pred_region
        // Predicated region
        $region81: #{tpu_custom_call.1} parent=79 // pred_check
          %p495 = pneg %p58
        $region82: #{tpu_custom_call.1} parent=79 // pred_check_branch
          %497 = sbr.rel (%p495) target = $region84
        $region83: #{tpu_custom_call.1} parent=79 // pred_region
          %p498 = scmp.lt.s32.totalorder %s33, 1
          %s499 = scalar_select %p498, %s33, 1
          %s500 = smul.addr %s499, 8
          %s501 = scalar_lea.vmem %s0, %s500
        $region84: #{tpu_custom_call.1} parent=79 // pred_fallthru
          _
      $region80: #{tpu_custom_call.1} parent=5 // pred_fallthru
        _
      %p502 = scmp.le.s32.totalorder 1, %s26
      %p503 = scmp.lt.s32.totalorder %s26, 3
      %p504 = pnand %p502, %p503
      %p505 = pneg %p504
      // Predicated region
      $region85: #{tpu_custom_call.1} parent=5 // pred_check
        _
      $region86: #{tpu_custom_call.1} parent=5 // pred_check_branch
        %507 = sbr.rel (%p504) target = $region88
      $region87: #{tpu_custom_call.1} parent=5 // pred_region
        %s508 = ssub.s32 %s26, 1
        %p509 = scmp.lt.s32.totalorder %s35, 1
        %s510 = scalar_select %p509, %s35, 1
        %s511 = smul.addr %s510, 8
        %s512 = scalar_lea.vmem %s0, %s511
        %p513 = pneg %p64
        %p514 = pneg %p61
        %p515 = pneg %p85
        %p516 = pneg %p82
        %p517 = pneg %p106
        %p518 = pneg %p103
        %p519 = pneg %p127
        %p520 = pneg %p124
        %p521 = pneg %p148
        %p522 = pneg %p145
        %p523 = pneg %p169
        %p524 = pneg %p166
        %p525 = pneg %p190
        %p526 = pneg %p187
        %p527 = pneg %p211
        %p528 = pneg %p208
        %p529 = pneg %p232
        %p530 = pneg %p229
        %p531 = pneg %p253
        %p532 = pneg %p250
        %p533 = pneg %p274
        %p534 = pneg %p271
        %p535 = pneg %p295
        %p536 = pneg %p292
        %p537 = pneg %p316
        %p538 = pneg %p313
        %p539 = pneg %p337
        %p540 = pneg %p334
        %p541 = pneg %p358
        %p542 = pneg %p355
        %p543 = pneg %p379
        %p544 = pneg %p376
        %p545 = pneg %p400
        %p546 = pneg %p397
        %p547 = pneg %p428
        %p548 = pneg %p425
        %s549 = sand.u32 %s415, 1
        %s550 = scalar_lea.sflag [#allocation3], %s549
        %s551 = sand.u32 %s415, 1
        %s552 = smul.addr %s551, 8
        %s553 = scalar_lea.vmem [#allocation2], %s552
        %p554 = scmp.lt.s32.totalorder %s35, 1
        %s555 = scalar_select %p554, %s35, 1
        %s556 = smul.addr %s555, 8
        %s557 = scalar_lea.vmem %s0, %s556
        %v559 = vld [vmem:[%s557] sm:$0xff]
        %v560 = vld [vmem:[%s1] sm:$0x1]
        %v561 = vld [vmem:[%s2] sm:$0x1]
        %vm562 = vcmask 261120
        %v563 = vsel %vm562, %v559, 0.0
        %564 = vadd.xlane.f32.xlu0 %v563
        %v565 = vpop.xlane.xlu0 %564
        %v566 = vrcp.pop 32.0
        %v567 = vmul.f32 32.0, %v566
        %v568 = vsub.f32 1.0, %v567
        %v569 = vmul.f32 %v566, %v568
        %v570 = vadd.f32 %v566, %v569
        %vm571 = vweird.f32 %v566
        %v572 = vsel %vm571, %v566, %v570
        %v573 = vmul.f32 %v565, %v572
        %v574 = vsub.f32 %v559, %v573
        %v575 = vmul.f32 %v574, %v574
        %v576 = vsel %vm562, %v575, 0.0
        %577 = vadd.xlane.f32.xlu0 %v576
        %v578 = vpop.xlane.xlu0 %577
        %v579 = vmul.f32 %v578, %v572
        %v580 = vadd.f32 %v579, 1e-05
        %v581 = vrsqrt.pop %v580
        %v582 = vmul.f32 %v581, %v580
        %v583 = vmul.f32 %v582, %v581
        %v584 = vmul.f32 0.5, %v583
        %v585 = vsub.f32 1.5, %v584
        %v586 = vmul.f32 %v581, %v585
        %vm587 = vweird.f32 %v580
        %vm588 = vweird.f32 %v581
        %vm589 = vmor %vm587, %vm588
        %v590 = vsel %vm589, %v581, %v586
        %v591 = vmul.f32 %v574, %v590
        %v593 = vperm.slane %v560, 0
        %v595 = vmul.f32 %v591, %v593
        %v597 = vperm.slane %v561, 0
        %v599 = vadd.f32 %v595, %v597
        %v600 = vpack.c.bf16 %v599, %v599
        %v601 = vld [vmem:[%s3] sm:$0xf]
        %v602 = vld [vmem:[%s3 + $0x4] sm:$0xf]
        %v603 = vld [vmem:[%s3 + $0x8] sm:$0xf]
        %v604 = vld [vmem:[%s3 + $0xc] sm:$0xf]
        %v605 = vld [vmem:[%s3 + $0x10] sm:$0xf]
        %v606 = vld [vmem:[%s3 + $0x14] sm:$0xf]
        %v607 = vld [vmem:[%s3 + $0x18] sm:$0xf]
        %v608 = vld [vmem:[%s3 + $0x1c] sm:$0xf]
        %v609 = vld [vmem:[%s3 + $0x20] sm:$0xf]
        %v610 = vld [vmem:[%s3 + $0x24] sm:$0xf]
        %v611 = vld [vmem:[%s3 + $0x28] sm:$0xf]
        %v612 = vld [vmem:[%s3 + $0x2c] sm:$0xf]
        %v613 = vld [vmem:[%s3 + $0x30] sm:$0xf]
        %v614 = vld [vmem:[%s3 + $0x34] sm:$0xf]
        %v615 = vld [vmem:[%s3 + $0x38] sm:$0xf]
        %v616 = vld [vmem:[%s3 + $0x3c] sm:$0xf]
        %v617 = vld [vmem:[%s4] sm:$0x1]
        %v618 = vld [vmem:[%s4 + $0x1] sm:$0x1]
        %v619 = vld [vmem:[%s4 + $0x2] sm:$0x1]
        %v620 = vld [vmem:[%s4 + $0x3] sm:$0x1]
        %v625 = vperm.slane %v617, 0
        %v626 = vperm.slane %v618, 0
        %v627 = vperm.slane %v619, 0
        %v628 = vperm.slane %v620, 0
        %v637 = vunpack.c.l.b16 %v601
        %v638 = vunpack.c.l.b16 %v602
        %v639 = vunpack.c.l.b16 %v603
        %v640 = vunpack.c.l.b16 %v604
        %v641 = vpack.c.b16 %v638, %v637
        %v642 = vpack.c.b16 %v640, %v639
        %v646 = vsel %vm562, %v600, 0
        %648 = vmatpush.bf16.msra.mxu0 0
        %649 = vmatpush.bf16.msra.mxu0 0
        %650 = vmatpush.bf16.msra.mxu0 0
        %651 = vmatpush.bf16.msra.mxu0 0
        %652 = vmatpush.bf16.msra.mxu0 0
        %653 = vmatpush.bf16.msra.mxu0 0
        %654 = vmatpush.bf16.msra.mxu0 %v642
        %655 = vmatpush.bf16.msra.mxu0 %v641
        %656 = vmatmul.bf16.gmra.mxu0 %v646
        %v657 = vpop.f32.mrf.mxu0
        %v658 = vadd.f32 %v625, %v657
        %v659 = vpop.f32.mrf.mxu0
        %660 = vdwg.mxu0
        %v665 = vunpack.c.l.b16 %v605
        %v666 = vunpack.c.l.b16 %v606
        %v667 = vunpack.c.l.b16 %v607
        %v668 = vunpack.c.l.b16 %v608
        %v669 = vpack.c.b16 %v666, %v665
        %v670 = vpack.c.b16 %v668, %v667
        %673 = vmatpush.bf16.msra.mxu0 0
        %674 = vmatpush.bf16.msra.mxu0 0
        %675 = vmatpush.bf16.msra.mxu0 0
        %676 = vmatpush.bf16.msra.mxu0 0
        %677 = vmatpush.bf16.msra.mxu0 0
        %678 = vmatpush.bf16.msra.mxu0 0
        %679 = vmatpush.bf16.msra.mxu0 %v670
        %680 = vmatpush.bf16.msra.mxu0 %v669
        %681 = vmatmul.bf16.gmra.mxu0 %v646
        %v682 = vpop.f32.mrf.mxu0
        %v683 = vadd.f32 %v626, %v682
        %v684 = vpop.f32.mrf.mxu0
        %685 = vdwg.mxu0
        %v690 = vunpack.c.l.b16 %v609
        %v691 = vunpack.c.l.b16 %v610
        %v692 = vunpack.c.l.b16 %v611
        %v693 = vunpack.c.l.b16 %v612
        %v694 = vpack.c.b16 %v691, %v690
        %v695 = vpack.c.b16 %v693, %v692
        %698 = vmatpush.bf16.msra.mxu0 0
        %699 = vmatpush.bf16.msra.mxu0 0
        %700 = vmatpush.bf16.msra.mxu0 0
        %701 = vmatpush.bf16.msra.mxu0 0
        %702 = vmatpush.bf16.msra.mxu0 0
        %703 = vmatpush.bf16.msra.mxu0 0
        %704 = vmatpush.bf16.msra.mxu0 %v695
        %705 = vmatpush.bf16.msra.mxu0 %v694
        %706 = vmatmul.bf16.gmra.mxu0 %v646
        %v707 = vpop.f32.mrf.mxu0
        %v708 = vadd.f32 %v627, %v707
        %v709 = vpop.f32.mrf.mxu0
        %710 = vdwg.mxu0
        %v715 = vunpack.c.l.b16 %v613
        %v716 = vunpack.c.l.b16 %v614
        %v717 = vunpack.c.l.b16 %v615
        %v718 = vunpack.c.l.b16 %v616
        %v719 = vpack.c.b16 %v716, %v715
        %v720 = vpack.c.b16 %v718, %v717
        %723 = vmatpush.bf16.msra.mxu0 0
        %724 = vmatpush.bf16.msra.mxu0 0
        %725 = vmatpush.bf16.msra.mxu0 0
        %726 = vmatpush.bf16.msra.mxu0 0
        %727 = vmatpush.bf16.msra.mxu0 0
        %728 = vmatpush.bf16.msra.mxu0 0
        %729 = vmatpush.bf16.msra.mxu0 %v720
        %730 = vmatpush.bf16.msra.mxu0 %v719
        %731 = vmatmul.bf16.gmra.mxu0 %v646
        %v732 = vpop.f32.mrf.mxu0
        %v733 = vadd.f32 %v628, %v732
        %v734 = vpop.f32.mrf.mxu0
        %735 = vdwg.mxu0
        %v736 = vpack.c.bf16 %v658, %v658
        %v737 = vpack.c.bf16 %v683, %v683
        %v738 = vpack.c.bf16 %v708, %v708
        %v739 = vpack.c.bf16 %v733, %v733
        %v740 = vld [vmem:[%s5] sm:$0xf]
        %v741 = vld [vmem:[%s5 + $0x4] sm:$0xf]
        %v742 = vld [vmem:[%s5 + $0x8] sm:$0xf]
        %v743 = vld [vmem:[%s5 + $0xc] sm:$0xf]
        %v744 = vld [vmem:[%s5 + $0x10] sm:$0xf]
        %v745 = vld [vmem:[%s5 + $0x14] sm:$0xf]
        %v746 = vld [vmem:[%s5 + $0x18] sm:$0xf]
        %v747 = vld [vmem:[%s5 + $0x1c] sm:$0xf]
        %v748 = vld [vmem:[%s5 + $0x20] sm:$0xf]
        %v749 = vld [vmem:[%s5 + $0x24] sm:$0xf]
        %v750 = vld [vmem:[%s5 + $0x28] sm:$0xf]
        %v751 = vld [vmem:[%s5 + $0x2c] sm:$0xf]
        %v752 = vld [vmem:[%s5 + $0x30] sm:$0xf]
        %v753 = vld [vmem:[%s5 + $0x34] sm:$0xf]
        %v754 = vld [vmem:[%s5 + $0x38] sm:$0xf]
        %v755 = vld [vmem:[%s5 + $0x3c] sm:$0xf]
        %v756 = vld [vmem:[%s6] sm:$0x1]
        %v757 = vld [vmem:[%s6 + $0x1] sm:$0x1]
        %v758 = vld [vmem:[%s6 + $0x2] sm:$0x1]
        %v759 = vld [vmem:[%s6 + $0x3] sm:$0x1]
        %v764 = vperm.slane %v756, 0
        %v765 = vperm.slane %v757, 0
        %v766 = vperm.slane %v758, 0
        %v767 = vperm.slane %v759, 0
        %v776 = vunpack.c.l.b16 %v740
        %v777 = vunpack.c.l.b16 %v741
        %v778 = vunpack.c.l.b16 %v742
        %v779 = vunpack.c.l.b16 %v743
        %v780 = vpack.c.b16 %v777, %v776
        %v781 = vpack.c.b16 %v779, %v778
        %784 = vmatpush.bf16.msra.mxu0 0
        %785 = vmatpush.bf16.msra.mxu0 0
        %786 = vmatpush.bf16.msra.mxu0 0
        %787 = vmatpush.bf16.msra.mxu0 0
        %788 = vmatpush.bf16.msra.mxu0 0
        %789 = vmatpush.bf16.msra.mxu0 0
        %790 = vmatpush.bf16.msra.mxu0 %v781
        %791 = vmatpush.bf16.msra.mxu0 %v780
        %792 = vmatmul.bf16.gmra.mxu0 %v646
        %v793 = vpop.f32.mrf.mxu0
        %v794 = vadd.f32 %v764, %v793
        %v795 = vpop.f32.mrf.mxu0
        %796 = vdwg.mxu0
        %v801 = vunpack.c.l.b16 %v744
        %v802 = vunpack.c.l.b16 %v745
        %v803 = vunpack.c.l.b16 %v746
        %v804 = vunpack.c.l.b16 %v747
        %v805 = vpack.c.b16 %v802, %v801
        %v806 = vpack.c.b16 %v804, %v803
        %809 = vmatpush.bf16.msra.mxu0 0
        %810 = vmatpush.bf16.msra.mxu0 0
        %811 = vmatpush.bf16.msra.mxu0 0
        %812 = vmatpush.bf16.msra.mxu0 0
        %813 = vmatpush.bf16.msra.mxu0 0
        %814 = vmatpush.bf16.msra.mxu0 0
        %815 = vmatpush.bf16.msra.mxu0 %v806
        %816 = vmatpush.bf16.msra.mxu0 %v805
        %817 = vmatmul.bf16.gmra.mxu0 %v646
        %v818 = vpop.f32.mrf.mxu0
        %v819 = vadd.f32 %v765, %v818
        %v820 = vpop.f32.mrf.mxu0
        %821 = vdwg.mxu0
        %v826 = vunpack.c.l.b16 %v748
        %v827 = vunpack.c.l.b16 %v749
        %v828 = vunpack.c.l.b16 %v750
        %v829 = vunpack.c.l.b16 %v751
        %v830 = vpack.c.b16 %v827, %v826
        %v831 = vpack.c.b16 %v829, %v828
        %834 = vmatpush.bf16.msra.mxu0 0
        %835 = vmatpush.bf16.msra.mxu0 0
        %836 = vmatpush.bf16.msra.mxu0 0
        %837 = vmatpush.bf16.msra.mxu0 0
        %838 = vmatpush.bf16.msra.mxu0 0
        %839 = vmatpush.bf16.msra.mxu0 0
        %840 = vmatpush.bf16.msra.mxu0 %v831
        %841 = vmatpush.bf16.msra.mxu0 %v830
        %842 = vmatmul.bf16.gmra.mxu0 %v646
        %v843 = vpop.f32.mrf.mxu0
        %v844 = vadd.f32 %v766, %v843
        %v845 = vpop.f32.mrf.mxu0
        %846 = vdwg.mxu0
        %v851 = vunpack.c.l.b16 %v752
        %v852 = vunpack.c.l.b16 %v753
        %v853 = vunpack.c.l.b16 %v754
        %v854 = vunpack.c.l.b16 %v755
        %v855 = vpack.c.b16 %v852, %v851
        %v856 = vpack.c.b16 %v854, %v853
        %859 = vmatpush.bf16.msra.mxu0 0
        %860 = vmatpush.bf16.msra.mxu0 0
        %861 = vmatpush.bf16.msra.mxu0 0
        %862 = vmatpush.bf16.msra.mxu0 0
        %863 = vmatpush.bf16.msra.mxu0 0
        %864 = vmatpush.bf16.msra.mxu0 0
        %865 = vmatpush.bf16.msra.mxu0 %v856
        %866 = vmatpush.bf16.msra.mxu0 %v855
        %867 = vmatmul.bf16.gmra.mxu0 %v646
        %v868 = vpop.f32.mrf.mxu0
        %v869 = vadd.f32 %v767, %v868
        %v870 = vpop.f32.mrf.mxu0
        %871 = vdwg.mxu0
        %v872 = vpack.c.bf16 %v794, %v794
        %v873 = vpack.c.bf16 %v819, %v819
        %v874 = vpack.c.bf16 %v844, %v844
        %v875 = vpack.c.bf16 %v869, %v869
        %v876 = vld [vmem:[%s7] sm:$0xf]
        %v877 = vld [vmem:[%s7 + $0x4] sm:$0xf]
        %v878 = vld [vmem:[%s7 + $0x8] sm:$0xf]
        %v879 = vld [vmem:[%s7 + $0xc] sm:$0xf]
        %v880 = vld [vmem:[%s7 + $0x10] sm:$0xf]
        %v881 = vld [vmem:[%s7 + $0x14] sm:$0xf]
        %v882 = vld [vmem:[%s7 + $0x18] sm:$0xf]
        %v883 = vld [vmem:[%s7 + $0x1c] sm:$0xf]
        %v884 = vld [vmem:[%s7 + $0x20] sm:$0xf]
        %v885 = vld [vmem:[%s7 + $0x24] sm:$0xf]
        %v886 = vld [vmem:[%s7 + $0x28] sm:$0xf]
        %v887 = vld [vmem:[%s7 + $0x2c] sm:$0xf]
        %v888 = vld [vmem:[%s7 + $0x30] sm:$0xf]
        %v889 = vld [vmem:[%s7 + $0x34] sm:$0xf]
        %v890 = vld [vmem:[%s7 + $0x38] sm:$0xf]
        %v891 = vld [vmem:[%s7 + $0x3c] sm:$0xf]
        %v892 = vld [vmem:[%s8] sm:$0x1]
        %v893 = vld [vmem:[%s8 + $0x1] sm:$0x1]
        %v894 = vld [vmem:[%s8 + $0x2] sm:$0x1]
        %v895 = vld [vmem:[%s8 + $0x3] sm:$0x1]
        %v900 = vperm.slane %v892, 0
        %v901 = vperm.slane %v893, 0
        %v902 = vperm.slane %v894, 0
        %v903 = vperm.slane %v895, 0
        %v912 = vunpack.c.l.b16 %v876
        %v913 = vunpack.c.l.b16 %v877
        %v914 = vunpack.c.l.b16 %v878
        %v915 = vunpack.c.l.b16 %v879
        %v916 = vpack.c.b16 %v913, %v912
        %v917 = vpack.c.b16 %v915, %v914
        %920 = vmatpush.bf16.msra.mxu0 0
        %921 = vmatpush.bf16.msra.mxu0 0
        %922 = vmatpush.bf16.msra.mxu0 0
        %923 = vmatpush.bf16.msra.mxu0 0
        %924 = vmatpush.bf16.msra.mxu0 0
        %925 = vmatpush.bf16.msra.mxu0 0
        %926 = vmatpush.bf16.msra.mxu0 %v917
        %927 = vmatpush.bf16.msra.mxu0 %v916
        %928 = vmatmul.bf16.gmra.mxu0 %v646
        %v929 = vpop.f32.mrf.mxu0
        %v930 = vadd.f32 %v900, %v929
        %v931 = vpop.f32.mrf.mxu0
        %932 = vdwg.mxu0
        %v937 = vunpack.c.l.b16 %v880
        %v938 = vunpack.c.l.b16 %v881
        %v939 = vunpack.c.l.b16 %v882
        %v940 = vunpack.c.l.b16 %v883
        %v941 = vpack.c.b16 %v938, %v937
        %v942 = vpack.c.b16 %v940, %v939
        %945 = vmatpush.bf16.msra.mxu0 0
        %946 = vmatpush.bf16.msra.mxu0 0
        %947 = vmatpush.bf16.msra.mxu0 0
        %948 = vmatpush.bf16.msra.mxu0 0
        %949 = vmatpush.bf16.msra.mxu0 0
        %950 = vmatpush.bf16.msra.mxu0 0
        %951 = vmatpush.bf16.msra.mxu0 %v942
        %952 = vmatpush.bf16.msra.mxu0 %v941
        %953 = vmatmul.bf16.gmra.mxu0 %v646
        %v954 = vpop.f32.mrf.mxu0
        %v955 = vadd.f32 %v901, %v954
        %v956 = vpop.f32.mrf.mxu0
        %957 = vdwg.mxu0
        %v962 = vunpack.c.l.b16 %v884
        %v963 = vunpack.c.l.b16 %v885
        %v964 = vunpack.c.l.b16 %v886
        %v965 = vunpack.c.l.b16 %v887
        %v966 = vpack.c.b16 %v963, %v962
        %v967 = vpack.c.b16 %v965, %v964
        %970 = vmatpush.bf16.msra.mxu0 0
        %971 = vmatpush.bf16.msra.mxu0 0
        %972 = vmatpush.bf16.msra.mxu0 0
        %973 = vmatpush.bf16.msra.mxu0 0
        %974 = vmatpush.bf16.msra.mxu0 0
        %975 = vmatpush.bf16.msra.mxu0 0
        %976 = vmatpush.bf16.msra.mxu0 %v967
        %977 = vmatpush.bf16.msra.mxu0 %v966
        %978 = vmatmul.bf16.gmra.mxu0 %v646
        %v979 = vpop.f32.mrf.mxu0
        %v980 = vadd.f32 %v902, %v979
        %v981 = vpop.f32.mrf.mxu0
        %982 = vdwg.mxu0
        %v987 = vunpack.c.l.b16 %v888
        %v988 = vunpack.c.l.b16 %v889
        %v989 = vunpack.c.l.b16 %v890
        %v990 = vunpack.c.l.b16 %v891
        %v991 = vpack.c.b16 %v988, %v987
        %v992 = vpack.c.b16 %v990, %v989
        %995 = vmatpush.bf16.msra.mxu0 0
        %996 = vmatpush.bf16.msra.mxu0 0
        %997 = vmatpush.bf16.msra.mxu0 0
        %998 = vmatpush.bf16.msra.mxu0 0
        %999 = vmatpush.bf16.msra.mxu0 0
        %1000 = vmatpush.bf16.msra.mxu0 0
        %1001 = vmatpush.bf16.msra.mxu0 %v992
        %1002 = vmatpush.bf16.msra.mxu0 %v991
        %1003 = vmatmul.bf16.gmra.mxu0 %v646
        %v1004 = vpop.f32.mrf.mxu0
        %v1005 = vadd.f32 %v903, %v1004
        %v1006 = vpop.f32.mrf.mxu0
        %1007 = vdwg.mxu0
        %v1008 = vpack.c.bf16 %v930, %v930
        %v1009 = vpack.c.bf16 %v955, %v955
        %v1010 = vpack.c.bf16 %v980, %v980
        %v1011 = vpack.c.bf16 %v1005, %v1005
        %vm1012 = vcmask 64512
        %v1014 = vsel %vm1012, %v736, 0
        %v1017 = vsel %vm1012, %v872, 0
        %1019 = vmatpush.bf16.xpose.msra.mxu0 0
        %1020 = vmatpush.bf16.xpose.msra.mxu0 0
        %1021 = vmatpush.bf16.xpose.msra.mxu0 0
        %1022 = vmatpush.bf16.xpose.msra.mxu0 0
        %1023 = vmatpush.bf16.xpose.msra.mxu0 0
        %1024 = vmatpush.bf16.xpose.msra.mxu0 0
        %1025 = vmatpush.bf16.xpose.msra.mxu0 0
        %1026 = vmatpush.bf16.xpose.msra.mxu0 %v1017
        %1027 = vmatmul.bf16.gmra.mxu0 %v1014
        %v1028 = vpop.f32.mrf.mxu0
        %v1029 = vadd.f32 0.0, %v1028
        %v1030 = vpop.f32.mrf.mxu0
        %1031 = vdwg.mxu0
        %v1033 = vsel %vm1012, %v737, 0
        %v1036 = vsel %vm1012, %v873, 0
        %1038 = vmatpush.bf16.xpose.msra.mxu0 0
        %1039 = vmatpush.bf16.xpose.msra.mxu0 0
        %1040 = vmatpush.bf16.xpose.msra.mxu0 0
        %1041 = vmatpush.bf16.xpose.msra.mxu0 0
        %1042 = vmatpush.bf16.xpose.msra.mxu0 0
        %1043 = vmatpush.bf16.xpose.msra.mxu0 0
        %1044 = vmatpush.bf16.xpose.msra.mxu0 0
        %1045 = vmatpush.bf16.xpose.msra.mxu0 %v1036
        %1046 = vmatmul.bf16.gmra.mxu0 %v1033
        %v1047 = vpop.f32.mrf.mxu0
        %v1048 = vadd.f32 0.0, %v1047
        %v1049 = vpop.f32.mrf.mxu0
        %1050 = vdwg.mxu0
        %v1052 = vsel %vm1012, %v738, 0
        %v1055 = vsel %vm1012, %v874, 0
        %1057 = vmatpush.bf16.xpose.msra.mxu0 0
        %1058 = vmatpush.bf16.xpose.msra.mxu0 0
        %1059 = vmatpush.bf16.xpose.msra.mxu0 0
        %1060 = vmatpush.bf16.xpose.msra.mxu0 0
        %1061 = vmatpush.bf16.xpose.msra.mxu0 0
        %1062 = vmatpush.bf16.xpose.msra.mxu0 0
        %1063 = vmatpush.bf16.xpose.msra.mxu0 0
        %1064 = vmatpush.bf16.xpose.msra.mxu0 %v1055
        %1065 = vmatmul.bf16.gmra.mxu0 %v1052
        %v1066 = vpop.f32.mrf.mxu0
        %v1067 = vadd.f32 0.0, %v1066
        %v1068 = vpop.f32.mrf.mxu0
        %1069 = vdwg.mxu0
        %v1071 = vsel %vm1012, %v739, 0
        %v1074 = vsel %vm1012, %v875, 0
        %1076 = vmatpush.bf16.xpose.msra.mxu0 0
        %1077 = vmatpush.bf16.xpose.msra.mxu0 0
        %1078 = vmatpush.bf16.xpose.msra.mxu0 0
        %1079 = vmatpush.bf16.xpose.msra.mxu0 0
        %1080 = vmatpush.bf16.xpose.msra.mxu0 0
        %1081 = vmatpush.bf16.xpose.msra.mxu0 0
        %1082 = vmatpush.bf16.xpose.msra.mxu0 0
        %1083 = vmatpush.bf16.xpose.msra.mxu0 %v1074
        %1084 = vmatmul.bf16.gmra.mxu0 %v1071
        %v1085 = vpop.f32.mrf.mxu0
        %v1086 = vadd.f32 0.0, %v1085
        %v1087 = vpop.f32.mrf.mxu0
        %1088 = vdwg.mxu0
        %v1089 = vmul.f32 %v1029, 0.35355338
        %v1090 = vmul.f32 %v1048, 0.35355338
        %v1091 = vmul.f32 %v1067, 0.35355338
        %v1092 = vmul.f32 %v1086, 0.35355338
        %v1093 = vsel %vm1012, %v1089, -inf
        %1094 = vmax.xlane.f32.xlu0 %v1093
        %v1095 = vpop.xlane.xlu0 %1094
        %v1096 = vsel %vm1012, %v1090, -inf
        %1097 = vmax.xlane.f32.xlu0 %v1096
        %v1098 = vpop.xlane.xlu0 %1097
        %v1099 = vsel %vm1012, %v1091, -inf
        %1100 = vmax.xlane.f32.xlu0 %v1099
        %v1101 = vpop.xlane.xlu0 %1100
        %v1102 = vsel %vm1012, %v1092, -inf
        %1103 = vmax.xlane.f32.xlu0 %v1102
        %v1104 = vpop.xlane.xlu0 %1103
        %v1105 = vsub.f32 %v1089, %v1095
        %v1106 = vsub.f32 %v1090, %v1098
        %v1107 = vsub.f32 %v1091, %v1101
        %v1108 = vsub.f32 %v1092, %v1104
        %v1109 = vmul.f32 %v1105, 1.442695
        %v1110 = vpow.pop %v1109
        %v1111 = vmul.f32 %v1106, 1.442695
        %v1112 = vpow.pop %v1111
        %v1113 = vmul.f32 %v1107, 1.442695
        %v1114 = vpow.pop %v1113
        %v1115 = vmul.f32 %v1108, 1.442695
        %v1116 = vpow.pop %v1115
        %v1117 = vsel %vm1012, %v1110, 0.0
        %1118 = vadd.xlane.f32.xlu0 %v1117
        %v1119 = vpop.xlane.xlu0 %1118
        %v1120 = vsel %vm1012, %v1112, 0.0
        %1121 = vadd.xlane.f32.xlu0 %v1120
        %v1122 = vpop.xlane.xlu0 %1121
        %v1123 = vsel %vm1012, %v1114, 0.0
        %1124 = vadd.xlane.f32.xlu0 %v1123
        %v1125 = vpop.xlane.xlu0 %1124
        %v1126 = vsel %vm1012, %v1116, 0.0
        %1127 = vadd.xlane.f32.xlu0 %v1126
        %v1128 = vpop.xlane.xlu0 %1127
        %v1129 = vrcp.pop %v1119
        %v1130 = vrcp.pop %v1122
        %v1131 = vrcp.pop %v1125
        %v1132 = vrcp.pop %v1128
        %v1133 = vmul.f32 %v1110, %v1129
        %v1134 = vmul.f32 %v1112, %v1130
        %v1135 = vmul.f32 %v1114, %v1131
        %v1136 = vmul.f32 %v1116, %v1132
        %v1137 = vpack.c.bf16 %v1133, %v1133
        %v1138 = vpack.c.bf16 %v1134, %v1134
        %v1139 = vpack.c.bf16 %v1135, %v1135
        %v1140 = vpack.c.bf16 %v1136, %v1136
        %v1142 = vsel %vm1012, %v1137, 0
        %vm1144 = vcmask 1043456
        %v1146 = vsel %vm1144, %v1008, 0
        %1148 = vmatpush.bf16.msra.mxu0 0
        %1149 = vmatpush.bf16.msra.mxu0 0
        %1150 = vmatpush.bf16.msra.mxu0 0
        %1151 = vmatpush.bf16.msra.mxu0 0
        %1152 = vmatpush.bf16.msra.mxu0 0
        %1153 = vmatpush.bf16.msra.mxu0 0
        %1154 = vmatpush.bf16.msra.mxu0 0
        %1155 = vmatpush.bf16.msra.mxu0 %v1146
        %1156 = vmatmul.bf16.gmra.mxu0 %v1142
        %v1157 = vpop.f32.mrf.mxu0
        %v1158 = vadd.f32 0.0, %v1157
        %v1159 = vpop.f32.mrf.mxu0
        %1160 = vdwg.mxu0
        %v1162 = vsel %vm1012, %v1138, 0
        %v1165 = vsel %vm1144, %v1009, 0
        %1167 = vmatpush.bf16.msra.mxu0 0
        %1168 = vmatpush.bf16.msra.mxu0 0
        %1169 = vmatpush.bf16.msra.mxu0 0
        %1170 = vmatpush.bf16.msra.mxu0 0
        %1171 = vmatpush.bf16.msra.mxu0 0
        %1172 = vmatpush.bf16.msra.mxu0 0
        %1173 = vmatpush.bf16.msra.mxu0 0
        %1174 = vmatpush.bf16.msra.mxu0 %v1165
        %1175 = vmatmul.bf16.gmra.mxu0 %v1162
        %v1176 = vpop.f32.mrf.mxu0
        %v1177 = vadd.f32 0.0, %v1176
        %v1178 = vpop.f32.mrf.mxu0
        %1179 = vdwg.mxu0
        %v1181 = vsel %vm1012, %v1139, 0
        %v1184 = vsel %vm1144, %v1010, 0
        %1186 = vmatpush.bf16.msra.mxu0 0
        %1187 = vmatpush.bf16.msra.mxu0 0
        %1188 = vmatpush.bf16.msra.mxu0 0
        %1189 = vmatpush.bf16.msra.mxu0 0
        %1190 = vmatpush.bf16.msra.mxu0 0
        %1191 = vmatpush.bf16.msra.mxu0 0
        %1192 = vmatpush.bf16.msra.mxu0 0
        %1193 = vmatpush.bf16.msra.mxu0 %v1184
        %1194 = vmatmul.bf16.gmra.mxu0 %v1181
        %v1195 = vpop.f32.mrf.mxu0
        %v1196 = vadd.f32 0.0, %v1195
        %v1197 = vpop.f32.mrf.mxu0
        %1198 = vdwg.mxu0
        %v1200 = vsel %vm1012, %v1140, 0
        %v1203 = vsel %vm1144, %v1011, 0
        %1205 = vmatpush.bf16.msra.mxu0 0
        %1206 = vmatpush.bf16.msra.mxu0 0
        %1207 = vmatpush.bf16.msra.mxu0 0
        %1208 = vmatpush.bf16.msra.mxu0 0
        %1209 = vmatpush.bf16.msra.mxu0 0
        %1210 = vmatpush.bf16.msra.mxu0 0
        %1211 = vmatpush.bf16.msra.mxu0 0
        %1212 = vmatpush.bf16.msra.mxu0 %v1203
        %1213 = vmatmul.bf16.gmra.mxu0 %v1200
        %v1214 = vpop.f32.mrf.mxu0
        %v1215 = vadd.f32 0.0, %v1214
        %v1216 = vpop.f32.mrf.mxu0
        %1217 = vdwg.mxu0
        %v1218 = vpack.c.bf16 %v1158, %v1158
        %v1219 = vpack.c.bf16 %v1177, %v1177
        %v1220 = vpack.c.bf16 %v1196, %v1196
        %v1221 = vpack.c.bf16 %v1215, %v1215
        %v1222 = vld [vmem:[%s9] sm:$0xf]
        %v1223 = vld [vmem:[%s9 + $0x4] sm:$0xf]
        %v1224 = vld [vmem:[%s9 + $0x8] sm:$0xf]
        %v1225 = vld [vmem:[%s9 + $0xc] sm:$0xf]
        %v1227 = vsel %vm1012, %v1218, 0
        %v1230 = vsel %vm1144, %v1222, 0
        %1232 = vmatpush.bf16.msra.mxu0 0
        %1233 = vmatpush.bf16.msra.mxu0 0
        %1234 = vmatpush.bf16.msra.mxu0 0
        %1235 = vmatpush.bf16.msra.mxu0 0
        %1236 = vmatpush.bf16.msra.mxu0 0
        %1237 = vmatpush.bf16.msra.mxu0 0
        %1238 = vmatpush.bf16.msra.mxu0 0
        %1239 = vmatpush.bf16.msra.mxu0 %v1230
        %1240 = vmatmul.bf16.gmra.mxu0 %v1227
        %v1241 = vpop.f32.mrf.mxu0
        %v1242 = vadd.f32 0.0, %v1241
        %v1243 = vpop.f32.mrf.mxu0
        %1244 = vdwg.mxu0
        %v1246 = vsel %vm1012, %v1219, 0
        %v1249 = vsel %vm1144, %v1223, 0
        %1251 = vmatpush.bf16.msra.mxu0 0
        %1252 = vmatpush.bf16.msra.mxu0 0
        %1253 = vmatpush.bf16.msra.mxu0 0
        %1254 = vmatpush.bf16.msra.mxu0 0
        %1255 = vmatpush.bf16.msra.mxu0 0
        %1256 = vmatpush.bf16.msra.mxu0 0
        %1257 = vmatpush.bf16.msra.mxu0 0
        %1258 = vmatpush.bf16.msra.mxu0 %v1249
        %1259 = vmatmul.bf16.gmra.mxu0 %v1246
        %v1260 = vpop.f32.mrf.mxu0
        %v1261 = vadd.f32 0.0, %v1260
        %v1262 = vpop.f32.mrf.mxu0
        %1263 = vdwg.mxu0
        %v1265 = vsel %vm1012, %v1220, 0
        %v1268 = vsel %vm1144, %v1224, 0
        %1270 = vmatpush.bf16.msra.mxu0 0
        %1271 = vmatpush.bf16.msra.mxu0 0
        %1272 = vmatpush.bf16.msra.mxu0 0
        %1273 = vmatpush.bf16.msra.mxu0 0
        %1274 = vmatpush.bf16.msra.mxu0 0
        %1275 = vmatpush.bf16.msra.mxu0 0
        %1276 = vmatpush.bf16.msra.mxu0 0
        %1277 = vmatpush.bf16.msra.mxu0 %v1268
        %1278 = vmatmul.bf16.gmra.mxu0 %v1265
        %v1279 = vpop.f32.mrf.mxu0
        %v1280 = vadd.f32 0.0, %v1279
        %v1281 = vpop.f32.mrf.mxu0
        %1282 = vdwg.mxu0
        %v1284 = vsel %vm1012, %v1221, 0
        %v1287 = vsel %vm1144, %v1225, 0
        %1289 = vmatpush.bf16.msra.mxu0 0
        %1290 = vmatpush.bf16.msra.mxu0 0
        %1291 = vmatpush.bf16.msra.mxu0 0
        %1292 = vmatpush.bf16.msra.mxu0 0
        %1293 = vmatpush.bf16.msra.mxu0 0
        %1294 = vmatpush.bf16.msra.mxu0 0
        %1295 = vmatpush.bf16.msra.mxu0 0
        %1296 = vmatpush.bf16.msra.mxu0 %v1287
        %1297 = vmatmul.bf16.gmra.mxu0 %v1284
        %v1298 = vpop.f32.mrf.mxu0
        %v1299 = vadd.f32 0.0, %v1298
        %v1300 = vpop.f32.mrf.mxu0
        %1301 = vdwg.mxu0
        %v1302 = vsel %vm562, %v1242, 0.0
        %v1303 = vsel %vm562, %v1261, 0.0
        %v1304 = vadd.f32 %v1302, %v1303
        %v1305 = vsel %vm562, %v1280, 0.0
        %v1306 = vadd.f32 %v1304, %v1305
        %v1307 = vsel %vm562, %v1299, 0.0
        %v1308 = vadd.f32 %v1306, %v1307
        %v1309 = vld [vmem:[%s10] sm:$0x1]
        %v1311 = vperm.slane %v1309, 0
        %v1313 = vadd.f32 %v1308, %v1311
        %v1314 = vadd.f32 %v559, %v1313
        %v1315 = vld [vmem:[%s11] sm:$0x1]
        %v1316 = vld [vmem:[%s12] sm:$0x1]
        %v1317 = vsel %vm562, %v1314, 0.0
        %1318 = vadd.xlane.f32.xlu0 %v1317
        %v1319 = vpop.xlane.xlu0 %1318
        %v1320 = vmul.f32 %v1319, %v572
        %v1321 = vsub.f32 %v1314, %v1320
        %v1322 = vmul.f32 %v1321, %v1321
        %v1323 = vsel %vm562, %v1322, 0.0
        %1324 = vadd.xlane.f32.xlu0 %v1323
        %v1325 = vpop.xlane.xlu0 %1324
        %v1326 = vmul.f32 %v1325, %v572
        %v1327 = vadd.f32 %v1326, 1e-05
        %v1328 = vrsqrt.pop %v1327
        %v1329 = vmul.f32 %v1328, %v1327
        %v1330 = vmul.f32 %v1329, %v1328
        %v1331 = vmul.f32 0.5, %v1330
        %v1332 = vsub.f32 1.5, %v1331
        %v1333 = vmul.f32 %v1328, %v1332
        %vm1334 = vweird.f32 %v1327
        %vm1335 = vweird.f32 %v1328
        %vm1336 = vmor %vm1334, %vm1335
        %v1337 = vsel %vm1336, %v1328, %v1333
        %v1338 = vmul.f32 %v1321, %v1337
        %v1340 = vperm.slane %v1315, 0
        %v1342 = vmul.f32 %v1338, %v1340
        %v1344 = vperm.slane %v1316, 0
        %v1346 = vadd.f32 %v1342, %v1344
        %v1347 = vpack.c.bf16 %v1346, %v1346
        %v1348 = vld [vmem:[%s13] sm:$0xf]
        %v1349 = vld [vmem:[%s13 + $0x4] sm:$0xf]
        %v1350 = vld [vmem:[%s13 + $0x8] sm:$0xf]
        %v1351 = vld [vmem:[%s13 + $0xc] sm:$0xf]
        %v1352 = vld [vmem:[%s14] sm:$0x1]
        %v1354 = vperm.slane %v1352, 0
        %v1360 = vunpack.c.l.b16 %v1348
        %v1361 = vunpack.c.l.b16 %v1349
        %v1362 = vunpack.c.l.b16 %v1350
        %v1363 = vunpack.c.l.b16 %v1351
        %v1364 = vpack.c.b16 %v1361, %v1360
        %v1365 = vpack.c.b16 %v1363, %v1362
        %v1369 = vsel %vm562, %v1347, 0
        %1371 = vmatpush.bf16.msra.mxu0 0
        %1372 = vmatpush.bf16.msra.mxu0 0
        %1373 = vmatpush.bf16.msra.mxu0 0
        %1374 = vmatpush.bf16.msra.mxu0 0
        %1375 = vmatpush.bf16.msra.mxu0 0
        %1376 = vmatpush.bf16.msra.mxu0 0
        %1377 = vmatpush.bf16.msra.mxu0 %v1365
        %1378 = vmatpush.bf16.msra.mxu0 %v1364
        %1379 = vmatmul.bf16.gmra.mxu0 %v1369
        %v1380 = vpop.f32.mrf.mxu0
        %v1381 = vadd.f32 %v1354, %v1380
        %v1382 = vpop.f32.mrf.mxu0
        %1383 = vdwg.mxu0
        %v1384 = vmax.f32 %v1381, 0.0
        %v1385 = vpack.c.bf16 %v1384, %v1384
        %v1386 = vld [vmem:[%s15] sm:$0xf]
        %v1387 = vld [vmem:[%s15 + $0x4] sm:$0xf]
        %v1388 = vld [vmem:[%s15 + $0x8] sm:$0xf]
        %v1389 = vld [vmem:[%s15 + $0xc] sm:$0xf]
        %v1390 = vld [vmem:[%s15 + $0x10] sm:$0xf]
        %v1391 = vld [vmem:[%s15 + $0x14] sm:$0xf]
        %v1392 = vld [vmem:[%s15 + $0x18] sm:$0xf]
        %v1393 = vld [vmem:[%s15 + $0x1c] sm:$0xf]
        %v1394 = vld [vmem:[%s16] sm:$0x1]
        %v1396 = vperm.slane %v1394, 0
        %v1406 = vunpack.c.l.b16 %v1386
        %v1407 = vunpack.c.l.b16 %v1387
        %v1408 = vunpack.c.l.b16 %v1388
        %v1409 = vunpack.c.l.b16 %v1389
        %v1410 = vunpack.c.l.b16 %v1390
        %v1411 = vunpack.c.l.b16 %v1391
        %v1412 = vunpack.c.l.b16 %v1392
        %v1413 = vunpack.c.l.b16 %v1393
        %v1414 = vpack.c.b16 %v1407, %v1406
        %v1415 = vpack.c.b16 %v1409, %v1408
        %v1416 = vpack.c.b16 %v1411, %v1410
        %v1417 = vpack.c.b16 %v1413, %v1412
        %vm1422 = vcmask 523264
        %v1424 = vsel %vm1422, %v1385, 0
        %1426 = vmatpush.bf16.msra.mxu0 0
        %1427 = vmatpush.bf16.msra.mxu0 0
        %1428 = vmatpush.bf16.msra.mxu0 0
        %1429 = vmatpush.bf16.msra.mxu0 0
        %1430 = vmatpush.bf16.msra.mxu0 %v1417
        %1431 = vmatpush.bf16.msra.mxu0 %v1416
        %1432 = vmatpush.bf16.msra.mxu0 %v1415
        %1433 = vmatpush.bf16.msra.mxu0 %v1414
        %1434 = vmatmul.bf16.gmra.mxu0 %v1424
        %v1435 = vpop.f32.mrf.mxu0
        %v1436 = vadd.f32 %v1396, %v1435
        %v1437 = vpop.f32.mrf.mxu0
        %1438 = vdwg.mxu0
        %v1439 = vadd.f32 %v1314, %v1436
        %1440 = vst.msk [vmem:[%s553] sm:$0xff] %vm562, %v1439
        %s1441 = sand.u32 %s415, 1
        %s1442 = scalar_lea.sflag [#allocation3], %s1441
        %s1443 = sand.u32 %s415, 1
        %s1444 = smul.addr %s1443, 8
        %s1445 = scalar_lea.vmem [#allocation2], %s1444
        // Predicated region
        $region89: #{tpu_custom_call.1} parent=87 // pred_check
          %p1446 = pneg %p425
        $region90: #{tpu_custom_call.1} parent=87 // pred_check_branch
          %1448 = sbr.rel (%p1446) target = $region92
        $region91: #{tpu_custom_call.1} parent=87 // pred_region
          %1450 = vsyncadd %s1442, 0
          %s1451 = sadd.s32 %s36, %s35
          %s1452 = smul.addr %s1451, 8
          %s1453 = scalar_lea.hbm %s17, %s1452
          %s1455 = sshll.u32 %s1445, 4
          %s1456 = int_to_ptr.vmem [resolvable:$true] %s1455
          %s1457 = sshll.u32 %s1453, 4
          %s1458 = int_to_ptr.hbm [resolvable:$true] %s1457
          %1460 = dma.vmem_to_hbm [thread:$0]  %s1456, 128, %s1458, %s1442
        $region92: #{tpu_custom_call.1} parent=87 // pred_fallthru
          _
      $region88: #{tpu_custom_call.1} parent=5 // pred_fallthru
        _
      %p1461 = scmp.le.s32.totalorder 2, %s26
      // Predicated region
      $region93: #{tpu_custom_call.1} parent=5 // pred_check
        %p1462 = pneg %p1461
      $region94: #{tpu_custom_call.1} parent=5 // pred_check_branch
        %1464 = sbr.rel (%p1462) target = $region96
      $region95: #{tpu_custom_call.1} parent=5 // pred_region
        %s1465 = ssub.s32 %s26, 2
        // Predicated region
        $region97: #{tpu_custom_call.1} parent=95 // pred_check
          %p1466 = pneg %p431
        $region98: #{tpu_custom_call.1} parent=95 // pred_check_branch
          %1468 = sbr.rel (%p1466) target = $region100
        $region99: #{tpu_custom_call.1} parent=95 // pred_region
          %s1469 = sand.u32 %s416, 1
          %s1470 = scalar_lea.sflag [#allocation3], %s1469
          %s1471 = sand.u32 %s416, 1
          %s1472 = smul.addr %s1471, 8
          %s1473 = scalar_lea.vmem [#allocation2], %s1472
          %1475 = dma.done %s1470, 128
        $region100: #{tpu_custom_call.1} parent=95 // pred_fallthru
          _
      $region96: #{tpu_custom_call.1} parent=5 // pred_fallthru
        _
    $region6: #{tpu_custom_call.1} parent=1 // loop_footer
      %s30 = sadd.s32 1, %s26
    $region7: #{tpu_custom_call.1} parent=1 // loop_footer_branch
      %25 = sbr.rel target = $region3
    $region8: #{tpu_custom_call.1} parent=1 // loop_exit
      _
    %1476 = vsyncpa [#allocation3], 1
    %s1477 = scalar_lea.sflag [#allocation3], 1
    %1478 = vsyncpa %s1477, 1

</llo_original>
